<compile_context>
chip_gen: v6e
topology: v6e:2x2x1
jax: 0.10.0
libtpu: 0.0.40
codegen_flags: <defaults>
</compile_context>

<pallas_src>
import math

import jax
import jax.numpy as jnp
from jax.experimental import pallas as pl
from jax.experimental.pallas import tpu as pltpu

# ----------------------------- configuration ---------------------------------
D_MODEL = 32
NHEAD = 4
DH = D_MODEL // NHEAD
NUM_EXPERTS = 4
D_FF_EXPERT = 64
E_WIDTH = NUM_EXPERTS * D_FF_EXPERT        # 256
D_FF_DEC = 64                              # hard-coded nn.Linear(d_model, 64) in Decoder_Layer
NUM_DEC_LAYERS = 3
D_LONG = 3
D_BASE = 5
B, T = 2, 8
S = T
BT = B * T
OUT_PAD = 128                              # lane-dense packed output width
WIDE = 256

# ---- activation slab (f32, width d_model) rows ----
A_XIN, A_PE_OBS, A_PE_PRED, A_MASK = 0, BT, 2 * BT, 3 * BT
ACT_ROWS = 4 * BT

# ---- narrow (width d_model) bf16 weight slab rows ----
WN_EMB1, WN_EMB2 = 0, 32
WN_Q_DEC, WN_K_DEC = 64, 96
WN_Q_MM, WN_K_MM = 128, 160
WN_GATE = 192
WN_FF2 = 224                               # D_FF_DEC rows
WN_WE2 = WN_FF2 + D_FF_DEC                 # E_WIDTH rows
WN_ROWS = WN_WE2 + E_WIDTH                 # 544

# ---- wide (width 256) bf16 weight slab rows ----
WW_FF1 = 0                                 # lanes 0..63
WW_VO_DEC = 32                             # lanes 0..127 : Wv@Wo folded, all 4 heads
WW_VO_MM = 64
WW_HEAD_L = 96                             # lanes 0..D_LONG-1
WW_HEAD_S = 128                            # lane D_LONG
WW_WE1 = 160                               # lanes 0..255
WW_ROWS = 192

# ---- f32 (width d_model) bias / LayerNorm slab rows ----
V_BE2 = 0                                  # NUM_EXPERTS rows
V_B_EMB1, V_LN_EMB_G, V_LN_EMB_B, V_B_EMB2 = 4, 5, 6, 7
V_BQ_DEC, V_BK_DEC, V_BO_DEC = 8, 9, 10
V_LN1_G, V_LN1_B, V_B_FF2, V_LN2_G, V_LN2_B = 11, 12, 13, 14, 15
V_BQ_MM, V_BK_MM, V_BO_MM = 16, 17, 18
V_LNM_G, V_LNM_B = 19, 20
V32_ROWS = 24

# ---- f32 (width 256) wide-bias slab rows ----
W_B_FF1, W_B_E1, W_B_GATE, W_B_HEAD = 0, 1, 2, 3
W_BVO_DEC, W_BVO_MM, W_SIGSEL = 4, 5, 6
W_EXPAND = 8                               # NUM_EXPERTS rows, sublane-aligned
V256_ROWS = 16


# ----------------------------- glue (plain JAX) -------------------------------
def positional_encoding(batch, seq, d_model, t):
    """Sinusoidal PE whose position is the (continuous) time value."""
    pos = t[..., None].astype(jnp.float32)                              # (B, T, 1)
    i = jnp.arange(0, d_model, 2, dtype=jnp.float32)
    div = jnp.exp(-jnp.log(10000.0) * i / d_model)
    pe = jnp.zeros((batch, seq, d_model), jnp.float32)
    pe = pe.at[..., 0::2].set(jnp.sin(pos * div))
    pe = pe.at[..., 1::2].set(jnp.cos(pos * div))
    return pe


# ----------------------------- the Pallas kernel ------------------------------
def transformer2_kernel(act_ref, wn_ref, ww_ref, v32_ref, v256_ref, out_ref):
    f32, bf16 = jnp.float32, jnp.bfloat16

    def mm(x, w):                       # bf16 MXU matmul, f32 accumulate
        return jnp.dot(x.astype(bf16), w, preferred_element_type=f32)

    def layer_norm(x, gi, bi):          # one-pass variance: independent cross-lane reductions
        mu = jnp.mean(x, axis=-1, keepdims=True)
        var = jnp.mean(x * x, axis=-1, keepdims=True) - mu * mu
        return (x - mu) * jax.lax.rsqrt(var + 1e-5) * v32_ref[gi] + v32_ref[bi]

    def softmax_exact(x):
        x = x - jnp.max(x, axis=-1, keepdims=True)
        e = jnp.exp(x)
        return e / jnp.sum(e, axis=-1, keepdims=True)

    mask_bias = act_ref[A_MASK:A_MASK + BT, :S].reshape(B, T, S)   # (1-mask)*-1e9, additive

    def mha(x_q, x_kv, wq_row, wk_row, vo_row, bq_i, bk_i, bvo_i, bo_i):
        # fused lane-dense projections: 2 x (16,32)@(32,32) + 1 x (16,32)@(32,128)
        q_all = mm(x_q, wn_ref[wq_row:wq_row + D_MODEL, :]) + v32_ref[bq_i]    # scale pre-folded
        k_all = mm(x_kv, wn_ref[wk_row:wk_row + D_MODEL, :]) + v32_ref[bk_i]
        v_all = mm(x_kv, ww_ref[vo_row:vo_row + D_MODEL, :NHEAD * D_MODEL]) \
            + v256_ref[bvo_i, :NHEAD * D_MODEL]                                # Wv@Wo folded
        acc = jnp.zeros((B, T, D_MODEL), f32)
        for h in range(NHEAD):
            q3 = q_all[:, h * DH:(h + 1) * DH].reshape(B, T, DH)
            k3 = k_all[:, h * DH:(h + 1) * DH].reshape(B, S, DH)
            v3 = v_all[:, h * D_MODEL:(h + 1) * D_MODEL].reshape(B, S, D_MODEL)
            s = jnp.einsum("btd,bsd->bts", q3, k3, preferred_element_type=f32) + mask_bias
            s = s - jnp.max(s, axis=-1, keepdims=True)
            e = jnp.exp(s)
            p = e * pl.reciprocal(jnp.sum(e, axis=-1, keepdims=True), approx=True)
            acc = acc + jnp.einsum("bts,bsd->btd", p, v3, preferred_element_type=f32)
        return acc.reshape(BT, D_MODEL) + v32_ref[bo_i]

    # ---- Decoder.embedding: Linear -> ReLU -> Dropout(id) -> LayerNorm -> Linear (+ PE) ----
    xin = act_ref[A_XIN:A_XIN + BT, :]                      # (BT, 32), lanes >= 8 are zero
    e1 = jnp.maximum(mm(xin, wn_ref[WN_EMB1:WN_EMB1 + D_MODEL, :]) + v32_ref[V_B_EMB1], 0.0)
    e1 = layer_norm(e1, V_LN_EMB_G, V_LN_EMB_B)
    x = mm(e1, wn_ref[WN_EMB2:WN_EMB2 + D_MODEL, :]) + v32_ref[V_B_EMB2] \
        + act_ref[A_PE_OBS:A_PE_OBS + BT, :]

    # ---- last Decoder_Layer (earlier layers are discarded by Decoder.forward) ----
    attn1 = mha(x, x, WN_Q_DEC, WN_K_DEC, WW_VO_DEC, V_BQ_DEC, V_BK_DEC, W_BVO_DEC, V_BO_DEC)
    x1 = layer_norm(x + attn1, V_LN1_G, V_LN1_B)
    h = jnp.maximum(mm(x1, ww_ref[WW_FF1:WW_FF1 + D_MODEL, :D_FF_DEC])
                    + v256_ref[W_B_FF1, :D_FF_DEC], 0.0)
    ff = mm(h, wn_ref[WN_FF2:WN_FF2 + D_FF_DEC, :]) + v32_ref[V_B_FF2]
    dec = layer_norm(x1 + ff, V_LN2_G, V_LN2_B)

    # ---- Decoder_MMOE_Layer ----
    q_m = dec + act_ref[A_PE_PRED:A_PE_PRED + BT, :]        # + positional_encoding(pred_time)
    attn2 = mha(q_m, dec, WN_Q_MM, WN_K_MM, WW_VO_MM, V_BQ_MM, V_BK_MM, W_BVO_MM, V_BO_MM)
    x2 = layer_norm(q_m + attn2, V_LNM_G, V_LNM_B)

    # task gates: one fused projection, exact per-task softmax (calibrated probabilities)
    g = mm(x2, wn_ref[WN_GATE:WN_GATE + D_MODEL, :2 * NUM_EXPERTS]) \
        + v256_ref[W_B_GATE, :2 * NUM_EXPERTS]
    gl = softmax_exact(g[:, :NUM_EXPERTS])
    gs = softmax_exact(g[:, NUM_EXPERTS:])
    g_cat = jnp.concatenate([gl, gs], axis=0)                                   # (2*BT, E)

    # fused experts; long | surv paths stacked on sublanes
    h1 = jnp.maximum(mm(x2, ww_ref[WW_WE1:WW_WE1 + D_MODEL, :]) + v256_ref[W_B_E1], 0.0)
    h2 = jnp.concatenate([h1, h1], axis=0)                                      # (2*BT, 256)
    g_exp = jnp.dot(g_cat, v256_ref[W_EXPAND:W_EXPAND + NUM_EXPERTS, :],
                    preferred_element_type=f32)                                 # (2*BT, 256)
    g_b2 = jnp.dot(g_cat, v32_ref[V_BE2:V_BE2 + NUM_EXPERTS, :],
                   preferred_element_type=f32)                                  # (2*BT, dm)
    comb = mm(h2 * g_exp, wn_ref[WN_WE2:WN_WE2 + E_WIDTH, :]) + g_b2            # (2*BT, dm)

    # fused task heads -> single lane-dense (BT, 128) slab; sigmoid only on the surv lane
    slab = (mm(comb[:BT], ww_ref[WW_HEAD_L:WW_HEAD_L + D_MODEL, :OUT_PAD])
            + mm(comb[BT:], ww_ref[WW_HEAD_S:WW_HEAD_S + D_MODEL, :OUT_PAD])
            + v256_ref[W_B_HEAD, :OUT_PAD])
    sel = v256_ref[W_SIGSEL, :OUT_PAD]
    out_ref[...] = jnp.where(sel > 0.0, 1.0 / (1.0 + jnp.exp(-slab)), slab)


# ----------------------------- one-time parameter packing ---------------------
def pack_params(P):
    """Pack all model parameters into 4 kernel slabs.  Runs ONCE, outside the per-call path."""
    dec = P["dec_layers"][-1]            # only the last Decoder_Layer matters (see NOTE above)
    m = P["mmoe"]
    scale = 1.0 / math.sqrt(DH)

    def attn_pack(L):
        wq = L["wq"] * scale
        bq = L["bq"] * scale
        vo = jnp.concatenate([L["wv"][:, h * DH:(h + 1) * DH] @ L["wo"][h * DH:(h + 1) * DH, :]
                              for h in range(NHEAD)], axis=1)                   # (dm, H*dm)
        bvo = jnp.concatenate([L["bv"][h * DH:(h + 1) * DH] @ L["wo"][h * DH:(h + 1) * DH, :]
                               for h in range(NHEAD)], axis=0)                  # (H*dm,)
        return wq, bq, L["wk"], L["bk"], vo, bvo

    wq_d, bq_d, wk_d, bk_d, vo_d, bvo_d = attn_pack(dec)
    wq_m, bq_m, wk_m, bk_m, vo_m, bvo_m = attn_pack(m)

    wn = jnp.zeros((WN_ROWS, D_MODEL), jnp.float32)
    wn = wn.at[WN_EMB1:WN_EMB1 + D_LONG + D_BASE].set(P["emb_w1"])
    wn = wn.at[WN_EMB2:WN_EMB2 + D_MODEL].set(P["emb_w2"])
    wn = wn.at[WN_Q_DEC:WN_Q_DEC + D_MODEL].set(wq_d)
    wn = wn.at[WN_K_DEC:WN_K_DEC + D_MODEL].set(wk_d)
    wn = wn.at[WN_Q_MM:WN_Q_MM + D_MODEL].set(wq_m)
    wn = wn.at[WN_K_MM:WN_K_MM + D_MODEL].set(wk_m)
    wn = wn.at[WN_GATE:WN_GATE + D_MODEL, :2 * NUM_EXPERTS].set(
        jnp.concatenate([m["wgl"], m["wgs"]], axis=1))
    wn = wn.at[WN_FF2:WN_FF2 + D_FF_DEC].set(dec["wf2"])
    wn = wn.at[WN_WE2:WN_WE2 + E_WIDTH].set(m["we2"].reshape(E_WIDTH, D_MODEL))

    ww = jnp.zeros((WW_ROWS, WIDE), jnp.float32)
    ww = ww.at[WW_FF1:WW_FF1 + D_MODEL, :D_FF_DEC].set(dec["wf1"])
    ww = ww.at[WW_VO_DEC:WW_VO_DEC + D_MODEL, :NHEAD * D_MODEL].set(vo_d)
    ww = ww.at[WW_VO_MM:WW_VO_MM + D_MODEL, :NHEAD * D_MODEL].set(vo_m)
    ww = ww.at[WW_HEAD_L:WW_HEAD_L + D_MODEL, :D_LONG].set(m["wlh"])
    ww = ww.at[WW_HEAD_S:WW_HEAD_S + D_MODEL, D_LONG].set(m["wsh"][:, 0])
    ww = ww.at[WW_WE1:WW_WE1 + D_MODEL, :E_WIDTH].set(
        jnp.transpose(m["we1"], (1, 0, 2)).reshape(D_MODEL, E_WIDTH))

    v32 = jnp.zeros((V32_ROWS, D_MODEL), jnp.float32)
    v32 = v32.at[V_BE2:V_BE2 + NUM_EXPERTS].set(m["be2"])
    v32 = v32.at[V_B_EMB1].set(P["emb_b1"])
    v32 = v32.at[V_LN_EMB_G].set(P["emb_ln_g"])
    v32 = v32.at[V_LN_EMB_B].set(P["emb_ln_b"])
    v32 = v32.at[V_B_EMB2].set(P["emb_b2"])
    v32 = v32.at[V_BQ_DEC].set(bq_d)
    v32 = v32.at[V_BK_DEC].set(bk_d)
    v32 = v32.at[V_BO_DEC].set(dec["bo"])
    v32 = v32.at[V_LN1_G].set(dec["ln1_g"])
    v32 = v32.at[V_LN1_B].set(dec["ln1_b"])
    v32 = v32.at[V_B_FF2].set(dec["bf2"])
    v32 = v32.at[V_LN2_G].set(dec["ln2_g"])
    v32 = v32.at[V_LN2_B].set(dec["ln2_b"])
    v32 = v32.at[V_BQ_MM].set(bq_m)
    v32 = v32.at[V_BK_MM].set(bk_m)
    v32 = v32.at[V_BO_MM].set(m["bo"])
    v32 = v32.at[V_LNM_G].set(m["ln_g"])
    v32 = v32.at[V_LNM_B].set(m["ln_b"])

    v256 = jnp.zeros((V256_ROWS, WIDE), jnp.float32)
    v256 = v256.at[W_B_FF1, :D_FF_DEC].set(dec["bf1"])
    v256 = v256.at[W_B_E1, :E_WIDTH].set(m["be1"].reshape(E_WIDTH))
    v256 = v256.at[W_B_GATE, :2 * NUM_EXPERTS].set(jnp.concatenate([m["bgl"], m["bgs"]]))
    v256 = v256.at[W_B_HEAD, :D_LONG].set(m["blh"])
    v256 = v256.at[W_B_HEAD, D_LONG].set(m["bsh"][0])
    v256 = v256.at[W_BVO_DEC, :NHEAD * D_MODEL].set(bvo_d)
    v256 = v256.at[W_BVO_MM, :NHEAD * D_MODEL].set(bvo_m)
    v256 = v256.at[W_SIGSEL, D_LONG].set(1.0)
    expand = jnp.repeat(jnp.eye(NUM_EXPERTS, dtype=jnp.float32), D_FF_EXPERT, axis=1)
    v256 = v256.at[W_EXPAND:W_EXPAND + NUM_EXPERTS, :E_WIDTH].set(expand)

    return {"wn": wn.astype(jnp.bfloat16), "ww": ww.astype(jnp.bfloat16),
            "v32": v32, "v256": v256}


# ----------------------------- per-call wrapper (jitted) -----------------------
def _forward_impl(long, base, mask, obs_time, pred_time, packed):
    Bb, Tt, _ = long.shape
    xin = jnp.concatenate([long, base], axis=-1).reshape(Bb * Tt, D_LONG + D_BASE)

    act = jnp.zeros((ACT_ROWS, D_MODEL), jnp.float32)
    act = act.at[A_XIN:A_XIN + BT, :D_LONG + D_BASE].set(xin)
    act = act.at[A_PE_OBS:A_PE_OBS + BT].set(
        positional_encoding(Bb, Tt, D_MODEL, obs_time).reshape(BT, D_MODEL))
    act = act.at[A_PE_PRED:A_PE_PRED + BT].set(
        positional_encoding(Bb, Tt, D_MODEL, pred_time).reshape(BT, D_MODEL))
    act = act.at[A_MASK:A_MASK + BT, :S].set(((1.0 - mask) * (-1e9)).reshape(BT, S))

    # single invocation (no grid): the whole problem is (16, 32), ~0.3 MiB resident in VMEM.
    # TODO(synk): if B*T grows, add a leading "parallel" grid axis over batch (v7x 2nd core).
    out = pl.pallas_call(
        transformer2_kernel,
        out_shape=jax.ShapeDtypeStruct((BT, OUT_PAD), jnp.float32),
        in_specs=[pl.BlockSpec(memory_space=pltpu.MemorySpace.VMEM)] * 5,
        out_specs=pl.BlockSpec(memory_space=pltpu.MemorySpace.VMEM),
    )(act, packed["wn"], packed["ww"], packed["v32"], packed["v256"])

    long_out = out[:, :D_LONG].reshape(Bb, Tt, D_LONG)
    surv_out = out[:, D_LONG:D_LONG + 1].reshape(Bb, Tt, 1)
    return long_out, surv_out


transformer2_forward = jax.jit(_forward_impl)


# ----------------------------- pure-JAX reference ------------------------------
def _mha_ref(q, kv, mask, L):
    Bb, Tt, dm = q.shape
    Ss = kv.shape[1]
    dh = dm // NHEAD
    Q = q @ L["wq"] + L["bq"]
    K = kv @ L["wk"] + L["bk"]
    V = kv @ L["wv"] + L["bv"]
    Qh = Q.reshape(Bb, Tt, NHEAD, dh)
    Kh = K.reshape(Bb, Ss, NHEAD, dh)
    Vh = V.reshape(Bb, Ss, NHEAD, dh)
    s = jnp.einsum("bthd,bshd->bhts", Qh, Kh) / math.sqrt(dh)
    s = jnp.where(mask[:, None] > 0, s, -1e9)
    p = jax.nn.softmax(s, axis=-1)
    ctx = jnp.einsum("bhts,bshd->bthd", p, Vh).reshape(Bb, Tt, dm)
    return ctx @ L["wo"] + L["bo"]


def _ln_ref(x, g, b, eps=1e-5):
    mu = x.mean(-1, keepdims=True)
    var = ((x - mu) ** 2).mean(-1, keepdims=True)
    return (x - mu) / jnp.sqrt(var + eps) * g + b


def reference_forward(long, base, mask, obs_time, pred_time, P):
    Bb, Tt, _ = long.shape
    dm = P["emb_w2"].shape[0]
    x = jnp.concatenate([long, base], axis=-1)
    x = jnp.maximum(x @ P["emb_w1"] + P["emb_b1"], 0.0)
    x = _ln_ref(x, P["emb_ln_g"], P["emb_ln_b"])
    x = x @ P["emb_w2"] + P["emb_b2"]
    x = x + positional_encoding(Bb, Tt, dm, obs_time)

    decoding = None
    for L in P["dec_layers"]:        # literal PyTorch loop: x never updated, last output kept
        a = _mha_ref(x, x, mask, L)
        x1 = _ln_ref(x + a, L["ln1_g"], L["ln1_b"])
        h = jnp.maximum(x1 @ L["wf1"] + L["bf1"], 0.0)
        f = h @ L["wf2"] + L["bf2"]
        decoding = _ln_ref(x1 + f, L["ln2_g"], L["ln2_b"])

    m = P["mmoe"]
    q = decoding + positional_encoding(Bb, Tt, dm, pred_time)
    a = _mha_ref(q, decoding, mask, m)
    x2 = _ln_ref(q + a, m["ln_g"], m["ln_b"])
    eo = jnp.stack([jnp.maximum(x2 @ m["we1"][e] + m["be1"][e], 0.0) @ m["we2"][e] + m["be2"][e]
                    for e in range(NUM_EXPERTS)], axis=2)                   # (B,T,E,dm)
    gl = jax.nn.softmax(x2 @ m["wgl"] + m["bgl"], axis=-1)
    gs = jax.nn.softmax(x2 @ m["wgs"] + m["bgs"], axis=-1)
    comb_l = jnp.einsum("bted,bte->btd", eo, gl)
    comb_s = jnp.einsum("bted,bte->btd", eo, gs)
    long_out = comb_l @ m["wlh"] + m["blh"]
    surv_out = jax.nn.sigmoid(comb_s @ m["wsh"] + m["bsh"])
    return long_out, surv_out


# ----------------------------- param init -------------------------------------
def _linear(key, fan_in, fan_out):
    k1, k2 = jax.random.split(key)
    bound = 1.0 / math.sqrt(fan_in)
    w = jax.random.uniform(k1, (fan_in, fan_out), jnp.float32, -bound, bound)
    b = jax.random.uniform(k2, (fan_out,), jnp.float32, -bound, bound)
    return w, b


def init_params(key):
    keys = iter(jax.random.split(key, 64))
    ones = lambda: jnp.ones((D_MODEL,), jnp.float32)
    zeros = lambda: jnp.zeros((D_MODEL,), jnp.float32)

    P = {}
    P["emb_w1"], P["emb_b1"] = _linear(next(keys), D_LONG + D_BASE, D_MODEL)
    P["emb_ln_g"], P["emb_ln_b"] = ones(), zeros()
    P["emb_w2"], P["emb_b2"] = _linear(next(keys), D_MODEL, D_MODEL)

    layers = []
    for _ in range(NUM_DEC_LAYERS):
        L = {}
        L["wq"], L["bq"] = _linear(next(keys), D_MODEL, D_MODEL)
        L["wk"], L["bk"] = _linear(next(keys), D_MODEL, D_MODEL)
        L["wv"], L["bv"] = _linear(next(keys), D_MODEL, D_MODEL)
        L["wo"], L["bo"] = _linear(next(keys), D_MODEL, D_MODEL)
        L["ln1_g"], L["ln1_b"] = ones(), zeros()
        L["wf1"], L["bf1"] = _linear(next(keys), D_MODEL, D_FF_DEC)
        L["wf2"], L["bf2"] = _linear(next(keys), D_FF_DEC, D_MODEL)
        L["ln2_g"], L["ln2_b"] = ones(), zeros()
        layers.append(L)
    P["dec_layers"] = layers

    m = {}
    m["wq"], m["bq"] = _linear(next(keys), D_MODEL, D_MODEL)
    m["wk"], m["bk"] = _linear(next(keys), D_MODEL, D_MODEL)
    m["wv"], m["bv"] = _linear(next(keys), D_MODEL, D_MODEL)
    m["wo"], m["bo"] = _linear(next(keys), D_MODEL, D_MODEL)
    m["ln_g"], m["ln_b"] = ones(), zeros()
    w1s, b1s, w2s, b2s = [], [], [], []
    for _ in range(NUM_EXPERTS):
        w1, b1 = _linear(next(keys), D_MODEL, D_FF_EXPERT)
        w2, b2 = _linear(next(keys), D_FF_EXPERT, D_MODEL)
        w1s.append(w1); b1s.append(b1); w2s.append(w2); b2s.append(b2)
    m["we1"], m["be1"] = jnp.stack(w1s), jnp.stack(b1s)
    m["we2"], m["be2"] = jnp.stack(w2s), jnp.stack(b2s)
    m["wgl"], m["bgl"] = _linear(next(keys), D_MODEL, NUM_EXPERTS)
    m["wgs"], m["bgs"] = _linear(next(keys), D_MODEL, NUM_EXPERTS)
    m["wlh"], m["blh"] = _linear(next(keys), D_MODEL, D_LONG)
    m["wsh"], m["bsh"] = _linear(next(keys), D_MODEL, 1)
    P["mmoe"] = m
    return P


# ----------------------------- main --------------------------------------------
if __name__ == "__main__":
    key = jax.random.PRNGKey(0)
    k1, k2, k3, k4, k5 = jax.random.split(key, 5)

    long = jax.random.normal(k1, (B, T, D_LONG), jnp.float32)
    base = jax.random.normal(k2, (B, T, D_BASE), jnp.float32)
    obs_time = jax.random.uniform(k3, (B, T), jnp.float32, 0.0, 10.0)
    pred_time = obs_time + jax.random.uniform(k4, (B, T), jnp.float32, 0.0, 5.0)
    mask = jnp.broadcast_to(jnp.tril(jnp.ones((T, T), jnp.float32)), (B, T, T))  # 1.0 = attend
    params = init_params(k5)

    packed = pack_params(params)                 # one-time parameter packing (not per call)

    long_out, surv_out = transformer2_forward(long, base, mask, obs_time, pred_time, packed)
    jax.block_until_ready((long_out, surv_out))

    ref_long, ref_surv = reference_forward(long, base, mask, obs_time, pred_time, params)
    assert long_out.shape == (B, T, D_LONG) and surv_out.shape == (B, T, 1)
    # bf16 matmul weights + pl.reciprocal(approx=True) attention softmax -> small numeric drift.
    assert float(jnp.max(jnp.abs(long_out - ref_long))) < 2e-2
    assert float(jnp.max(jnp.abs(surv_out - ref_surv))) < 2e-2

    print("KERNEL_OK")
</pallas_src>

<mosaic_0001>
module attributes {stable_mosaic.version = 11 : i64} {
  func.func @transformer2_kernel(%arg0: memref<64x32xf32, #tpu.memory_space<vmem>>, %arg1: memref<544x32xbf16, #tpu.memory_space<vmem>>, %arg2: memref<192x256xbf16, #tpu.memory_space<vmem>>, %arg3: memref<24x32xf32, #tpu.memory_space<vmem>>, %arg4: memref<16x256xf32, #tpu.memory_space<vmem>>, %arg5: memref<16x128xf32, #tpu.memory_space<vmem>>) attributes {dimension_semantics = [], scalar_prefetch = 0 : i64, scratch_operands = 0 : i64, tpu.core_type = #tpu.core_type<tc>} {
    %c48 = arith.constant 48 : index
    %c0 = arith.constant 0 : index
    %0 = vector.load %arg0[%c48, %c0] : memref<64x32xf32, #tpu.memory_space<vmem>>, vector<16x8xf32>
    %1 = vector.shape_cast %0 : vector<16x8xf32> to vector<2x8x8xf32>
    %c0_0 = arith.constant 0 : index
    %c0_1 = arith.constant 0 : index
    %2 = vector.load %arg0[%c0_0, %c0_1] : memref<64x32xf32, #tpu.memory_space<vmem>>, vector<16x32xf32>
    %c0_2 = arith.constant 0 : index
    %c0_3 = arith.constant 0 : index
    %3 = vector.load %arg1[%c0_2, %c0_3] : memref<544x32xbf16, #tpu.memory_space<vmem>>, vector<32x32xbf16>
    %4 = arith.truncf %2 : vector<16x32xf32> to vector<16x32xbf16>
    %cst = arith.constant dense<0.000000e+00> : vector<16x32xf32>
    %5 = tpu.matmul %4, %3, %cst {dimension_numbers = #tpu.dot_dimension_numbers<[1], [0], [0], [1], [0, 0, 1, 1], [], []>} : vector<16x32xbf16>, vector<32x32xbf16>, vector<16x32xf32> -> vector<16x32xf32>
    %c4 = arith.constant 4 : index
    %c0_4 = arith.constant 0 : index
    %6 = vector.load %arg3[%c4, %c0_4] : memref<24x32xf32, #tpu.memory_space<vmem>>, vector<1x32xf32>
    %7 = vector.shape_cast %6 : vector<1x32xf32> to vector<32xf32>
    %8 = vector.shape_cast %7 : vector<32xf32> to vector<1x32xf32>
    %9 = vector.broadcast %8 : vector<1x32xf32> to vector<16x32xf32>
    %10 = arith.addf %5, %9 : vector<16x32xf32>
    %cst_5 = arith.constant 0.000000e+00 : f32
    %11 = vector.broadcast %cst_5 : f32 to vector<16x32xf32>
    %12 = arith.maximumf %10, %11 : vector<16x32xf32>
    %cst_6 = arith.constant dense<0.000000e+00> : vector<16xf32>
    %13 = vector.multi_reduction <add>, %12, %cst_6 [1] : vector<16x32xf32> to vector<16xf32>
    %14 = vector.shape_cast %13 : vector<16xf32> to vector<16x1xf32>
    %cst_7 = arith.constant 3.200000e+01 : f32
    %15 = vector.broadcast %cst_7 : f32 to vector<16x1xf32>
    %16 = arith.divf %14, %15 : vector<16x1xf32>
    %17 = arith.mulf %12, %12 : vector<16x32xf32>
    %cst_8 = arith.constant dense<0.000000e+00> : vector<16xf32>
    %18 = vector.multi_reduction <add>, %17, %cst_8 [1] : vector<16x32xf32> to vector<16xf32>
    %19 = vector.shape_cast %18 : vector<16xf32> to vector<16x1xf32>
    %cst_9 = arith.constant 3.200000e+01 : f32
    %20 = vector.broadcast %cst_9 : f32 to vector<16x1xf32>
    %21 = arith.divf %19, %20 : vector<16x1xf32>
    %22 = arith.mulf %16, %16 : vector<16x1xf32>
    %23 = arith.subf %21, %22 : vector<16x1xf32>
    %24 = vector.broadcast %16 : vector<16x1xf32> to vector<16x32xf32>
    %25 = arith.subf %12, %24 : vector<16x32xf32>
    %cst_10 = arith.constant 9.99999974E-6 : f32
    %26 = vector.broadcast %cst_10 : f32 to vector<16x1xf32>
    %27 = arith.addf %23, %26 : vector<16x1xf32>
    %28 = math.rsqrt %27 : vector<16x1xf32>
    %29 = vector.broadcast %28 : vector<16x1xf32> to vector<16x32xf32>
    %30 = arith.mulf %25, %29 : vector<16x32xf32>
    %c5 = arith.constant 5 : index
    %c0_11 = arith.constant 0 : index
    %31 = vector.load %arg3[%c5, %c0_11] : memref<24x32xf32, #tpu.memory_space<vmem>>, vector<1x32xf32>
    %32 = vector.shape_cast %31 : vector<1x32xf32> to vector<32xf32>
    %33 = vector.shape_cast %32 : vector<32xf32> to vector<1x32xf32>
    %34 = vector.broadcast %33 : vector<1x32xf32> to vector<16x32xf32>
    %35 = arith.mulf %30, %34 : vector<16x32xf32>
    %c6 = arith.constant 6 : index
    %c0_12 = arith.constant 0 : index
    %36 = vector.load %arg3[%c6, %c0_12] : memref<24x32xf32, #tpu.memory_space<vmem>>, vector<1x32xf32>
    %37 = vector.shape_cast %36 : vector<1x32xf32> to vector<32xf32>
    %38 = vector.shape_cast %37 : vector<32xf32> to vector<1x32xf32>
    %39 = vector.broadcast %38 : vector<1x32xf32> to vector<16x32xf32>
    %40 = arith.addf %35, %39 : vector<16x32xf32>
    %c32 = arith.constant 32 : index
    %c0_13 = arith.constant 0 : index
    %41 = vector.load %arg1[%c32, %c0_13] : memref<544x32xbf16, #tpu.memory_space<vmem>>, vector<32x32xbf16>
    %42 = arith.truncf %40 : vector<16x32xf32> to vector<16x32xbf16>
    %cst_14 = arith.constant dense<0.000000e+00> : vector<16x32xf32>
    %43 = tpu.matmul %42, %41, %cst_14 {dimension_numbers = #tpu.dot_dimension_numbers<[1], [0], [0], [1], [0, 0, 1, 1], [], []>} : vector<16x32xbf16>, vector<32x32xbf16>, vector<16x32xf32> -> vector<16x32xf32>
    %c7 = arith.constant 7 : index
    %c0_15 = arith.constant 0 : index
    %44 = vector.load %arg3[%c7, %c0_15] : memref<24x32xf32, #tpu.memory_space<vmem>>, vector<1x32xf32>
    %45 = vector.shape_cast %44 : vector<1x32xf32> to vector<32xf32>
    %46 = vector.shape_cast %45 : vector<32xf32> to vector<1x32xf32>
    %47 = vector.broadcast %46 : vector<1x32xf32> to vector<16x32xf32>
    %48 = arith.addf %43, %47 : vector<16x32xf32>
    %c16 = arith.constant 16 : index
    %c0_16 = arith.constant 0 : index
    %49 = vector.load %arg0[%c16, %c0_16] : memref<64x32xf32, #tpu.memory_space<vmem>>, vector<16x32xf32>
    %50 = arith.addf %48, %49 : vector<16x32xf32>
    %c64 = arith.constant 64 : index
    %c0_17 = arith.constant 0 : index
    %51 = vector.load %arg1[%c64, %c0_17] : memref<544x32xbf16, #tpu.memory_space<vmem>>, vector<32x32xbf16>
    %52 = arith.truncf %50 : vector<16x32xf32> to vector<16x32xbf16>
    %cst_18 = arith.constant dense<0.000000e+00> : vector<16x32xf32>
    %53 = tpu.matmul %52, %51, %cst_18 {dimension_numbers = #tpu.dot_dimension_numbers<[1], [0], [0], [1], [0, 0, 1, 1], [], []>} : vector<16x32xbf16>, vector<32x32xbf16>, vector<16x32xf32> -> vector<16x32xf32>
    %c8 = arith.constant 8 : index
    %c0_19 = arith.constant 0 : index
    %54 = vector.load %arg3[%c8, %c0_19] : memref<24x32xf32, #tpu.memory_space<vmem>>, vector<1x32xf32>
    %55 = vector.shape_cast %54 : vector<1x32xf32> to vector<32xf32>
    %56 = vector.shape_cast %55 : vector<32xf32> to vector<1x32xf32>
    %57 = vector.broadcast %56 : vector<1x32xf32> to vector<16x32xf32>
    %58 = arith.addf %53, %57 : vector<16x32xf32>
    %c96 = arith.constant 96 : index
    %c0_20 = arith.constant 0 : index
    %59 = vector.load %arg1[%c96, %c0_20] : memref<544x32xbf16, #tpu.memory_space<vmem>>, vector<32x32xbf16>
    %60 = arith.truncf %50 : vector<16x32xf32> to vector<16x32xbf16>
    %cst_21 = arith.constant dense<0.000000e+00> : vector<16x32xf32>
    %61 = tpu.matmul %60, %59, %cst_21 {dimension_numbers = #tpu.dot_dimension_numbers<[1], [0], [0], [1], [0, 0, 1, 1], [], []>} : vector<16x32xbf16>, vector<32x32xbf16>, vector<16x32xf32> -> vector<16x32xf32>
    %c9 = arith.constant 9 : index
    %c0_22 = arith.constant 0 : index
    %62 = vector.load %arg3[%c9, %c0_22] : memref<24x32xf32, #tpu.memory_space<vmem>>, vector<1x32xf32>
    %63 = vector.shape_cast %62 : vector<1x32xf32> to vector<32xf32>
    %64 = vector.shape_cast %63 : vector<32xf32> to vector<1x32xf32>
    %65 = vector.broadcast %64 : vector<1x32xf32> to vector<16x32xf32>
    %66 = arith.addf %61, %65 : vector<16x32xf32>
    %c32_23 = arith.constant 32 : index
    %c0_24 = arith.constant 0 : index
    %67 = vector.load %arg2[%c32_23, %c0_24] : memref<192x256xbf16, #tpu.memory_space<vmem>>, vector<32x128xbf16>
    %68 = arith.truncf %50 : vector<16x32xf32> to vector<16x32xbf16>
    %cst_25 = arith.constant dense<0.000000e+00> : vector<16x128xf32>
    %69 = tpu.matmul %68, %67, %cst_25 {dimension_numbers = #tpu.dot_dimension_numbers<[1], [0], [0], [1], [0, 0, 1, 1], [], []>} : vector<16x32xbf16>, vector<32x128xbf16>, vector<16x128xf32> -> vector<16x128xf32>
    %c4_26 = arith.constant 4 : index
    %c0_27 = arith.constant 0 : index
    %70 = vector.load %arg4[%c4_26, %c0_27] : memref<16x256xf32, #tpu.memory_space<vmem>>, vector<1x128xf32>
    %71 = vector.shape_cast %70 : vector<1x128xf32> to vector<128xf32>
    %72 = vector.shape_cast %71 : vector<128xf32> to vector<1x128xf32>
    %73 = vector.broadcast %72 : vector<1x128xf32> to vector<16x128xf32>
    %74 = arith.addf %69, %73 : vector<16x128xf32>
    %cst_28 = arith.constant 0.000000e+00 : f32
    %75 = vector.broadcast %cst_28 : f32 to vector<2x8x32xf32>
    %76 = vector.extract_strided_slice %58 {offsets = [0, 0], sizes = [16, 8], strides = [1, 1]} : vector<16x32xf32> to vector<16x8xf32>
    %77 = vector.shape_cast %76 : vector<16x8xf32> to vector<2x8x8xf32>
    %78 = vector.extract_strided_slice %66 {offsets = [0, 0], sizes = [16, 8], strides = [1, 1]} : vector<16x32xf32> to vector<16x8xf32>
    %79 = vector.shape_cast %78 : vector<16x8xf32> to vector<2x8x8xf32>
    %80 = vector.extract_strided_slice %74 {offsets = [0, 0], sizes = [16, 32], strides = [1, 1]} : vector<16x128xf32> to vector<16x32xf32>
    %81 = vector.shape_cast %80 : vector<16x32xf32> to vector<2x8x32xf32>
    "tpu.trace_start"() <{level = 10 : i32, message = "btd,bsd->bts"}> : () -> ()
    %cst_29 = arith.constant dense<0.000000e+00> : vector<2x8x8xf32>
    %82 = tpu.matmul %77, %79, %cst_29 {dimension_numbers = #tpu.dot_dimension_numbers<[2], [2], [1], [1], [0, 0, 0, 1, 1, 1], [0], [0]>} : vector<2x8x8xf32>, vector<2x8x8xf32>, vector<2x8x8xf32> -> vector<2x8x8xf32>
    "tpu.trace_stop"() : () -> ()
    %83 = arith.addf %82, %1 : vector<2x8x8xf32>
    %cst_30 = arith.constant dense<0xFF800000> : vector<2x8xf32>
    %84 = vector.multi_reduction <maximumf>, %83, %cst_30 [2] : vector<2x8x8xf32> to vector<2x8xf32>
    %85 = vector.shape_cast %84 : vector<2x8xf32> to vector<2x8x1xf32>
    %86 = vector.broadcast %85 : vector<2x8x1xf32> to vector<2x8x8xf32>
    %87 = arith.subf %83, %86 : vector<2x8x8xf32>
    %88 = math.exp %87 : vector<2x8x8xf32>
    %cst_31 = arith.constant dense<0.000000e+00> : vector<2x8xf32>
    %89 = vector.multi_reduction <add>, %88, %cst_31 [2] : vector<2x8x8xf32> to vector<2x8xf32>
    %90 = vector.shape_cast %89 : vector<2x8xf32> to vector<2x8x1xf32>
    %91 = tpu.reciprocal %90 {approx = true} : vector<2x8x1xf32> -> vector<2x8x1xf32>
    %92 = vector.broadcast %91 : vector<2x8x1xf32> to vector<2x8x8xf32>
    %93 = arith.mulf %88, %92 : vector<2x8x8xf32>
    "tpu.trace_start"() <{level = 10 : i32, message = "bts,bsd->btd"}> : () -> ()
    %cst_32 = arith.constant dense<0.000000e+00> : vector<2x8x32xf32>
    %94 = tpu.matmul %93, %81, %cst_32 {dimension_numbers = #tpu.dot_dimension_numbers<[2], [1], [1], [2], [0, 0, 0, 1, 1, 2], [0], [0]>} : vector<2x8x8xf32>, vector<2x8x32xf32>, vector<2x8x32xf32> -> vector<2x8x32xf32>
    "tpu.trace_stop"() : () -> ()
    %95 = arith.addf %75, %94 : vector<2x8x32xf32>
    %96 = vector.extract_strided_slice %58 {offsets = [0, 8], sizes = [16, 8], strides = [1, 1]} : vector<16x32xf32> to vector<16x8xf32>
    %97 = vector.shape_cast %96 : vector<16x8xf32> to vector<2x8x8xf32>
    %98 = vector.extract_strided_slice %66 {offsets = [0, 8], sizes = [16, 8], strides = [1, 1]} : vector<16x32xf32> to vector<16x8xf32>
    %99 = vector.shape_cast %98 : vector<16x8xf32> to vector<2x8x8xf32>
    %100 = vector.extract_strided_slice %74 {offsets = [0, 32], sizes = [16, 32], strides = [1, 1]} : vector<16x128xf32> to vector<16x32xf32>
    %101 = vector.shape_cast %100 : vector<16x32xf32> to vector<2x8x32xf32>
    "tpu.trace_start"() <{level = 10 : i32, message = "btd,bsd->bts"}> : () -> ()
    %cst_33 = arith.constant dense<0.000000e+00> : vector<2x8x8xf32>
    %102 = tpu.matmul %97, %99, %cst_33 {dimension_numbers = #tpu.dot_dimension_numbers<[2], [2], [1], [1], [0, 0, 0, 1, 1, 1], [0], [0]>} : vector<2x8x8xf32>, vector<2x8x8xf32>, vector<2x8x8xf32> -> vector<2x8x8xf32>
    "tpu.trace_stop"() : () -> ()
    %103 = arith.addf %102, %1 : vector<2x8x8xf32>
    %cst_34 = arith.constant dense<0xFF800000> : vector<2x8xf32>
    %104 = vector.multi_reduction <maximumf>, %103, %cst_34 [2] : vector<2x8x8xf32> to vector<2x8xf32>
    %105 = vector.shape_cast %104 : vector<2x8xf32> to vector<2x8x1xf32>
    %106 = vector.broadcast %105 : vector<2x8x1xf32> to vector<2x8x8xf32>
    %107 = arith.subf %103, %106 : vector<2x8x8xf32>
    %108 = math.exp %107 : vector<2x8x8xf32>
    %cst_35 = arith.constant dense<0.000000e+00> : vector<2x8xf32>
    %109 = vector.multi_reduction <add>, %108, %cst_35 [2] : vector<2x8x8xf32> to vector<2x8xf32>
    %110 = vector.shape_cast %109 : vector<2x8xf32> to vector<2x8x1xf32>
    %111 = tpu.reciprocal %110 {approx = true} : vector<2x8x1xf32> -> vector<2x8x1xf32>
    %112 = vector.broadcast %111 : vector<2x8x1xf32> to vector<2x8x8xf32>
    %113 = arith.mulf %108, %112 : vector<2x8x8xf32>
    "tpu.trace_start"() <{level = 10 : i32, message = "bts,bsd->btd"}> : () -> ()
    %cst_36 = arith.constant dense<0.000000e+00> : vector<2x8x32xf32>
    %114 = tpu.matmul %113, %101, %cst_36 {dimension_numbers = #tpu.dot_dimension_numbers<[2], [1], [1], [2], [0, 0, 0, 1, 1, 2], [0], [0]>} : vector<2x8x8xf32>, vector<2x8x32xf32>, vector<2x8x32xf32> -> vector<2x8x32xf32>
    "tpu.trace_stop"() : () -> ()
    %115 = arith.addf %95, %114 : vector<2x8x32xf32>
    %116 = vector.extract_strided_slice %58 {offsets = [0, 16], sizes = [16, 8], strides = [1, 1]} : vector<16x32xf32> to vector<16x8xf32>
    %117 = vector.shape_cast %116 : vector<16x8xf32> to vector<2x8x8xf32>
    %118 = vector.extract_strided_slice %66 {offsets = [0, 16], sizes = [16, 8], strides = [1, 1]} : vector<16x32xf32> to vector<16x8xf32>
    %119 = vector.shape_cast %118 : vector<16x8xf32> to vector<2x8x8xf32>
    %120 = vector.extract_strided_slice %74 {offsets = [0, 64], sizes = [16, 32], strides = [1, 1]} : vector<16x128xf32> to vector<16x32xf32>
    %121 = vector.shape_cast %120 : vector<16x32xf32> to vector<2x8x32xf32>
    "tpu.trace_start"() <{level = 10 : i32, message = "btd,bsd->bts"}> : () -> ()
    %cst_37 = arith.constant dense<0.000000e+00> : vector<2x8x8xf32>
    %122 = tpu.matmul %117, %119, %cst_37 {dimension_numbers = #tpu.dot_dimension_numbers<[2], [2], [1], [1], [0, 0, 0, 1, 1, 1], [0], [0]>} : vector<2x8x8xf32>, vector<2x8x8xf32>, vector<2x8x8xf32> -> vector<2x8x8xf32>
    "tpu.trace_stop"() : () -> ()
    %123 = arith.addf %122, %1 : vector<2x8x8xf32>
    %cst_38 = arith.constant dense<0xFF800000> : vector<2x8xf32>
    %124 = vector.multi_reduction <maximumf>, %123, %cst_38 [2] : vector<2x8x8xf32> to vector<2x8xf32>
    %125 = vector.shape_cast %124 : vector<2x8xf32> to vector<2x8x1xf32>
    %126 = vector.broadcast %125 : vector<2x8x1xf32> to vector<2x8x8xf32>
    %127 = arith.subf %123, %126 : vector<2x8x8xf32>
    %128 = math.exp %127 : vector<2x8x8xf32>
    %cst_39 = arith.constant dense<0.000000e+00> : vector<2x8xf32>
    %129 = vector.multi_reduction <add>, %128, %cst_39 [2] : vector<2x8x8xf32> to vector<2x8xf32>
    %130 = vector.shape_cast %129 : vector<2x8xf32> to vector<2x8x1xf32>
    %131 = tpu.reciprocal %130 {approx = true} : vector<2x8x1xf32> -> vector<2x8x1xf32>
    %132 = vector.broadcast %131 : vector<2x8x1xf32> to vector<2x8x8xf32>
    %133 = arith.mulf %128, %132 : vector<2x8x8xf32>
    "tpu.trace_start"() <{level = 10 : i32, message = "bts,bsd->btd"}> : () -> ()
    %cst_40 = arith.constant dense<0.000000e+00> : vector<2x8x32xf32>
    %134 = tpu.matmul %133, %121, %cst_40 {dimension_numbers = #tpu.dot_dimension_numbers<[2], [1], [1], [2], [0, 0, 0, 1, 1, 2], [0], [0]>} : vector<2x8x8xf32>, vector<2x8x32xf32>, vector<2x8x32xf32> -> vector<2x8x32xf32>
    "tpu.trace_stop"() : () -> ()
    %135 = arith.addf %115, %134 : vector<2x8x32xf32>
    %136 = vector.extract_strided_slice %58 {offsets = [0, 24], sizes = [16, 8], strides = [1, 1]} : vector<16x32xf32> to vector<16x8xf32>
    %137 = vector.shape_cast %136 : vector<16x8xf32> to vector<2x8x8xf32>
    %138 = vector.extract_strided_slice %66 {offsets = [0, 24], sizes = [16, 8], strides = [1, 1]} : vector<16x32xf32> to vector<16x8xf32>
    %139 = vector.shape_cast %138 : vector<16x8xf32> to vector<2x8x8xf32>
    %140 = vector.extract_strided_slice %74 {offsets = [0, 96], sizes = [16, 32], strides = [1, 1]} : vector<16x128xf32> to vector<16x32xf32>
    %141 = vector.shape_cast %140 : vector<16x32xf32> to vector<2x8x32xf32>
    "tpu.trace_start"() <{level = 10 : i32, message = "btd,bsd->bts"}> : () -> ()
    %cst_41 = arith.constant dense<0.000000e+00> : vector<2x8x8xf32>
    %142 = tpu.matmul %137, %139, %cst_41 {dimension_numbers = #tpu.dot_dimension_numbers<[2], [2], [1], [1], [0, 0, 0, 1, 1, 1], [0], [0]>} : vector<2x8x8xf32>, vector<2x8x8xf32>, vector<2x8x8xf32> -> vector<2x8x8xf32>
    "tpu.trace_stop"() : () -> ()
    %143 = arith.addf %142, %1 : vector<2x8x8xf32>
    %cst_42 = arith.constant dense<0xFF800000> : vector<2x8xf32>
    %144 = vector.multi_reduction <maximumf>, %143, %cst_42 [2] : vector<2x8x8xf32> to vector<2x8xf32>
    %145 = vector.shape_cast %144 : vector<2x8xf32> to vector<2x8x1xf32>
    %146 = vector.broadcast %145 : vector<2x8x1xf32> to vector<2x8x8xf32>
    %147 = arith.subf %143, %146 : vector<2x8x8xf32>
    %148 = math.exp %147 : vector<2x8x8xf32>
    %cst_43 = arith.constant dense<0.000000e+00> : vector<2x8xf32>
    %149 = vector.multi_reduction <add>, %148, %cst_43 [2] : vector<2x8x8xf32> to vector<2x8xf32>
    %150 = vector.shape_cast %149 : vector<2x8xf32> to vector<2x8x1xf32>
    %151 = tpu.reciprocal %150 {approx = true} : vector<2x8x1xf32> -> vector<2x8x1xf32>
    %152 = vector.broadcast %151 : vector<2x8x1xf32> to vector<2x8x8xf32>
    %153 = arith.mulf %148, %152 : vector<2x8x8xf32>
    "tpu.trace_start"() <{level = 10 : i32, message = "bts,bsd->btd"}> : () -> ()
    %cst_44 = arith.constant dense<0.000000e+00> : vector<2x8x32xf32>
    %154 = tpu.matmul %153, %141, %cst_44 {dimension_numbers = #tpu.dot_dimension_numbers<[2], [1], [1], [2], [0, 0, 0, 1, 1, 2], [0], [0]>} : vector<2x8x8xf32>, vector<2x8x32xf32>, vector<2x8x32xf32> -> vector<2x8x32xf32>
    "tpu.trace_stop"() : () -> ()
    %155 = arith.addf %135, %154 : vector<2x8x32xf32>
    %156 = vector.shape_cast %155 : vector<2x8x32xf32> to vector<16x32xf32>
    %c10 = arith.constant 10 : index
    %c0_45 = arith.constant 0 : index
    %157 = vector.load %arg3[%c10, %c0_45] : memref<24x32xf32, #tpu.memory_space<vmem>>, vector<1x32xf32>
    %158 = vector.shape_cast %157 : vector<1x32xf32> to vector<32xf32>
    %159 = vector.shape_cast %158 : vector<32xf32> to vector<1x32xf32>
    %160 = vector.broadcast %159 : vector<1x32xf32> to vector<16x32xf32>
    %161 = arith.addf %156, %160 : vector<16x32xf32>
    %162 = arith.addf %50, %161 : vector<16x32xf32>
    %cst_46 = arith.constant dense<0.000000e+00> : vector<16xf32>
    %163 = vector.multi_reduction <add>, %162, %cst_46 [1] : vector<16x32xf32> to vector<16xf32>
    %164 = vector.shape_cast %163 : vector<16xf32> to vector<16x1xf32>
    %cst_47 = arith.constant 3.200000e+01 : f32
    %165 = vector.broadcast %cst_47 : f32 to vector<16x1xf32>
    %166 = arith.divf %164, %165 : vector<16x1xf32>
    %167 = arith.mulf %162, %162 : vector<16x32xf32>
    %cst_48 = arith.constant dense<0.000000e+00> : vector<16xf32>
    %168 = vector.multi_reduction <add>, %167, %cst_48 [1] : vector<16x32xf32> to vector<16xf32>
    %169 = vector.shape_cast %168 : vector<16xf32> to vector<16x1xf32>
    %cst_49 = arith.constant 3.200000e+01 : f32
    %170 = vector.broadcast %cst_49 : f32 to vector<16x1xf32>
    %171 = arith.divf %169, %170 : vector<16x1xf32>
    %172 = arith.mulf %166, %166 : vector<16x1xf32>
    %173 = arith.subf %171, %172 : vector<16x1xf32>
    %174 = vector.broadcast %166 : vector<16x1xf32> to vector<16x32xf32>
    %175 = arith.subf %162, %174 : vector<16x32xf32>
    %cst_50 = arith.constant 9.99999974E-6 : f32
    %176 = vector.broadcast %cst_50 : f32 to vector<16x1xf32>
    %177 = arith.addf %173, %176 : vector<16x1xf32>
    %178 = math.rsqrt %177 : vector<16x1xf32>
    %179 = vector.broadcast %178 : vector<16x1xf32> to vector<16x32xf32>
    %180 = arith.mulf %175, %179 : vector<16x32xf32>
    %c11 = arith.constant 11 : index
    %c0_51 = arith.constant 0 : index
    %181 = vector.load %arg3[%c11, %c0_51] : memref<24x32xf32, #tpu.memory_space<vmem>>, vector<1x32xf32>
    %182 = vector.shape_cast %181 : vector<1x32xf32> to vector<32xf32>
    %183 = vector.shape_cast %182 : vector<32xf32> to vector<1x32xf32>
    %184 = vector.broadcast %183 : vector<1x32xf32> to vector<16x32xf32>
    %185 = arith.mulf %180, %184 : vector<16x32xf32>
    %c12 = arith.constant 12 : index
    %c0_52 = arith.constant 0 : index
    %186 = vector.load %arg3[%c12, %c0_52] : memref<24x32xf32, #tpu.memory_space<vmem>>, vector<1x32xf32>
    %187 = vector.shape_cast %186 : vector<1x32xf32> to vector<32xf32>
    %188 = vector.shape_cast %187 : vector<32xf32> to vector<1x32xf32>
    %189 = vector.broadcast %188 : vector<1x32xf32> to vector<16x32xf32>
    %190 = arith.addf %185, %189 : vector<16x32xf32>
    %c0_53 = arith.constant 0 : index
    %c0_54 = arith.constant 0 : index
    %191 = vector.load %arg2[%c0_53, %c0_54] : memref<192x256xbf16, #tpu.memory_space<vmem>>, vector<32x64xbf16>
    %192 = arith.truncf %190 : vector<16x32xf32> to vector<16x32xbf16>
    %cst_55 = arith.constant dense<0.000000e+00> : vector<16x64xf32>
    %193 = tpu.matmul %192, %191, %cst_55 {dimension_numbers = #tpu.dot_dimension_numbers<[1], [0], [0], [1], [0, 0, 1, 1], [], []>} : vector<16x32xbf16>, vector<32x64xbf16>, vector<16x64xf32> -> vector<16x64xf32>
    %c0_56 = arith.constant 0 : index
    %c0_57 = arith.constant 0 : index
    %194 = vector.load %arg4[%c0_56, %c0_57] : memref<16x256xf32, #tpu.memory_space<vmem>>, vector<1x64xf32>
    %195 = vector.shape_cast %194 : vector<1x64xf32> to vector<64xf32>
    %196 = vector.shape_cast %195 : vector<64xf32> to vector<1x64xf32>
    %197 = vector.broadcast %196 : vector<1x64xf32> to vector<16x64xf32>
    %198 = arith.addf %193, %197 : vector<16x64xf32>
    %cst_58 = arith.constant 0.000000e+00 : f32
    %199 = vector.broadcast %cst_58 : f32 to vector<16x64xf32>
    %200 = arith.maximumf %198, %199 : vector<16x64xf32>
    %c224 = arith.constant 224 : index
    %c0_59 = arith.constant 0 : index
    %201 = vector.load %arg1[%c224, %c0_59] : memref<544x32xbf16, #tpu.memory_space<vmem>>, vector<64x32xbf16>
    %202 = arith.truncf %200 : vector<16x64xf32> to vector<16x64xbf16>
    %cst_60 = arith.constant dense<0.000000e+00> : vector<16x32xf32>
    %203 = tpu.matmul %202, %201, %cst_60 {dimension_numbers = #tpu.dot_dimension_numbers<[1], [0], [0], [1], [0, 0, 1, 1], [], []>} : vector<16x64xbf16>, vector<64x32xbf16>, vector<16x32xf32> -> vector<16x32xf32>
    %c13 = arith.constant 13 : index
    %c0_61 = arith.constant 0 : index
    %204 = vector.load %arg3[%c13, %c0_61] : memref<24x32xf32, #tpu.memory_space<vmem>>, vector<1x32xf32>
    %205 = vector.shape_cast %204 : vector<1x32xf32> to vector<32xf32>
    %206 = vector.shape_cast %205 : vector<32xf32> to vector<1x32xf32>
    %207 = vector.broadcast %206 : vector<1x32xf32> to vector<16x32xf32>
    %208 = arith.addf %203, %207 : vector<16x32xf32>
    %209 = arith.addf %190, %208 : vector<16x32xf32>
    %cst_62 = arith.constant dense<0.000000e+00> : vector<16xf32>
    %210 = vector.multi_reduction <add>, %209, %cst_62 [1] : vector<16x32xf32> to vector<16xf32>
    %211 = vector.shape_cast %210 : vector<16xf32> to vector<16x1xf32>
    %cst_63 = arith.constant 3.200000e+01 : f32
    %212 = vector.broadcast %cst_63 : f32 to vector<16x1xf32>
    %213 = arith.divf %211, %212 : vector<16x1xf32>
    %214 = arith.mulf %209, %209 : vector<16x32xf32>
    %cst_64 = arith.constant dense<0.000000e+00> : vector<16xf32>
    %215 = vector.multi_reduction <add>, %214, %cst_64 [1] : vector<16x32xf32> to vector<16xf32>
    %216 = vector.shape_cast %215 : vector<16xf32> to vector<16x1xf32>
    %cst_65 = arith.constant 3.200000e+01 : f32
    %217 = vector.broadcast %cst_65 : f32 to vector<16x1xf32>
    %218 = arith.divf %216, %217 : vector<16x1xf32>
    %219 = arith.mulf %213, %213 : vector<16x1xf32>
    %220 = arith.subf %218, %219 : vector<16x1xf32>
    %221 = vector.broadcast %213 : vector<16x1xf32> to vector<16x32xf32>
    %222 = arith.subf %209, %221 : vector<16x32xf32>
    %cst_66 = arith.constant 9.99999974E-6 : f32
    %223 = vector.broadcast %cst_66 : f32 to vector<16x1xf32>
    %224 = arith.addf %220, %223 : vector<16x1xf32>
    %225 = math.rsqrt %224 : vector<16x1xf32>
    %226 = vector.broadcast %225 : vector<16x1xf32> to vector<16x32xf32>
    %227 = arith.mulf %222, %226 : vector<16x32xf32>
    %c14 = arith.constant 14 : index
    %c0_67 = arith.constant 0 : index
    %228 = vector.load %arg3[%c14, %c0_67] : memref<24x32xf32, #tpu.memory_space<vmem>>, vector<1x32xf32>
    %229 = vector.shape_cast %228 : vector<1x32xf32> to vector<32xf32>
    %230 = vector.shape_cast %229 : vector<32xf32> to vector<1x32xf32>
    %231 = vector.broadcast %230 : vector<1x32xf32> to vector<16x32xf32>
    %232 = arith.mulf %227, %231 : vector<16x32xf32>
    %c15 = arith.constant 15 : index
    %c0_68 = arith.constant 0 : index
    %233 = vector.load %arg3[%c15, %c0_68] : memref<24x32xf32, #tpu.memory_space<vmem>>, vector<1x32xf32>
    %234 = vector.shape_cast %233 : vector<1x32xf32> to vector<32xf32>
    %235 = vector.shape_cast %234 : vector<32xf32> to vector<1x32xf32>
    %236 = vector.broadcast %235 : vector<1x32xf32> to vector<16x32xf32>
    %237 = arith.addf %232, %236 : vector<16x32xf32>
    %c32_69 = arith.constant 32 : index
    %c0_70 = arith.constant 0 : index
    %238 = vector.load %arg0[%c32_69, %c0_70] : memref<64x32xf32, #tpu.memory_space<vmem>>, vector<16x32xf32>
    %239 = arith.addf %237, %238 : vector<16x32xf32>
    %c128 = arith.constant 128 : index
    %c0_71 = arith.constant 0 : index
    %240 = vector.load %arg1[%c128, %c0_71] : memref<544x32xbf16, #tpu.memory_space<vmem>>, vector<32x32xbf16>
    %241 = arith.truncf %239 : vector<16x32xf32> to vector<16x32xbf16>
    %cst_72 = arith.constant dense<0.000000e+00> : vector<16x32xf32>
    %242 = tpu.matmul %241, %240, %cst_72 {dimension_numbers = #tpu.dot_dimension_numbers<[1], [0], [0], [1], [0, 0, 1, 1], [], []>} : vector<16x32xbf16>, vector<32x32xbf16>, vector<16x32xf32> -> vector<16x32xf32>
    %c16_73 = arith.constant 16 : index
    %c0_74 = arith.constant 0 : index
    %243 = vector.load %arg3[%c16_73, %c0_74] : memref<24x32xf32, #tpu.memory_space<vmem>>, vector<1x32xf32>
    %244 = vector.shape_cast %243 : vector<1x32xf32> to vector<32xf32>
    %245 = vector.shape_cast %244 : vector<32xf32> to vector<1x32xf32>
    %246 = vector.broadcast %245 : vector<1x32xf32> to vector<16x32xf32>
    %247 = arith.addf %242, %246 : vector<16x32xf32>
    %c160 = arith.constant 160 : index
    %c0_75 = arith.constant 0 : index
    %248 = vector.load %arg1[%c160, %c0_75] : memref<544x32xbf16, #tpu.memory_space<vmem>>, vector<32x32xbf16>
    %249 = arith.truncf %237 : vector<16x32xf32> to vector<16x32xbf16>
    %cst_76 = arith.constant dense<0.000000e+00> : vector<16x32xf32>
    %250 = tpu.matmul %249, %248, %cst_76 {dimension_numbers = #tpu.dot_dimension_numbers<[1], [0], [0], [1], [0, 0, 1, 1], [], []>} : vector<16x32xbf16>, vector<32x32xbf16>, vector<16x32xf32> -> vector<16x32xf32>
    %c17 = arith.constant 17 : index
    %c0_77 = arith.constant 0 : index
    %251 = vector.load %arg3[%c17, %c0_77] : memref<24x32xf32, #tpu.memory_space<vmem>>, vector<1x32xf32>
    %252 = vector.shape_cast %251 : vector<1x32xf32> to vector<32xf32>
    %253 = vector.shape_cast %252 : vector<32xf32> to vector<1x32xf32>
    %254 = vector.broadcast %253 : vector<1x32xf32> to vector<16x32xf32>
    %255 = arith.addf %250, %254 : vector<16x32xf32>
    %c64_78 = arith.constant 64 : index
    %c0_79 = arith.constant 0 : index
    %256 = vector.load %arg2[%c64_78, %c0_79] : memref<192x256xbf16, #tpu.memory_space<vmem>>, vector<32x128xbf16>
    %257 = arith.truncf %237 : vector<16x32xf32> to vector<16x32xbf16>
    %cst_80 = arith.constant dense<0.000000e+00> : vector<16x128xf32>
    %258 = tpu.matmul %257, %256, %cst_80 {dimension_numbers = #tpu.dot_dimension_numbers<[1], [0], [0], [1], [0, 0, 1, 1], [], []>} : vector<16x32xbf16>, vector<32x128xbf16>, vector<16x128xf32> -> vector<16x128xf32>
    %c5_81 = arith.constant 5 : index
    %c0_82 = arith.constant 0 : index
    %259 = vector.load %arg4[%c5_81, %c0_82] : memref<16x256xf32, #tpu.memory_space<vmem>>, vector<1x128xf32>
    %260 = vector.shape_cast %259 : vector<1x128xf32> to vector<128xf32>
    %261 = vector.shape_cast %260 : vector<128xf32> to vector<1x128xf32>
    %262 = vector.broadcast %261 : vector<1x128xf32> to vector<16x128xf32>
    %263 = arith.addf %258, %262 : vector<16x128xf32>
    %cst_83 = arith.constant 0.000000e+00 : f32
    %264 = vector.broadcast %cst_83 : f32 to vector<2x8x32xf32>
    %265 = vector.extract_strided_slice %247 {offsets = [0, 0], sizes = [16, 8], strides = [1, 1]} : vector<16x32xf32> to vector<16x8xf32>
    %266 = vector.shape_cast %265 : vector<16x8xf32> to vector<2x8x8xf32>
    %267 = vector.extract_strided_slice %255 {offsets = [0, 0], sizes = [16, 8], strides = [1, 1]} : vector<16x32xf32> to vector<16x8xf32>
    %268 = vector.shape_cast %267 : vector<16x8xf32> to vector<2x8x8xf32>
    %269 = vector.extract_strided_slice %263 {offsets = [0, 0], sizes = [16, 32], strides = [1, 1]} : vector<16x128xf32> to vector<16x32xf32>
    %270 = vector.shape_cast %269 : vector<16x32xf32> to vector<2x8x32xf32>
    "tpu.trace_start"() <{level = 10 : i32, message = "btd,bsd->bts"}> : () -> ()
    %cst_84 = arith.constant dense<0.000000e+00> : vector<2x8x8xf32>
    %271 = tpu.matmul %266, %268, %cst_84 {dimension_numbers = #tpu.dot_dimension_numbers<[2], [2], [1], [1], [0, 0, 0, 1, 1, 1], [0], [0]>} : vector<2x8x8xf32>, vector<2x8x8xf32>, vector<2x8x8xf32> -> vector<2x8x8xf32>
    "tpu.trace_stop"() : () -> ()
    %272 = arith.addf %271, %1 : vector<2x8x8xf32>
    %cst_85 = arith.constant dense<0xFF800000> : vector<2x8xf32>
    %273 = vector.multi_reduction <maximumf>, %272, %cst_85 [2] : vector<2x8x8xf32> to vector<2x8xf32>
    %274 = vector.shape_cast %273 : vector<2x8xf32> to vector<2x8x1xf32>
    %275 = vector.broadcast %274 : vector<2x8x1xf32> to vector<2x8x8xf32>
    %276 = arith.subf %272, %275 : vector<2x8x8xf32>
    %277 = math.exp %276 : vector<2x8x8xf32>
    %cst_86 = arith.constant dense<0.000000e+00> : vector<2x8xf32>
    %278 = vector.multi_reduction <add>, %277, %cst_86 [2] : vector<2x8x8xf32> to vector<2x8xf32>
    %279 = vector.shape_cast %278 : vector<2x8xf32> to vector<2x8x1xf32>
    %280 = tpu.reciprocal %279 {approx = true} : vector<2x8x1xf32> -> vector<2x8x1xf32>
    %281 = vector.broadcast %280 : vector<2x8x1xf32> to vector<2x8x8xf32>
    %282 = arith.mulf %277, %281 : vector<2x8x8xf32>
    "tpu.trace_start"() <{level = 10 : i32, message = "bts,bsd->btd"}> : () -> ()
    %cst_87 = arith.constant dense<0.000000e+00> : vector<2x8x32xf32>
    %283 = tpu.matmul %282, %270, %cst_87 {dimension_numbers = #tpu.dot_dimension_numbers<[2], [1], [1], [2], [0, 0, 0, 1, 1, 2], [0], [0]>} : vector<2x8x8xf32>, vector<2x8x32xf32>, vector<2x8x32xf32> -> vector<2x8x32xf32>
    "tpu.trace_stop"() : () -> ()
    %284 = arith.addf %264, %283 : vector<2x8x32xf32>
    %285 = vector.extract_strided_slice %247 {offsets = [0, 8], sizes = [16, 8], strides = [1, 1]} : vector<16x32xf32> to vector<16x8xf32>
    %286 = vector.shape_cast %285 : vector<16x8xf32> to vector<2x8x8xf32>
    %287 = vector.extract_strided_slice %255 {offsets = [0, 8], sizes = [16, 8], strides = [1, 1]} : vector<16x32xf32> to vector<16x8xf32>
    %288 = vector.shape_cast %287 : vector<16x8xf32> to vector<2x8x8xf32>
    %289 = vector.extract_strided_slice %263 {offsets = [0, 32], sizes = [16, 32], strides = [1, 1]} : vector<16x128xf32> to vector<16x32xf32>
    %290 = vector.shape_cast %289 : vector<16x32xf32> to vector<2x8x32xf32>
    "tpu.trace_start"() <{level = 10 : i32, message = "btd,bsd->bts"}> : () -> ()
    %cst_88 = arith.constant dense<0.000000e+00> : vector<2x8x8xf32>
    %291 = tpu.matmul %286, %288, %cst_88 {dimension_numbers = #tpu.dot_dimension_numbers<[2], [2], [1], [1], [0, 0, 0, 1, 1, 1], [0], [0]>} : vector<2x8x8xf32>, vector<2x8x8xf32>, vector<2x8x8xf32> -> vector<2x8x8xf32>
    "tpu.trace_stop"() : () -> ()
    %292 = arith.addf %291, %1 : vector<2x8x8xf32>
    %cst_89 = arith.constant dense<0xFF800000> : vector<2x8xf32>
    %293 = vector.multi_reduction <maximumf>, %292, %cst_89 [2] : vector<2x8x8xf32> to vector<2x8xf32>
    %294 = vector.shape_cast %293 : vector<2x8xf32> to vector<2x8x1xf32>
    %295 = vector.broadcast %294 : vector<2x8x1xf32> to vector<2x8x8xf32>
    %296 = arith.subf %292, %295 : vector<2x8x8xf32>
    %297 = math.exp %296 : vector<2x8x8xf32>
    %cst_90 = arith.constant dense<0.000000e+00> : vector<2x8xf32>
    %298 = vector.multi_reduction <add>, %297, %cst_90 [2] : vector<2x8x8xf32> to vector<2x8xf32>
    %299 = vector.shape_cast %298 : vector<2x8xf32> to vector<2x8x1xf32>
    %300 = tpu.reciprocal %299 {approx = true} : vector<2x8x1xf32> -> vector<2x8x1xf32>
    %301 = vector.broadcast %300 : vector<2x8x1xf32> to vector<2x8x8xf32>
    %302 = arith.mulf %297, %301 : vector<2x8x8xf32>
    "tpu.trace_start"() <{level = 10 : i32, message = "bts,bsd->btd"}> : () -> ()
    %cst_91 = arith.constant dense<0.000000e+00> : vector<2x8x32xf32>
    %303 = tpu.matmul %302, %290, %cst_91 {dimension_numbers = #tpu.dot_dimension_numbers<[2], [1], [1], [2], [0, 0, 0, 1, 1, 2], [0], [0]>} : vector<2x8x8xf32>, vector<2x8x32xf32>, vector<2x8x32xf32> -> vector<2x8x32xf32>
    "tpu.trace_stop"() : () -> ()
    %304 = arith.addf %284, %303 : vector<2x8x32xf32>
    %305 = vector.extract_strided_slice %247 {offsets = [0, 16], sizes = [16, 8], strides = [1, 1]} : vector<16x32xf32> to vector<16x8xf32>
    %306 = vector.shape_cast %305 : vector<16x8xf32> to vector<2x8x8xf32>
    %307 = vector.extract_strided_slice %255 {offsets = [0, 16], sizes = [16, 8], strides = [1, 1]} : vector<16x32xf32> to vector<16x8xf32>
    %308 = vector.shape_cast %307 : vector<16x8xf32> to vector<2x8x8xf32>
    %309 = vector.extract_strided_slice %263 {offsets = [0, 64], sizes = [16, 32], strides = [1, 1]} : vector<16x128xf32> to vector<16x32xf32>
    %310 = vector.shape_cast %309 : vector<16x32xf32> to vector<2x8x32xf32>
    "tpu.trace_start"() <{level = 10 : i32, message = "btd,bsd->bts"}> : () -> ()
    %cst_92 = arith.constant dense<0.000000e+00> : vector<2x8x8xf32>
    %311 = tpu.matmul %306, %308, %cst_92 {dimension_numbers = #tpu.dot_dimension_numbers<[2], [2], [1], [1], [0, 0, 0, 1, 1, 1], [0], [0]>} : vector<2x8x8xf32>, vector<2x8x8xf32>, vector<2x8x8xf32> -> vector<2x8x8xf32>
    "tpu.trace_stop"() : () -> ()
    %312 = arith.addf %311, %1 : vector<2x8x8xf32>
    %cst_93 = arith.constant dense<0xFF800000> : vector<2x8xf32>
    %313 = vector.multi_reduction <maximumf>, %312, %cst_93 [2] : vector<2x8x8xf32> to vector<2x8xf32>
    %314 = vector.shape_cast %313 : vector<2x8xf32> to vector<2x8x1xf32>
    %315 = vector.broadcast %314 : vector<2x8x1xf32> to vector<2x8x8xf32>
    %316 = arith.subf %312, %315 : vector<2x8x8xf32>
    %317 = math.exp %316 : vector<2x8x8xf32>
    %cst_94 = arith.constant dense<0.000000e+00> : vector<2x8xf32>
    %318 = vector.multi_reduction <add>, %317, %cst_94 [2] : vector<2x8x8xf32> to vector<2x8xf32>
    %319 = vector.shape_cast %318 : vector<2x8xf32> to vector<2x8x1xf32>
    %320 = tpu.reciprocal %319 {approx = true} : vector<2x8x1xf32> -> vector<2x8x1xf32>
    %321 = vector.broadcast %320 : vector<2x8x1xf32> to vector<2x8x8xf32>
    %322 = arith.mulf %317, %321 : vector<2x8x8xf32>
    "tpu.trace_start"() <{level = 10 : i32, message = "bts,bsd->btd"}> : () -> ()
    %cst_95 = arith.constant dense<0.000000e+00> : vector<2x8x32xf32>
    %323 = tpu.matmul %322, %310, %cst_95 {dimension_numbers = #tpu.dot_dimension_numbers<[2], [1], [1], [2], [0, 0, 0, 1, 1, 2], [0], [0]>} : vector<2x8x8xf32>, vector<2x8x32xf32>, vector<2x8x32xf32> -> vector<2x8x32xf32>
    "tpu.trace_stop"() : () -> ()
    %324 = arith.addf %304, %323 : vector<2x8x32xf32>
    %325 = vector.extract_strided_slice %247 {offsets = [0, 24], sizes = [16, 8], strides = [1, 1]} : vector<16x32xf32> to vector<16x8xf32>
    %326 = vector.shape_cast %325 : vector<16x8xf32> to vector<2x8x8xf32>
    %327 = vector.extract_strided_slice %255 {offsets = [0, 24], sizes = [16, 8], strides = [1, 1]} : vector<16x32xf32> to vector<16x8xf32>
    %328 = vector.shape_cast %327 : vector<16x8xf32> to vector<2x8x8xf32>
    %329 = vector.extract_strided_slice %263 {offsets = [0, 96], sizes = [16, 32], strides = [1, 1]} : vector<16x128xf32> to vector<16x32xf32>
    %330 = vector.shape_cast %329 : vector<16x32xf32> to vector<2x8x32xf32>
    "tpu.trace_start"() <{level = 10 : i32, message = "btd,bsd->bts"}> : () -> ()
    %cst_96 = arith.constant dense<0.000000e+00> : vector<2x8x8xf32>
    %331 = tpu.matmul %326, %328, %cst_96 {dimension_numbers = #tpu.dot_dimension_numbers<[2], [2], [1], [1], [0, 0, 0, 1, 1, 1], [0], [0]>} : vector<2x8x8xf32>, vector<2x8x8xf32>, vector<2x8x8xf32> -> vector<2x8x8xf32>
    "tpu.trace_stop"() : () -> ()
    %332 = arith.addf %331, %1 : vector<2x8x8xf32>
    %cst_97 = arith.constant dense<0xFF800000> : vector<2x8xf32>
    %333 = vector.multi_reduction <maximumf>, %332, %cst_97 [2] : vector<2x8x8xf32> to vector<2x8xf32>
    %334 = vector.shape_cast %333 : vector<2x8xf32> to vector<2x8x1xf32>
    %335 = vector.broadcast %334 : vector<2x8x1xf32> to vector<2x8x8xf32>
    %336 = arith.subf %332, %335 : vector<2x8x8xf32>
    %337 = math.exp %336 : vector<2x8x8xf32>
    %cst_98 = arith.constant dense<0.000000e+00> : vector<2x8xf32>
    %338 = vector.multi_reduction <add>, %337, %cst_98 [2] : vector<2x8x8xf32> to vector<2x8xf32>
    %339 = vector.shape_cast %338 : vector<2x8xf32> to vector<2x8x1xf32>
    %340 = tpu.reciprocal %339 {approx = true} : vector<2x8x1xf32> -> vector<2x8x1xf32>
    %341 = vector.broadcast %340 : vector<2x8x1xf32> to vector<2x8x8xf32>
    %342 = arith.mulf %337, %341 : vector<2x8x8xf32>
    "tpu.trace_start"() <{level = 10 : i32, message = "bts,bsd->btd"}> : () -> ()
    %cst_99 = arith.constant dense<0.000000e+00> : vector<2x8x32xf32>
    %343 = tpu.matmul %342, %330, %cst_99 {dimension_numbers = #tpu.dot_dimension_numbers<[2], [1], [1], [2], [0, 0, 0, 1, 1, 2], [0], [0]>} : vector<2x8x8xf32>, vector<2x8x32xf32>, vector<2x8x32xf32> -> vector<2x8x32xf32>
    "tpu.trace_stop"() : () -> ()
    %344 = arith.addf %324, %343 : vector<2x8x32xf32>
    %345 = vector.shape_cast %344 : vector<2x8x32xf32> to vector<16x32xf32>
    %c18 = arith.constant 18 : index
    %c0_100 = arith.constant 0 : index
    %346 = vector.load %arg3[%c18, %c0_100] : memref<24x32xf32, #tpu.memory_space<vmem>>, vector<1x32xf32>
    %347 = vector.shape_cast %346 : vector<1x32xf32> to vector<32xf32>
    %348 = vector.shape_cast %347 : vector<32xf32> to vector<1x32xf32>
    %349 = vector.broadcast %348 : vector<1x32xf32> to vector<16x32xf32>
    %350 = arith.addf %345, %349 : vector<16x32xf32>
    %351 = arith.addf %239, %350 : vector<16x32xf32>
    %cst_101 = arith.constant dense<0.000000e+00> : vector<16xf32>
    %352 = vector.multi_reduction <add>, %351, %cst_101 [1] : vector<16x32xf32> to vector<16xf32>
    %353 = vector.shape_cast %352 : vector<16xf32> to vector<16x1xf32>
    %cst_102 = arith.constant 3.200000e+01 : f32
    %354 = vector.broadcast %cst_102 : f32 to vector<16x1xf32>
    %355 = arith.divf %353, %354 : vector<16x1xf32>
    %356 = arith.mulf %351, %351 : vector<16x32xf32>
    %cst_103 = arith.constant dense<0.000000e+00> : vector<16xf32>
    %357 = vector.multi_reduction <add>, %356, %cst_103 [1] : vector<16x32xf32> to vector<16xf32>
    %358 = vector.shape_cast %357 : vector<16xf32> to vector<16x1xf32>
    %cst_104 = arith.constant 3.200000e+01 : f32
    %359 = vector.broadcast %cst_104 : f32 to vector<16x1xf32>
    %360 = arith.divf %358, %359 : vector<16x1xf32>
    %361 = arith.mulf %355, %355 : vector<16x1xf32>
    %362 = arith.subf %360, %361 : vector<16x1xf32>
    %363 = vector.broadcast %355 : vector<16x1xf32> to vector<16x32xf32>
    %364 = arith.subf %351, %363 : vector<16x32xf32>
    %cst_105 = arith.constant 9.99999974E-6 : f32
    %365 = vector.broadcast %cst_105 : f32 to vector<16x1xf32>
    %366 = arith.addf %362, %365 : vector<16x1xf32>
    %367 = math.rsqrt %366 : vector<16x1xf32>
    %368 = vector.broadcast %367 : vector<16x1xf32> to vector<16x32xf32>
    %369 = arith.mulf %364, %368 : vector<16x32xf32>
    %c19 = arith.constant 19 : index
    %c0_106 = arith.constant 0 : index
    %370 = vector.load %arg3[%c19, %c0_106] : memref<24x32xf32, #tpu.memory_space<vmem>>, vector<1x32xf32>
    %371 = vector.shape_cast %370 : vector<1x32xf32> to vector<32xf32>
    %372 = vector.shape_cast %371 : vector<32xf32> to vector<1x32xf32>
    %373 = vector.broadcast %372 : vector<1x32xf32> to vector<16x32xf32>
    %374 = arith.mulf %369, %373 : vector<16x32xf32>
    %c20 = arith.constant 20 : index
    %c0_107 = arith.constant 0 : index
    %375 = vector.load %arg3[%c20, %c0_107] : memref<24x32xf32, #tpu.memory_space<vmem>>, vector<1x32xf32>
    %376 = vector.shape_cast %375 : vector<1x32xf32> to vector<32xf32>
    %377 = vector.shape_cast %376 : vector<32xf32> to vector<1x32xf32>
    %378 = vector.broadcast %377 : vector<1x32xf32> to vector<16x32xf32>
    %379 = arith.addf %374, %378 : vector<16x32xf32>
    %c192 = arith.constant 192 : index
    %c0_108 = arith.constant 0 : index
    %380 = vector.load %arg1[%c192, %c0_108] : memref<544x32xbf16, #tpu.memory_space<vmem>>, vector<32x8xbf16>
    %381 = arith.truncf %379 : vector<16x32xf32> to vector<16x32xbf16>
    %cst_109 = arith.constant dense<0.000000e+00> : vector<16x8xf32>
    %382 = tpu.matmul %381, %380, %cst_109 {dimension_numbers = #tpu.dot_dimension_numbers<[1], [0], [0], [1], [0, 0, 1, 1], [], []>} : vector<16x32xbf16>, vector<32x8xbf16>, vector<16x8xf32> -> vector<16x8xf32>
    %c2 = arith.constant 2 : index
    %c0_110 = arith.constant 0 : index
    %383 = vector.load %arg4[%c2, %c0_110] : memref<16x256xf32, #tpu.memory_space<vmem>>, vector<1x8xf32>
    %384 = vector.shape_cast %383 : vector<1x8xf32> to vector<8xf32>
    %385 = vector.shape_cast %384 : vector<8xf32> to vector<1x8xf32>
    %386 = vector.broadcast %385 : vector<1x8xf32> to vector<16x8xf32>
    %387 = arith.addf %382, %386 : vector<16x8xf32>
    %388 = vector.extract_strided_slice %387 {offsets = [0, 0], sizes = [16, 4], strides = [1, 1]} : vector<16x8xf32> to vector<16x4xf32>
    %cst_111 = arith.constant dense<0xFF800000> : vector<16xf32>
    %389 = vector.multi_reduction <maximumf>, %388, %cst_111 [1] : vector<16x4xf32> to vector<16xf32>
    %390 = vector.shape_cast %389 : vector<16xf32> to vector<16x1xf32>
    %391 = vector.broadcast %390 : vector<16x1xf32> to vector<16x4xf32>
    %392 = arith.subf %388, %391 : vector<16x4xf32>
    %393 = math.exp %392 : vector<16x4xf32>
    %cst_112 = arith.constant dense<0.000000e+00> : vector<16xf32>
    %394 = vector.multi_reduction <add>, %393, %cst_112 [1] : vector<16x4xf32> to vector<16xf32>
    %395 = vector.shape_cast %394 : vector<16xf32> to vector<16x1xf32>
    %396 = vector.broadcast %395 : vector<16x1xf32> to vector<16x4xf32>
    %397 = arith.divf %393, %396 : vector<16x4xf32>
    %398 = vector.extract_strided_slice %387 {offsets = [0, 4], sizes = [16, 4], strides = [1, 1]} : vector<16x8xf32> to vector<16x4xf32>
    %cst_113 = arith.constant dense<0xFF800000> : vector<16xf32>
    %399 = vector.multi_reduction <maximumf>, %398, %cst_113 [1] : vector<16x4xf32> to vector<16xf32>
    %400 = vector.shape_cast %399 : vector<16xf32> to vector<16x1xf32>
    %401 = vector.broadcast %400 : vector<16x1xf32> to vector<16x4xf32>
    %402 = arith.subf %398, %401 : vector<16x4xf32>
    %403 = math.exp %402 : vector<16x4xf32>
    %cst_114 = arith.constant dense<0.000000e+00> : vector<16xf32>
    %404 = vector.multi_reduction <add>, %403, %cst_114 [1] : vector<16x4xf32> to vector<16xf32>
    %405 = vector.shape_cast %404 : vector<16xf32> to vector<16x1xf32>
    %406 = vector.broadcast %405 : vector<16x1xf32> to vector<16x4xf32>
    %407 = arith.divf %403, %406 : vector<16x4xf32>
    %408 = tpu.concatenate %397, %407 in 0 : vector<16x4xf32>, vector<16x4xf32> -> vector<32x4xf32>
    %c160_115 = arith.constant 160 : index
    %c0_116 = arith.constant 0 : index
    %409 = vector.load %arg2[%c160_115, %c0_116] : memref<192x256xbf16, #tpu.memory_space<vmem>>, vector<32x256xbf16>
    %410 = arith.truncf %379 : vector<16x32xf32> to vector<16x32xbf16>
    %cst_117 = arith.constant dense<0.000000e+00> : vector<16x256xf32>
    %411 = tpu.matmul %410, %409, %cst_117 {dimension_numbers = #tpu.dot_dimension_numbers<[1], [0], [0], [1], [0, 0, 1, 1], [], []>} : vector<16x32xbf16>, vector<32x256xbf16>, vector<16x256xf32> -> vector<16x256xf32>
    %c1 = arith.constant 1 : index
    %c0_118 = arith.constant 0 : index
    %412 = vector.load %arg4[%c1, %c0_118] : memref<16x256xf32, #tpu.memory_space<vmem>>, vector<1x256xf32>
    %413 = vector.shape_cast %412 : vector<1x256xf32> to vector<256xf32>
    %414 = vector.shape_cast %413 : vector<256xf32> to vector<1x256xf32>
    %415 = vector.broadcast %414 : vector<1x256xf32> to vector<16x256xf32>
    %416 = arith.addf %411, %415 : vector<16x256xf32>
    %cst_119 = arith.constant 0.000000e+00 : f32
    %417 = vector.broadcast %cst_119 : f32 to vector<16x256xf32>
    %418 = arith.maximumf %416, %417 : vector<16x256xf32>
    %419 = tpu.concatenate %418, %418 in 0 : vector<16x256xf32>, vector<16x256xf32> -> vector<32x256xf32>
    %c8_120 = arith.constant 8 : index
    %c0_121 = arith.constant 0 : index
    %420 = vector.load %arg4[%c8_120, %c0_121] : memref<16x256xf32, #tpu.memory_space<vmem>>, vector<4x256xf32>
    %cst_122 = arith.constant dense<0.000000e+00> : vector<32x256xf32>
    %421 = tpu.matmul %408, %420, %cst_122 {dimension_numbers = #tpu.dot_dimension_numbers<[1], [0], [0], [1], [0, 0, 1, 1], [], []>} : vector<32x4xf32>, vector<4x256xf32>, vector<32x256xf32> -> vector<32x256xf32>
    %c0_123 = arith.constant 0 : index
    %c0_124 = arith.constant 0 : index
    %422 = vector.load %arg3[%c0_123, %c0_124] : memref<24x32xf32, #tpu.memory_space<vmem>>, vector<4x32xf32>
    %cst_125 = arith.constant dense<0.000000e+00> : vector<32x32xf32>
    %423 = tpu.matmul %408, %422, %cst_125 {dimension_numbers = #tpu.dot_dimension_numbers<[1], [0], [0], [1], [0, 0, 1, 1], [], []>} : vector<32x4xf32>, vector<4x32xf32>, vector<32x32xf32> -> vector<32x32xf32>
    %424 = arith.mulf %419, %421 : vector<32x256xf32>
    %c288 = arith.constant 288 : index
    %c0_126 = arith.constant 0 : index
    %425 = vector.load %arg1[%c288, %c0_126] : memref<544x32xbf16, #tpu.memory_space<vmem>>, vector<256x32xbf16>
    %426 = arith.truncf %424 : vector<32x256xf32> to vector<32x256xbf16>
    %cst_127 = arith.constant dense<0.000000e+00> : vector<32x32xf32>
    %427 = tpu.matmul %426, %425, %cst_127 {dimension_numbers = #tpu.dot_dimension_numbers<[1], [0], [0], [1], [0, 0, 1, 1], [], []>} : vector<32x256xbf16>, vector<256x32xbf16>, vector<32x32xf32> -> vector<32x32xf32>
    %428 = arith.addf %427, %423 : vector<32x32xf32>
    %429 = vector.extract_strided_slice %428 {offsets = [0, 0], sizes = [16, 32], strides = [1, 1]} : vector<32x32xf32> to vector<16x32xf32>
    %c96_128 = arith.constant 96 : index
    %c0_129 = arith.constant 0 : index
    %430 = vector.load %arg2[%c96_128, %c0_129] : memref<192x256xbf16, #tpu.memory_space<vmem>>, vector<32x128xbf16>
    %431 = arith.truncf %429 : vector<16x32xf32> to vector<16x32xbf16>
    %cst_130 = arith.constant dense<0.000000e+00> : vector<16x128xf32>
    %432 = tpu.matmul %431, %430, %cst_130 {dimension_numbers = #tpu.dot_dimension_numbers<[1], [0], [0], [1], [0, 0, 1, 1], [], []>} : vector<16x32xbf16>, vector<32x128xbf16>, vector<16x128xf32> -> vector<16x128xf32>
    %433 = vector.extract_strided_slice %428 {offsets = [16, 0], sizes = [16, 32], strides = [1, 1]} : vector<32x32xf32> to vector<16x32xf32>
    %c128_131 = arith.constant 128 : index
    %c0_132 = arith.constant 0 : index
    %434 = vector.load %arg2[%c128_131, %c0_132] : memref<192x256xbf16, #tpu.memory_space<vmem>>, vector<32x128xbf16>
    %435 = arith.truncf %433 : vector<16x32xf32> to vector<16x32xbf16>
    %cst_133 = arith.constant dense<0.000000e+00> : vector<16x128xf32>
    %436 = tpu.matmul %435, %434, %cst_133 {dimension_numbers = #tpu.dot_dimension_numbers<[1], [0], [0], [1], [0, 0, 1, 1], [], []>} : vector<16x32xbf16>, vector<32x128xbf16>, vector<16x128xf32> -> vector<16x128xf32>
    %437 = arith.addf %432, %436 : vector<16x128xf32>
    %c3 = arith.constant 3 : index
    %c0_134 = arith.constant 0 : index
    %438 = vector.load %arg4[%c3, %c0_134] : memref<16x256xf32, #tpu.memory_space<vmem>>, vector<1x128xf32>
    %439 = vector.shape_cast %438 : vector<1x128xf32> to vector<128xf32>
    %440 = vector.shape_cast %439 : vector<128xf32> to vector<1x128xf32>
    %441 = vector.broadcast %440 : vector<1x128xf32> to vector<16x128xf32>
    %442 = arith.addf %437, %441 : vector<16x128xf32>
    %c6_135 = arith.constant 6 : index
    %c0_136 = arith.constant 0 : index
    %443 = vector.load %arg4[%c6_135, %c0_136] : memref<16x256xf32, #tpu.memory_space<vmem>>, vector<1x128xf32>
    %444 = vector.shape_cast %443 : vector<1x128xf32> to vector<128xf32>
    %cst_137 = arith.constant 0.000000e+00 : f32
    %445 = vector.broadcast %cst_137 : f32 to vector<128xf32>
    %446 = arith.cmpf ogt, %444, %445 : vector<128xf32>
    %cst_138 = arith.constant 0.000000e+00 : f32
    %447 = vector.broadcast %cst_138 : f32 to vector<16x128xf32>
    %448 = arith.subf %447, %442 : vector<16x128xf32>
    %449 = math.exp %448 : vector<16x128xf32>
    %cst_139 = arith.constant 1.000000e+00 : f32
    %450 = vector.broadcast %cst_139 : f32 to vector<16x128xf32>
    %451 = arith.addf %450, %449 : vector<16x128xf32>
    %cst_140 = arith.constant 1.000000e+00 : f32
    %452 = vector.broadcast %cst_140 : f32 to vector<16x128xf32>
    %453 = arith.divf %452, %451 : vector<16x128xf32>
    %454 = vector.shape_cast %446 : vector<128xi1> to vector<1x128xi1>
    %455 = vector.broadcast %454 : vector<1x128xi1> to vector<16x128xi1>
    %456 = arith.select %455, %453, %442 : vector<16x128xi1>, vector<16x128xf32>
    %c0_141 = arith.constant 0 : index
    %c0_142 = arith.constant 0 : index
    %457 = vector.load %arg5[%c0_141, %c0_142] : memref<16x128xf32, #tpu.memory_space<vmem>>, vector<16x128xf32>
    tpu.vector_store %arg5[%c0_141, %c0_142], %456 {strides = array<i32>} : memref<16x128xf32, #tpu.memory_space<vmem>>, vector<16x128xf32>,
    return
  }
}

</mosaic_0001>

<llo_original>
// kernel: _forward_impl.1
$region0: #{_forward_impl.1}
  #allocation0 [shape = 'u32[]', space=smem, size = 0x4, offset = 0x4, fixed_abs, tag = 'smem constant byte address 0x4 - core index']
  #allocation1 [shape = 'u32[144,128]{1,0:T(1,128)}', space=vmem, size = 0x12000, scoped, tag = 'internal scratch']
  %s0 = inlined_call_operand.vmem [shape: f32[64,32], index: 0, kind: input, shape index: {}]
  %s1 = inlined_call_operand.vmem [shape: bf16[544,32], index: 1, kind: input, shape index: {}]
  %s2 = inlined_call_operand.vmem [shape: bf16[192,256], index: 2, kind: input, shape index: {}]
  %s3 = inlined_call_operand.vmem [shape: f32[24,32], index: 3, kind: input, shape index: {}]
  %s4 = inlined_call_operand.vmem [shape: f32[16,256], index: 4, kind: input, shape index: {}]
  %s5 = inlined_call_operand.vmem [shape: f32[16,128], index: 5, kind: output, shape index: {}]
  %s6 = sld [smem:[#allocation0]]
  $region30: #{_forward_impl.1} parent=0
    _
  %s8 = ssub.s32 1, %s6
  %s9 = scalar_select 0, %s8, %s6
  // Predicated region
  $region2: #{_forward_impl.1} parent=0 // pred_check
    _
  $region3: #{_forward_impl.1} parent=0 // pred_check_branch
    %11 = sbr.rel (0) target = $region5
  $region4: #{_forward_impl.1} parent=0 // pred_region
    _
  $region5: #{_forward_impl.1} parent=0 // pred_fallthru
    _
  // Predicated region
  $region6: #{_forward_impl.1} parent=0 // pred_check
    _
  $region7: #{_forward_impl.1} parent=0 // pred_check_branch
    %13 = sbr.rel (0) target = $region9
  $region8: #{_forward_impl.1} parent=0 // pred_region
    _
  $region9: #{_forward_impl.1} parent=0 // pred_fallthru
    _
  // Predicated region
  $region10: #{_forward_impl.1} parent=0 // pred_check
    _
  $region11: #{_forward_impl.1} parent=0 // pred_check_branch
    %15 = sbr.rel (0) target = $region13
  $region12: #{_forward_impl.1} parent=0 // pred_region
    _
  $region13: #{_forward_impl.1} parent=0 // pred_fallthru
    _
  // Predicated region
  $region14: #{_forward_impl.1} parent=0 // pred_check
    _
  $region15: #{_forward_impl.1} parent=0 // pred_check_branch
    %17 = sbr.rel (0) target = $region17
  $region16: #{_forward_impl.1} parent=0 // pred_region
    _
  $region17: #{_forward_impl.1} parent=0 // pred_fallthru
    _
  // Predicated region
  $region18: #{_forward_impl.1} parent=0 // pred_check
    _
  $region19: #{_forward_impl.1} parent=0 // pred_check_branch
    %19 = sbr.rel (0) target = $region21
  $region20: #{_forward_impl.1} parent=0 // pred_region
    _
  $region21: #{_forward_impl.1} parent=0 // pred_fallthru
    _
  %v21 = vld [vmem:[%s0 + $0x30] sm:$0xff]
  %v22 = vld [vmem:[%s0 + $0x38] sm:$0xff]
  %v23 = vld [vmem:[%s0] sm:$0xff]
  %v24 = vld [vmem:[%s0 + $0x8] sm:$0xff]
  %v25 = vld [vmem:[%s1] sm:$0xf]
  %v26 = vld [vmem:[%s1 + $0x4] sm:$0xf]
  %v27 = vld [vmem:[%s1 + $0x8] sm:$0xf]
  %v28 = vld [vmem:[%s1 + $0xc] sm:$0xf]
  %v29 = vpack.c.bf16 %v24, %v23
  %v30 = vld [vmem:[%s3 + $0x4] sm:$0x1]
  %v31 = vlaneseq
  %v32 = vshrl.u32 %v31, 7
  %v33 = vsub.s32 0, %v32
  %v34 = vrot.slane %v30, %v33
  %v39 = vunpack.c.l.b16 %v25
  %v40 = vunpack.c.l.b16 %v26
  %v41 = vunpack.c.l.b16 %v27
  %v42 = vunpack.c.l.b16 %v28
  %v43 = vpack.c.b16 %v40, %v39
  %v44 = vpack.c.b16 %v42, %v41
  %vm47 = vcmask 261120
  %v49 = vsel %vm47, %v29, 0
  %51 = vmatprep.subr.bf16.mxu0 0
  %52 = vmatpush1.bf16.msra.mxu0 0
  %53 = vmatprep.subr.bf16.mxu0 0
  %54 = vmatpush1.bf16.msra.mxu0 0
  %55 = vmatprep.subr.bf16.mxu0 0
  %56 = vmatpush1.bf16.msra.mxu0 0
  %57 = vmatprep.subr.bf16.mxu0 0
  %58 = vmatpush1.bf16.msra.mxu0 0
  %59 = vmatprep.subr.bf16.mxu0 0
  %60 = vmatpush1.bf16.msra.mxu0 0
  %61 = vmatprep.subr.bf16.mxu0 0
  %62 = vmatpush1.bf16.msra.mxu0 0
  %63 = vmatprep.subr.bf16.mxu0 0
  %64 = vmatpush1.bf16.msra.mxu0 %v44
  %65 = vmatprep.subr.bf16.mxu0 0
  %66 = vmatpush1.bf16.msra.mxu0 %v43
  %67 = vmatprep.subr.bf16.mxu0 0
  %68 = vmatpush2.bf16.msra.mxu0 0
  %69 = vmatprep.subr.bf16.mxu0 0
  %70 = vmatpush2.bf16.msra.mxu0 0
  %71 = vmatprep.subr.bf16.mxu0 0
  %72 = vmatpush2.bf16.msra.mxu0 0
  %73 = vmatprep.subr.bf16.mxu0 0
  %74 = vmatpush2.bf16.msra.mxu0 0
  %75 = vmatprep.subr.bf16.mxu0 0
  %76 = vmatpush2.bf16.msra.mxu0 0
  %77 = vmatprep.subr.bf16.mxu0 0
  %78 = vmatpush2.bf16.msra.mxu0 0
  %79 = vmatprep.subr.bf16.mxu0 0
  %80 = vmatpush2.bf16.msra.mxu0 0
  %81 = vmatprep.subr.bf16.mxu0 0
  %82 = vmatpush2.bf16.msra.mxu0 0
  %83 = vmatprep.mubr.bf16.mxu0 0
  %84 = vmatmul.mubr.bf16.gmra.mxu0 %v49
  %v85 = vpop.f32.mrf.mxu0
  %v86 = vadd.f32 %v34, %v85
  %v87 = vpop.f32.mrf.mxu0
  %v88 = vpop.f32.mrf.mxu0
  %v89 = vadd.f32 %v34, %v88
  %v90 = vpop.f32.mrf.mxu0
  %91 = vdwg.mxu0
  %v92 = vmax.f32 %v86, 0.0
  %v93 = vmax.f32 %v89, 0.0
  %v94 = vsel %vm47, %v92, 0.0
  %95 = vadd.xlane.f32.xlu0 %v94
  %v96 = vpop.xlane.xlu0 %95
  %v97 = vsel %vm47, %v93, 0.0
  %98 = vadd.xlane.f32.xlu0 %v97
  %v99 = vpop.xlane.xlu0 %98
  %v100 = vrcp.pop 32.0
  %v101 = vmul.f32 %v96, %v100
  %v102 = vmul.f32 %v99, %v100
  %v103 = vmul.f32 %v92, %v92
  %v104 = vmul.f32 %v93, %v93
  %v105 = vsel %vm47, %v103, 0.0
  %106 = vadd.xlane.f32.xlu0 %v105
  %v107 = vpop.xlane.xlu0 %106
  %v108 = vsel %vm47, %v104, 0.0
  %109 = vadd.xlane.f32.xlu0 %v108
  %v110 = vpop.xlane.xlu0 %109
  %v111 = vmul.f32 %v107, %v100
  %v112 = vmul.f32 %v110, %v100
  %v113 = vmul.f32 %v101, %v101
  %v114 = vmul.f32 %v102, %v102
  %v115 = vsub.f32 %v111, %v113
  %v116 = vsub.f32 %v112, %v114
  %v117 = vsub.f32 %v92, %v101
  %v118 = vsub.f32 %v93, %v102
  %v119 = vadd.f32 %v115, 1e-05
  %v120 = vadd.f32 %v116, 1e-05
  %v121 = vrsqrt.pop %v119
  %v122 = vrsqrt.pop %v120
  %v123 = vmul.f32 %v117, %v121
  %v124 = vmul.f32 %v118, %v122
  %v125 = vld [vmem:[%s3 + $0x5] sm:$0x1]
  %v126 = vlaneseq
  %v127 = vshrl.u32 %v126, 7
  %v128 = vsub.s32 0, %v127
  %v129 = vrot.slane %v125, %v128
  %v130 = vmul.f32 %v123, %v129
  %v131 = vmul.f32 %v124, %v129
  %v132 = vld [vmem:[%s3 + $0x6] sm:$0x1]
  %v133 = vlaneseq
  %v134 = vshrl.u32 %v133, 7
  %v135 = vsub.s32 0, %v134
  %v136 = vrot.slane %v132, %v135
  %v137 = vadd.f32 %v130, %v136
  %v138 = vadd.f32 %v131, %v136
  %v139 = vld [vmem:[%s1 + $0x10] sm:$0xf]
  %v140 = vld [vmem:[%s1 + $0x14] sm:$0xf]
  %v141 = vld [vmem:[%s1 + $0x18] sm:$0xf]
  %v142 = vld [vmem:[%s1 + $0x1c] sm:$0xf]
  %v143 = vpack.c.bf16 %v138, %v137
  %v144 = vld [vmem:[%s3 + $0x7] sm:$0x1]
  %v145 = vlaneseq
  %v146 = vshrl.u32 %v145, 7
  %v147 = vsub.s32 0, %v146
  %v148 = vrot.slane %v144, %v147
  %v153 = vunpack.c.l.b16 %v139
  %v154 = vunpack.c.l.b16 %v140
  %v155 = vunpack.c.l.b16 %v141
  %v156 = vunpack.c.l.b16 %v142
  %v157 = vpack.c.b16 %v154, %v153
  %v158 = vpack.c.b16 %v156, %v155
  %v162 = vsel %vm47, %v143, 0
  %164 = vmatprep.subr.bf16.mxu0 0
  %165 = vmatpush1.bf16.msra.mxu0 0
  %166 = vmatprep.subr.bf16.mxu0 0
  %167 = vmatpush1.bf16.msra.mxu0 0
  %168 = vmatprep.subr.bf16.mxu0 0
  %169 = vmatpush1.bf16.msra.mxu0 0
  %170 = vmatprep.subr.bf16.mxu0 0
  %171 = vmatpush1.bf16.msra.mxu0 0
  %172 = vmatprep.subr.bf16.mxu0 0
  %173 = vmatpush1.bf16.msra.mxu0 0
  %174 = vmatprep.subr.bf16.mxu0 0
  %175 = vmatpush1.bf16.msra.mxu0 0
  %176 = vmatprep.subr.bf16.mxu0 0
  %177 = vmatpush1.bf16.msra.mxu0 %v158
  %178 = vmatprep.subr.bf16.mxu0 0
  %179 = vmatpush1.bf16.msra.mxu0 %v157
  %180 = vmatprep.subr.bf16.mxu0 0
  %181 = vmatpush2.bf16.msra.mxu0 0
  %182 = vmatprep.subr.bf16.mxu0 0
  %183 = vmatpush2.bf16.msra.mxu0 0
  %184 = vmatprep.subr.bf16.mxu0 0
  %185 = vmatpush2.bf16.msra.mxu0 0
  %186 = vmatprep.subr.bf16.mxu0 0
  %187 = vmatpush2.bf16.msra.mxu0 0
  %188 = vmatprep.subr.bf16.mxu0 0
  %189 = vmatpush2.bf16.msra.mxu0 0
  %190 = vmatprep.subr.bf16.mxu0 0
  %191 = vmatpush2.bf16.msra.mxu0 0
  %192 = vmatprep.subr.bf16.mxu0 0
  %193 = vmatpush2.bf16.msra.mxu0 0
  %194 = vmatprep.subr.bf16.mxu0 0
  %195 = vmatpush2.bf16.msra.mxu0 0
  %196 = vmatprep.mubr.bf16.mxu0 0
  %197 = vmatmul.mubr.bf16.gmra.mxu0 %v162
  %v198 = vpop.f32.mrf.mxu0
  %v199 = vadd.f32 %v148, %v198
  %v200 = vpop.f32.mrf.mxu0
  %v201 = vpop.f32.mrf.mxu0
  %v202 = vadd.f32 %v148, %v201
  %v203 = vpop.f32.mrf.mxu0
  %204 = vdwg.mxu0
  %v205 = vld [vmem:[%s0 + $0x10] sm:$0xff]
  %v206 = vld [vmem:[%s0 + $0x18] sm:$0xff]
  %v207 = vadd.f32 %v199, %v205
  %v208 = vadd.f32 %v202, %v206
  %v209 = vld [vmem:[%s1 + $0x20] sm:$0xf]
  %v210 = vld [vmem:[%s1 + $0x24] sm:$0xf]
  %v211 = vld [vmem:[%s1 + $0x28] sm:$0xf]
  %v212 = vld [vmem:[%s1 + $0x2c] sm:$0xf]
  %v213 = vpack.c.bf16 %v208, %v207
  %v214 = vld [vmem:[%s3 + $0x8] sm:$0x1]
  %v215 = vlaneseq
  %v216 = vshrl.u32 %v215, 7
  %v217 = vsub.s32 0, %v216
  %v218 = vrot.slane %v214, %v217
  %v223 = vunpack.c.l.b16 %v209
  %v224 = vunpack.c.l.b16 %v210
  %v225 = vunpack.c.l.b16 %v211
  %v226 = vunpack.c.l.b16 %v212
  %v227 = vpack.c.b16 %v224, %v223
  %v228 = vpack.c.b16 %v226, %v225
  %v232 = vsel %vm47, %v213, 0
  %234 = vmatprep.subr.bf16.mxu0 0
  %235 = vmatpush1.bf16.msra.mxu0 0
  %236 = vmatprep.subr.bf16.mxu0 0
  %237 = vmatpush1.bf16.msra.mxu0 0
  %238 = vmatprep.subr.bf16.mxu0 0
  %239 = vmatpush1.bf16.msra.mxu0 0
  %240 = vmatprep.subr.bf16.mxu0 0
  %241 = vmatpush1.bf16.msra.mxu0 0
  %242 = vmatprep.subr.bf16.mxu0 0
  %243 = vmatpush1.bf16.msra.mxu0 0
  %244 = vmatprep.subr.bf16.mxu0 0
  %245 = vmatpush1.bf16.msra.mxu0 0
  %246 = vmatprep.subr.bf16.mxu0 0
  %247 = vmatpush1.bf16.msra.mxu0 %v228
  %248 = vmatprep.subr.bf16.mxu0 0
  %249 = vmatpush1.bf16.msra.mxu0 %v227
  %250 = vmatprep.subr.bf16.mxu0 0
  %251 = vmatpush2.bf16.msra.mxu0 0
  %252 = vmatprep.subr.bf16.mxu0 0
  %253 = vmatpush2.bf16.msra.mxu0 0
  %254 = vmatprep.subr.bf16.mxu0 0
  %255 = vmatpush2.bf16.msra.mxu0 0
  %256 = vmatprep.subr.bf16.mxu0 0
  %257 = vmatpush2.bf16.msra.mxu0 0
  %258 = vmatprep.subr.bf16.mxu0 0
  %259 = vmatpush2.bf16.msra.mxu0 0
  %260 = vmatprep.subr.bf16.mxu0 0
  %261 = vmatpush2.bf16.msra.mxu0 0
  %262 = vmatprep.subr.bf16.mxu0 0
  %263 = vmatpush2.bf16.msra.mxu0 0
  %264 = vmatprep.subr.bf16.mxu0 0
  %265 = vmatpush2.bf16.msra.mxu0 0
  %266 = vmatprep.mubr.bf16.mxu0 0
  %267 = vmatmul.mubr.bf16.gmra.mxu0 %v232
  %v268 = vpop.f32.mrf.mxu0
  %v269 = vadd.f32 %v218, %v268
  %v270 = vpop.f32.mrf.mxu0
  %v271 = vpop.f32.mrf.mxu0
  %v272 = vadd.f32 %v218, %v271
  %v273 = vpop.f32.mrf.mxu0
  %274 = vdwg.mxu0
  %v275 = vld [vmem:[%s1 + $0x30] sm:$0xf]
  %v276 = vld [vmem:[%s1 + $0x34] sm:$0xf]
  %v277 = vld [vmem:[%s1 + $0x38] sm:$0xf]
  %v278 = vld [vmem:[%s1 + $0x3c] sm:$0xf]
  %v279 = vld [vmem:[%s3 + $0x9] sm:$0x1]
  %v280 = vlaneseq
  %v281 = vshrl.u32 %v280, 7
  %v282 = vsub.s32 0, %v281
  %v283 = vrot.slane %v279, %v282
  %v288 = vunpack.c.l.b16 %v275
  %v289 = vunpack.c.l.b16 %v276
  %v290 = vunpack.c.l.b16 %v277
  %v291 = vunpack.c.l.b16 %v278
  %v292 = vpack.c.b16 %v289, %v288
  %v293 = vpack.c.b16 %v291, %v290
  %296 = vmatprep.subr.bf16.mxu0 0
  %297 = vmatpush1.bf16.msra.mxu0 0
  %298 = vmatprep.subr.bf16.mxu0 0
  %299 = vmatpush1.bf16.msra.mxu0 0
  %300 = vmatprep.subr.bf16.mxu0 0
  %301 = vmatpush1.bf16.msra.mxu0 0
  %302 = vmatprep.subr.bf16.mxu0 0
  %303 = vmatpush1.bf16.msra.mxu0 0
  %304 = vmatprep.subr.bf16.mxu0 0
  %305 = vmatpush1.bf16.msra.mxu0 0
  %306 = vmatprep.subr.bf16.mxu0 0
  %307 = vmatpush1.bf16.msra.mxu0 0
  %308 = vmatprep.subr.bf16.mxu0 0
  %309 = vmatpush1.bf16.msra.mxu0 %v293
  %310 = vmatprep.subr.bf16.mxu0 0
  %311 = vmatpush1.bf16.msra.mxu0 %v292
  %312 = vmatprep.subr.bf16.mxu0 0
  %313 = vmatpush2.bf16.msra.mxu0 0
  %314 = vmatprep.subr.bf16.mxu0 0
  %315 = vmatpush2.bf16.msra.mxu0 0
  %316 = vmatprep.subr.bf16.mxu0 0
  %317 = vmatpush2.bf16.msra.mxu0 0
  %318 = vmatprep.subr.bf16.mxu0 0
  %319 = vmatpush2.bf16.msra.mxu0 0
  %320 = vmatprep.subr.bf16.mxu0 0
  %321 = vmatpush2.bf16.msra.mxu0 0
  %322 = vmatprep.subr.bf16.mxu0 0
  %323 = vmatpush2.bf16.msra.mxu0 0
  %324 = vmatprep.subr.bf16.mxu0 0
  %325 = vmatpush2.bf16.msra.mxu0 0
  %326 = vmatprep.subr.bf16.mxu0 0
  %327 = vmatpush2.bf16.msra.mxu0 0
  %328 = vmatprep.mubr.bf16.mxu0 0
  %329 = vmatmul.mubr.bf16.gmra.mxu0 %v232
  %v330 = vpop.f32.mrf.mxu0
  %v331 = vadd.f32 %v283, %v330
  %v332 = vpop.f32.mrf.mxu0
  %v333 = vpop.f32.mrf.mxu0
  %v334 = vadd.f32 %v283, %v333
  %v335 = vpop.f32.mrf.mxu0
  %336 = vdwg.mxu0
  %v337 = vld [vmem:[%s2 + $0x20] sm:$0xf]
  %v338 = vld [vmem:[%s2 + $0x28] sm:$0xf]
  %v339 = vld [vmem:[%s2 + $0x30] sm:$0xf]
  %v340 = vld [vmem:[%s2 + $0x38] sm:$0xf]
  %v341 = vld [vmem:[%s4 + $0x4] ss:$0 sm:$0xff]
  %v346 = vunpack.c.l.b16 %v337
  %v347 = vunpack.c.l.b16 %v338
  %v348 = vunpack.c.l.b16 %v339
  %v349 = vunpack.c.l.b16 %v340
  %v350 = vpack.c.b16 %v347, %v346
  %v351 = vpack.c.b16 %v349, %v348
  %354 = vmatprep.subr.bf16.mxu0 0
  %355 = vmatpush1.bf16.msra.mxu0 0
  %356 = vmatprep.subr.bf16.mxu0 0
  %357 = vmatpush1.bf16.msra.mxu0 0
  %358 = vmatprep.subr.bf16.mxu0 0
  %359 = vmatpush1.bf16.msra.mxu0 0
  %360 = vmatprep.subr.bf16.mxu0 0
  %361 = vmatpush1.bf16.msra.mxu0 0
  %362 = vmatprep.subr.bf16.mxu0 0
  %363 = vmatpush1.bf16.msra.mxu0 0
  %364 = vmatprep.subr.bf16.mxu0 0
  %365 = vmatpush1.bf16.msra.mxu0 0
  %366 = vmatprep.subr.bf16.mxu0 0
  %367 = vmatpush1.bf16.msra.mxu0 %v351
  %368 = vmatprep.subr.bf16.mxu0 0
  %369 = vmatpush1.bf16.msra.mxu0 %v350
  %370 = vmatprep.subr.bf16.mxu0 0
  %371 = vmatpush2.bf16.msra.mxu0 0
  %372 = vmatprep.subr.bf16.mxu0 0
  %373 = vmatpush2.bf16.msra.mxu0 0
  %374 = vmatprep.subr.bf16.mxu0 0
  %375 = vmatpush2.bf16.msra.mxu0 0
  %376 = vmatprep.subr.bf16.mxu0 0
  %377 = vmatpush2.bf16.msra.mxu0 0
  %378 = vmatprep.subr.bf16.mxu0 0
  %379 = vmatpush2.bf16.msra.mxu0 0
  %380 = vmatprep.subr.bf16.mxu0 0
  %381 = vmatpush2.bf16.msra.mxu0 0
  %382 = vmatprep.subr.bf16.mxu0 0
  %383 = vmatpush2.bf16.msra.mxu0 0
  %384 = vmatprep.subr.bf16.mxu0 0
  %385 = vmatpush2.bf16.msra.mxu0 0
  %386 = vmatprep.mubr.bf16.mxu0 0
  %387 = vmatmul.mubr.bf16.gmra.mxu0 %v232
  %v388 = vpop.f32.mrf.mxu0
  %v389 = vadd.f32 %v341, %v388
  %v390 = vpop.f32.mrf.mxu0
  %v391 = vpop.f32.mrf.mxu0
  %v392 = vadd.f32 %v341, %v391
  %v393 = vpop.f32.mrf.mxu0
  %394 = vdwg.mxu0
  %vm395 = vcmask 64512
  %v397 = vsel %vm395, %v269, 0
  %v400 = vsel %vm395, %v331, 0
  %402 = vmatprep.subr.mxu0 0.0
  %403 = vmatpush1.xpose.msra.mxu0 0.0
  %404 = vmatprep.subr.mxu0 0.0
  %405 = vmatpush1.xpose.msra.mxu0 0.0
  %406 = vmatprep.subr.mxu0 0.0
  %407 = vmatpush1.xpose.msra.mxu0 0.0
  %408 = vmatprep.subr.mxu0 0.0
  %409 = vmatpush1.xpose.msra.mxu0 0.0
  %410 = vmatprep.subr.mxu0 0.0
  %411 = vmatpush1.xpose.msra.mxu0 0.0
  %412 = vmatprep.subr.mxu0 0.0
  %413 = vmatpush1.xpose.msra.mxu0 0.0
  %414 = vmatprep.subr.mxu0 0.0
  %415 = vmatpush1.xpose.msra.mxu0 0.0
  %416 = vmatprep.subr.mxu0 0.0
  %417 = vmatpush1.xpose.msra.mxu0 0.0
  %418 = vmatprep.subr.mxu0 0.0
  %419 = vmatpush1.xpose.msra.mxu0 0.0
  %420 = vmatprep.subr.mxu0 0.0
  %421 = vmatpush1.xpose.msra.mxu0 0.0
  %422 = vmatprep.subr.mxu0 0.0
  %423 = vmatpush1.xpose.msra.mxu0 0.0
  %424 = vmatprep.subr.mxu0 0.0
  %425 = vmatpush1.xpose.msra.mxu0 0.0
  %426 = vmatprep.subr.mxu0 0.0
  %427 = vmatpush1.xpose.msra.mxu0 0.0
  %428 = vmatprep.subr.mxu0 0.0
  %429 = vmatpush1.xpose.msra.mxu0 0.0
  %430 = vmatprep.subr.mxu0 0.0
  %431 = vmatpush1.xpose.msra.mxu0 0.0
  %432 = vmatprep.subr.mxu0 0.0
  %433 = vmatpush1.xpose.msra.mxu0 %v400
  %434 = vmatprep.subr.mxu0 0.0
  %435 = vmatpush2.xpose.msra.mxu0 0.0
  %436 = vmatprep.subr.mxu0 0.0
  %437 = vmatpush2.xpose.msra.mxu0 0.0
  %438 = vmatprep.subr.mxu0 0.0
  %439 = vmatpush2.xpose.msra.mxu0 0.0
  %440 = vmatprep.subr.mxu0 0.0
  %441 = vmatpush2.xpose.msra.mxu0 0.0
  %442 = vmatprep.subr.mxu0 0.0
  %443 = vmatpush2.xpose.msra.mxu0 0.0
  %444 = vmatprep.subr.mxu0 0.0
  %445 = vmatpush2.xpose.msra.mxu0 0.0
  %446 = vmatprep.subr.mxu0 0.0
  %447 = vmatpush2.xpose.msra.mxu0 0.0
  %448 = vmatprep.subr.mxu0 0.0
  %449 = vmatpush2.xpose.msra.mxu0 0.0
  %450 = vmatprep.subr.mxu0 0.0
  %451 = vmatpush2.xpose.msra.mxu0 0.0
  %452 = vmatprep.subr.mxu0 0.0
  %453 = vmatpush2.xpose.msra.mxu0 0.0
  %454 = vmatprep.subr.mxu0 0.0
  %455 = vmatpush2.xpose.msra.mxu0 0.0
  %456 = vmatprep.subr.mxu0 0.0
  %457 = vmatpush2.xpose.msra.mxu0 0.0
  %458 = vmatprep.subr.mxu0 0.0
  %459 = vmatpush2.xpose.msra.mxu0 0.0
  %460 = vmatprep.subr.mxu0 0.0
  %461 = vmatpush2.xpose.msra.mxu0 0.0
  %462 = vmatprep.subr.mxu0 0.0
  %463 = vmatpush2.xpose.msra.mxu0 0.0
  %464 = vmatprep.subr.mxu0 0.0
  %465 = vmatpush2.xpose.msra.mxu0 0.0
  %466 = vmatprep.mubr.f32.mxu0 0.0
  %467 = vmatmul.mubr.f32.gmra.mxu0 %v397
  %v468 = vpop.f32.mrf.mxu0
  %v469 = vadd.f32 %v21, %v468
  %v470 = vpop.f32.mrf.mxu0
  %471 = vdwg.mxu0
  %v473 = vsel %vm395, %v272, 0
  %v476 = vsel %vm395, %v334, 0
  %478 = vmatprep.subr.mxu0 0.0
  %479 = vmatpush1.xpose.msra.mxu0 0.0
  %480 = vmatprep.subr.mxu0 0.0
  %481 = vmatpush1.xpose.msra.mxu0 0.0
  %482 = vmatprep.subr.mxu0 0.0
  %483 = vmatpush1.xpose.msra.mxu0 0.0
  %484 = vmatprep.subr.mxu0 0.0
  %485 = vmatpush1.xpose.msra.mxu0 0.0
  %486 = vmatprep.subr.mxu0 0.0
  %487 = vmatpush1.xpose.msra.mxu0 0.0
  %488 = vmatprep.subr.mxu0 0.0
  %489 = vmatpush1.xpose.msra.mxu0 0.0
  %490 = vmatprep.subr.mxu0 0.0
  %491 = vmatpush1.xpose.msra.mxu0 0.0
  %492 = vmatprep.subr.mxu0 0.0
  %493 = vmatpush1.xpose.msra.mxu0 0.0
  %494 = vmatprep.subr.mxu0 0.0
  %495 = vmatpush1.xpose.msra.mxu0 0.0
  %496 = vmatprep.subr.mxu0 0.0
  %497 = vmatpush1.xpose.msra.mxu0 0.0
  %498 = vmatprep.subr.mxu0 0.0
  %499 = vmatpush1.xpose.msra.mxu0 0.0
  %500 = vmatprep.subr.mxu0 0.0
  %501 = vmatpush1.xpose.msra.mxu0 0.0
  %502 = vmatprep.subr.mxu0 0.0
  %503 = vmatpush1.xpose.msra.mxu0 0.0
  %504 = vmatprep.subr.mxu0 0.0
  %505 = vmatpush1.xpose.msra.mxu0 0.0
  %506 = vmatprep.subr.mxu0 0.0
  %507 = vmatpush1.xpose.msra.mxu0 0.0
  %508 = vmatprep.subr.mxu0 0.0
  %509 = vmatpush1.xpose.msra.mxu0 %v476
  %510 = vmatprep.subr.mxu0 0.0
  %511 = vmatpush2.xpose.msra.mxu0 0.0
  %512 = vmatprep.subr.mxu0 0.0
  %513 = vmatpush2.xpose.msra.mxu0 0.0
  %514 = vmatprep.subr.mxu0 0.0
  %515 = vmatpush2.xpose.msra.mxu0 0.0
  %516 = vmatprep.subr.mxu0 0.0
  %517 = vmatpush2.xpose.msra.mxu0 0.0
  %518 = vmatprep.subr.mxu0 0.0
  %519 = vmatpush2.xpose.msra.mxu0 0.0
  %520 = vmatprep.subr.mxu0 0.0
  %521 = vmatpush2.xpose.msra.mxu0 0.0
  %522 = vmatprep.subr.mxu0 0.0
  %523 = vmatpush2.xpose.msra.mxu0 0.0
  %524 = vmatprep.subr.mxu0 0.0
  %525 = vmatpush2.xpose.msra.mxu0 0.0
  %526 = vmatprep.subr.mxu0 0.0
  %527 = vmatpush2.xpose.msra.mxu0 0.0
  %528 = vmatprep.subr.mxu0 0.0
  %529 = vmatpush2.xpose.msra.mxu0 0.0
  %530 = vmatprep.subr.mxu0 0.0
  %531 = vmatpush2.xpose.msra.mxu0 0.0
  %532 = vmatprep.subr.mxu0 0.0
  %533 = vmatpush2.xpose.msra.mxu0 0.0
  %534 = vmatprep.subr.mxu0 0.0
  %535 = vmatpush2.xpose.msra.mxu0 0.0
  %536 = vmatprep.subr.mxu0 0.0
  %537 = vmatpush2.xpose.msra.mxu0 0.0
  %538 = vmatprep.subr.mxu0 0.0
  %539 = vmatpush2.xpose.msra.mxu0 0.0
  %540 = vmatprep.subr.mxu0 0.0
  %541 = vmatpush2.xpose.msra.mxu0 0.0
  %542 = vmatprep.mubr.f32.mxu0 0.0
  %543 = vmatmul.mubr.f32.gmra.mxu0 %v473
  %v544 = vpop.f32.mrf.mxu0
  %v545 = vadd.f32 %v22, %v544
  %v546 = vpop.f32.mrf.mxu0
  %547 = vdwg.mxu0
  %v548 = vsel %vm395, %v469, -inf
  %549 = vmax.xlane.f32.xlu0 %v548
  %v550 = vpop.xlane.xlu0 %549
  %v551 = vsel %vm395, %v545, -inf
  %552 = vmax.xlane.f32.xlu0 %v551
  %v553 = vpop.xlane.xlu0 %552
  %v554 = vsub.f32 %v469, %v550
  %v555 = vsub.f32 %v545, %v553
  %v556 = vmul.f32 %v554, 1.442695
  %v557 = vpow.pop %v556
  %v558 = vmul.f32 %v555, 1.442695
  %v559 = vpow.pop %v558
  %v560 = vsel %vm395, %v557, 0.0
  %561 = vadd.xlane.f32.xlu0 %v560
  %v562 = vpop.xlane.xlu0 %561
  %v563 = vsel %vm395, %v559, 0.0
  %564 = vadd.xlane.f32.xlu0 %v563
  %v565 = vpop.xlane.xlu0 %564
  %v566 = vrcp.pop %v562
  %v567 = vrcp.pop %v565
  %v568 = vmul.f32 %v557, %v566
  %v569 = vmul.f32 %v559, %v567
  %570 = vrot.lane.b32.xlu0 %v269, 120
  %v571 = vpop.permute.xlu0 %570
  %572 = vrot.lane.b32.xlu0 %v331, 120
  %v573 = vpop.permute.xlu0 %572
  %v574 = vsel %vm395, %v571, 0
  %v576 = vsel %vm395, %v573, 0
  %578 = vmatprep.subr.mxu0 0.0
  %579 = vmatpush1.xpose.msra.mxu0 0.0
  %580 = vmatprep.subr.mxu0 0.0
  %581 = vmatpush1.xpose.msra.mxu0 0.0
  %582 = vmatprep.subr.mxu0 0.0
  %583 = vmatpush1.xpose.msra.mxu0 0.0
  %584 = vmatprep.subr.mxu0 0.0
  %585 = vmatpush1.xpose.msra.mxu0 0.0
  %586 = vmatprep.subr.mxu0 0.0
  %587 = vmatpush1.xpose.msra.mxu0 0.0
  %588 = vmatprep.subr.mxu0 0.0
  %589 = vmatpush1.xpose.msra.mxu0 0.0
  %590 = vmatprep.subr.mxu0 0.0
  %591 = vmatpush1.xpose.msra.mxu0 0.0
  %592 = vmatprep.subr.mxu0 0.0
  %593 = vmatpush1.xpose.msra.mxu0 0.0
  %594 = vmatprep.subr.mxu0 0.0
  %595 = vmatpush1.xpose.msra.mxu0 0.0
  %596 = vmatprep.subr.mxu0 0.0
  %597 = vmatpush1.xpose.msra.mxu0 0.0
  %598 = vmatprep.subr.mxu0 0.0
  %599 = vmatpush1.xpose.msra.mxu0 0.0
  %600 = vmatprep.subr.mxu0 0.0
  %601 = vmatpush1.xpose.msra.mxu0 0.0
  %602 = vmatprep.subr.mxu0 0.0
  %603 = vmatpush1.xpose.msra.mxu0 0.0
  %604 = vmatprep.subr.mxu0 0.0
  %605 = vmatpush1.xpose.msra.mxu0 0.0
  %606 = vmatprep.subr.mxu0 0.0
  %607 = vmatpush1.xpose.msra.mxu0 0.0
  %608 = vmatprep.subr.mxu0 0.0
  %609 = vmatpush1.xpose.msra.mxu0 %v576
  %610 = vmatprep.subr.mxu0 0.0
  %611 = vmatpush2.xpose.msra.mxu0 0.0
  %612 = vmatprep.subr.mxu0 0.0
  %613 = vmatpush2.xpose.msra.mxu0 0.0
  %614 = vmatprep.subr.mxu0 0.0
  %615 = vmatpush2.xpose.msra.mxu0 0.0
  %616 = vmatprep.subr.mxu0 0.0
  %617 = vmatpush2.xpose.msra.mxu0 0.0
  %618 = vmatprep.subr.mxu0 0.0
  %619 = vmatpush2.xpose.msra.mxu0 0.0
  %620 = vmatprep.subr.mxu0 0.0
  %621 = vmatpush2.xpose.msra.mxu0 0.0
  %622 = vmatprep.subr.mxu0 0.0
  %623 = vmatpush2.xpose.msra.mxu0 0.0
  %624 = vmatprep.subr.mxu0 0.0
  %625 = vmatpush2.xpose.msra.mxu0 0.0
  %626 = vmatprep.subr.mxu0 0.0
  %627 = vmatpush2.xpose.msra.mxu0 0.0
  %628 = vmatprep.subr.mxu0 0.0
  %629 = vmatpush2.xpose.msra.mxu0 0.0
  %630 = vmatprep.subr.mxu0 0.0
  %631 = vmatpush2.xpose.msra.mxu0 0.0
  %632 = vmatprep.subr.mxu0 0.0
  %633 = vmatpush2.xpose.msra.mxu0 0.0
  %634 = vmatprep.subr.mxu0 0.0
  %635 = vmatpush2.xpose.msra.mxu0 0.0
  %636 = vmatprep.subr.mxu0 0.0
  %637 = vmatpush2.xpose.msra.mxu0 0.0
  %638 = vmatprep.subr.mxu0 0.0
  %639 = vmatpush2.xpose.msra.mxu0 0.0
  %640 = vmatprep.subr.mxu0 0.0
  %641 = vmatpush2.xpose.msra.mxu0 0.0
  %642 = vmatprep.mubr.f32.mxu0 0.0
  %643 = vmatmul.mubr.f32.gmra.mxu0 %v574
  %v644 = vpop.f32.mrf.mxu0
  %v645 = vadd.f32 %v21, %v644
  %v646 = vpop.f32.mrf.mxu0
  %647 = vdwg.mxu0
  %648 = vrot.lane.b32.xlu0 %v272, 120
  %v649 = vpop.permute.xlu0 %648
  %650 = vrot.lane.b32.xlu0 %v334, 120
  %v651 = vpop.permute.xlu0 %650
  %v652 = vsel %vm395, %v649, 0
  %v654 = vsel %vm395, %v651, 0
  %656 = vmatprep.subr.mxu0 0.0
  %657 = vmatpush1.xpose.msra.mxu0 0.0
  %658 = vmatprep.subr.mxu0 0.0
  %659 = vmatpush1.xpose.msra.mxu0 0.0
  %660 = vmatprep.subr.mxu0 0.0
  %661 = vmatpush1.xpose.msra.mxu0 0.0
  %662 = vmatprep.subr.mxu0 0.0
  %663 = vmatpush1.xpose.msra.mxu0 0.0
  %664 = vmatprep.subr.mxu0 0.0
  %665 = vmatpush1.xpose.msra.mxu0 0.0
  %666 = vmatprep.subr.mxu0 0.0
  %667 = vmatpush1.xpose.msra.mxu0 0.0
  %668 = vmatprep.subr.mxu0 0.0
  %669 = vmatpush1.xpose.msra.mxu0 0.0
  %670 = vmatprep.subr.mxu0 0.0
  %671 = vmatpush1.xpose.msra.mxu0 0.0
  %672 = vmatprep.subr.mxu0 0.0
  %673 = vmatpush1.xpose.msra.mxu0 0.0
  %674 = vmatprep.subr.mxu0 0.0
  %675 = vmatpush1.xpose.msra.mxu0 0.0
  %676 = vmatprep.subr.mxu0 0.0
  %677 = vmatpush1.xpose.msra.mxu0 0.0
  %678 = vmatprep.subr.mxu0 0.0
  %679 = vmatpush1.xpose.msra.mxu0 0.0
  %680 = vmatprep.subr.mxu0 0.0
  %681 = vmatpush1.xpose.msra.mxu0 0.0
  %682 = vmatprep.subr.mxu0 0.0
  %683 = vmatpush1.xpose.msra.mxu0 0.0
  %684 = vmatprep.subr.mxu0 0.0
  %685 = vmatpush1.xpose.msra.mxu0 0.0
  %686 = vmatprep.subr.mxu0 0.0
  %687 = vmatpush1.xpose.msra.mxu0 %v654
  %688 = vmatprep.subr.mxu0 0.0
  %689 = vmatpush2.xpose.msra.mxu0 0.0
  %690 = vmatprep.subr.mxu0 0.0
  %691 = vmatpush2.xpose.msra.mxu0 0.0
  %692 = vmatprep.subr.mxu0 0.0
  %693 = vmatpush2.xpose.msra.mxu0 0.0
  %694 = vmatprep.subr.mxu0 0.0
  %695 = vmatpush2.xpose.msra.mxu0 0.0
  %696 = vmatprep.subr.mxu0 0.0
  %697 = vmatpush2.xpose.msra.mxu0 0.0
  %698 = vmatprep.subr.mxu0 0.0
  %699 = vmatpush2.xpose.msra.mxu0 0.0
  %700 = vmatprep.subr.mxu0 0.0
  %701 = vmatpush2.xpose.msra.mxu0 0.0
  %702 = vmatprep.subr.mxu0 0.0
  %703 = vmatpush2.xpose.msra.mxu0 0.0
  %704 = vmatprep.subr.mxu0 0.0
  %705 = vmatpush2.xpose.msra.mxu0 0.0
  %706 = vmatprep.subr.mxu0 0.0
  %707 = vmatpush2.xpose.msra.mxu0 0.0
  %708 = vmatprep.subr.mxu0 0.0
  %709 = vmatpush2.xpose.msra.mxu0 0.0
  %710 = vmatprep.subr.mxu0 0.0
  %711 = vmatpush2.xpose.msra.mxu0 0.0
  %712 = vmatprep.subr.mxu0 0.0
  %713 = vmatpush2.xpose.msra.mxu0 0.0
  %714 = vmatprep.subr.mxu0 0.0
  %715 = vmatpush2.xpose.msra.mxu0 0.0
  %716 = vmatprep.subr.mxu0 0.0
  %717 = vmatpush2.xpose.msra.mxu0 0.0
  %718 = vmatprep.subr.mxu0 0.0
  %719 = vmatpush2.xpose.msra.mxu0 0.0
  %720 = vmatprep.mubr.f32.mxu0 0.0
  %721 = vmatmul.mubr.f32.gmra.mxu0 %v652
  %v722 = vpop.f32.mrf.mxu0
  %v723 = vadd.f32 %v22, %v722
  %v724 = vpop.f32.mrf.mxu0
  %725 = vdwg.mxu0
  %v726 = vsel %vm395, %v645, -inf
  %727 = vmax.xlane.f32.xlu0 %v726
  %v728 = vpop.xlane.xlu0 %727
  %v729 = vsel %vm395, %v723, -inf
  %730 = vmax.xlane.f32.xlu0 %v729
  %v731 = vpop.xlane.xlu0 %730
  %v732 = vsub.f32 %v645, %v728
  %v733 = vsub.f32 %v723, %v731
  %v734 = vmul.f32 %v732, 1.442695
  %v735 = vpow.pop %v734
  %v736 = vmul.f32 %v733, 1.442695
  %v737 = vpow.pop %v736
  %v738 = vsel %vm395, %v735, 0.0
  %739 = vadd.xlane.f32.xlu0 %v738
  %v740 = vpop.xlane.xlu0 %739
  %v741 = vsel %vm395, %v737, 0.0
  %742 = vadd.xlane.f32.xlu0 %v741
  %v743 = vpop.xlane.xlu0 %742
  %v744 = vrcp.pop %v740
  %v745 = vrcp.pop %v743
  %v746 = vmul.f32 %v735, %v744
  %v747 = vmul.f32 %v737, %v745
  %749 = vrot.lane.b32.xlu0 %v389, 96
  %v750 = vpop.permute.xlu0 %749
  %v753 = vsel %vm395, %v746, 0
  %755 = vmatprep.subr.mxu0 0.0
  %756 = vmatpush1.msra.mxu0 0.0
  %757 = vmatprep.subr.mxu0 0.0
  %758 = vmatpush1.msra.mxu0 0.0
  %759 = vmatprep.subr.mxu0 0.0
  %760 = vmatpush1.msra.mxu0 0.0
  %761 = vmatprep.subr.mxu0 0.0
  %762 = vmatpush1.msra.mxu0 0.0
  %763 = vmatprep.subr.mxu0 0.0
  %764 = vmatpush1.msra.mxu0 0.0
  %765 = vmatprep.subr.mxu0 0.0
  %766 = vmatpush1.msra.mxu0 0.0
  %767 = vmatprep.subr.mxu0 0.0
  %768 = vmatpush1.msra.mxu0 0.0
  %769 = vmatprep.subr.mxu0 0.0
  %770 = vmatpush1.msra.mxu0 0.0
  %771 = vmatprep.subr.mxu0 0.0
  %772 = vmatpush1.msra.mxu0 0.0
  %773 = vmatprep.subr.mxu0 0.0
  %774 = vmatpush1.msra.mxu0 0.0
  %775 = vmatprep.subr.mxu0 0.0
  %776 = vmatpush1.msra.mxu0 0.0
  %777 = vmatprep.subr.mxu0 0.0
  %778 = vmatpush1.msra.mxu0 0.0
  %779 = vmatprep.subr.mxu0 0.0
  %780 = vmatpush1.msra.mxu0 0.0
  %781 = vmatprep.subr.mxu0 0.0
  %782 = vmatpush1.msra.mxu0 0.0
  %783 = vmatprep.subr.mxu0 0.0
  %784 = vmatpush1.msra.mxu0 0.0
  %785 = vmatprep.subr.mxu0 0.0
  %786 = vmatpush1.msra.mxu0 %v750
  %787 = vmatprep.subr.mxu0 0.0
  %788 = vmatpush2.msra.mxu0 0.0
  %789 = vmatprep.subr.mxu0 0.0
  %790 = vmatpush2.msra.mxu0 0.0
  %791 = vmatprep.subr.mxu0 0.0
  %792 = vmatpush2.msra.mxu0 0.0
  %793 = vmatprep.subr.mxu0 0.0
  %794 = vmatpush2.msra.mxu0 0.0
  %795 = vmatprep.subr.mxu0 0.0
  %796 = vmatpush2.msra.mxu0 0.0
  %797 = vmatprep.subr.mxu0 0.0
  %798 = vmatpush2.msra.mxu0 0.0
  %799 = vmatprep.subr.mxu0 0.0
  %800 = vmatpush2.msra.mxu0 0.0
  %801 = vmatprep.subr.mxu0 0.0
  %802 = vmatpush2.msra.mxu0 0.0
  %803 = vmatprep.subr.mxu0 0.0
  %804 = vmatpush2.msra.mxu0 0.0
  %805 = vmatprep.subr.mxu0 0.0
  %806 = vmatpush2.msra.mxu0 0.0
  %807 = vmatprep.subr.mxu0 0.0
  %808 = vmatpush2.msra.mxu0 0.0
  %809 = vmatprep.subr.mxu0 0.0
  %810 = vmatpush2.msra.mxu0 0.0
  %811 = vmatprep.subr.mxu0 0.0
  %812 = vmatpush2.msra.mxu0 0.0
  %813 = vmatprep.subr.mxu0 0.0
  %814 = vmatpush2.msra.mxu0 0.0
  %815 = vmatprep.subr.mxu0 0.0
  %816 = vmatpush2.msra.mxu0 0.0
  %817 = vmatprep.subr.mxu0 0.0
  %818 = vmatpush2.msra.mxu0 0.0
  %819 = vmatprep.mubr.f32.mxu0 0.0
  %820 = vmatmul.mubr.f32.gmra.mxu0 %v753
  %v821 = vpop.f32.mrf.mxu0
  %v822 = vadd.f32 0.0, %v821
  %v823 = vpop.f32.mrf.mxu0
  %824 = vdwg.mxu0
  %826 = vrot.lane.b32.xlu0 %v392, 96
  %v827 = vpop.permute.xlu0 %826
  %v830 = vsel %vm395, %v747, 0
  %832 = vmatprep.subr.mxu0 0.0
  %833 = vmatpush1.msra.mxu0 0.0
  %834 = vmatprep.subr.mxu0 0.0
  %835 = vmatpush1.msra.mxu0 0.0
  %836 = vmatprep.subr.mxu0 0.0
  %837 = vmatpush1.msra.mxu0 0.0
  %838 = vmatprep.subr.mxu0 0.0
  %839 = vmatpush1.msra.mxu0 0.0
  %840 = vmatprep.subr.mxu0 0.0
  %841 = vmatpush1.msra.mxu0 0.0
  %842 = vmatprep.subr.mxu0 0.0
  %843 = vmatpush1.msra.mxu0 0.0
  %844 = vmatprep.subr.mxu0 0.0
  %845 = vmatpush1.msra.mxu0 0.0
  %846 = vmatprep.subr.mxu0 0.0
  %847 = vmatpush1.msra.mxu0 0.0
  %848 = vmatprep.subr.mxu0 0.0
  %849 = vmatpush1.msra.mxu0 0.0
  %850 = vmatprep.subr.mxu0 0.0
  %851 = vmatpush1.msra.mxu0 0.0
  %852 = vmatprep.subr.mxu0 0.0
  %853 = vmatpush1.msra.mxu0 0.0
  %854 = vmatprep.subr.mxu0 0.0
  %855 = vmatpush1.msra.mxu0 0.0
  %856 = vmatprep.subr.mxu0 0.0
  %857 = vmatpush1.msra.mxu0 0.0
  %858 = vmatprep.subr.mxu0 0.0
  %859 = vmatpush1.msra.mxu0 0.0
  %860 = vmatprep.subr.mxu0 0.0
  %861 = vmatpush1.msra.mxu0 0.0
  %862 = vmatprep.subr.mxu0 0.0
  %863 = vmatpush1.msra.mxu0 %v827
  %864 = vmatprep.subr.mxu0 0.0
  %865 = vmatpush2.msra.mxu0 0.0
  %866 = vmatprep.subr.mxu0 0.0
  %867 = vmatpush2.msra.mxu0 0.0
  %868 = vmatprep.subr.mxu0 0.0
  %869 = vmatpush2.msra.mxu0 0.0
  %870 = vmatprep.subr.mxu0 0.0
  %871 = vmatpush2.msra.mxu0 0.0
  %872 = vmatprep.subr.mxu0 0.0
  %873 = vmatpush2.msra.mxu0 0.0
  %874 = vmatprep.subr.mxu0 0.0
  %875 = vmatpush2.msra.mxu0 0.0
  %876 = vmatprep.subr.mxu0 0.0
  %877 = vmatpush2.msra.mxu0 0.0
  %878 = vmatprep.subr.mxu0 0.0
  %879 = vmatpush2.msra.mxu0 0.0
  %880 = vmatprep.subr.mxu0 0.0
  %881 = vmatpush2.msra.mxu0 0.0
  %882 = vmatprep.subr.mxu0 0.0
  %883 = vmatpush2.msra.mxu0 0.0
  %884 = vmatprep.subr.mxu0 0.0
  %885 = vmatpush2.msra.mxu0 0.0
  %886 = vmatprep.subr.mxu0 0.0
  %887 = vmatpush2.msra.mxu0 0.0
  %888 = vmatprep.subr.mxu0 0.0
  %889 = vmatpush2.msra.mxu0 0.0
  %890 = vmatprep.subr.mxu0 0.0
  %891 = vmatpush2.msra.mxu0 0.0
  %892 = vmatprep.subr.mxu0 0.0
  %893 = vmatpush2.msra.mxu0 0.0
  %894 = vmatprep.subr.mxu0 0.0
  %895 = vmatpush2.msra.mxu0 0.0
  %896 = vmatprep.mubr.f32.mxu0 0.0
  %897 = vmatmul.mubr.f32.gmra.mxu0 %v830
  %v898 = vpop.f32.mrf.mxu0
  %v899 = vadd.f32 0.0, %v898
  %v900 = vpop.f32.mrf.mxu0
  %901 = vdwg.mxu0
  %v903 = vsel %vm395, %v568, 0
  %905 = vmatprep.subr.mxu0 0.0
  %906 = vmatpush1.msra.mxu0 0.0
  %907 = vmatprep.subr.mxu0 0.0
  %908 = vmatpush1.msra.mxu0 0.0
  %909 = vmatprep.subr.mxu0 0.0
  %910 = vmatpush1.msra.mxu0 0.0
  %911 = vmatprep.subr.mxu0 0.0
  %912 = vmatpush1.msra.mxu0 0.0
  %913 = vmatprep.subr.mxu0 0.0
  %914 = vmatpush1.msra.mxu0 0.0
  %915 = vmatprep.subr.mxu0 0.0
  %916 = vmatpush1.msra.mxu0 0.0
  %917 = vmatprep.subr.mxu0 0.0
  %918 = vmatpush1.msra.mxu0 0.0
  %919 = vmatprep.subr.mxu0 0.0
  %920 = vmatpush1.msra.mxu0 0.0
  %921 = vmatprep.subr.mxu0 0.0
  %922 = vmatpush1.msra.mxu0 0.0
  %923 = vmatprep.subr.mxu0 0.0
  %924 = vmatpush1.msra.mxu0 0.0
  %925 = vmatprep.subr.mxu0 0.0
  %926 = vmatpush1.msra.mxu0 0.0
  %927 = vmatprep.subr.mxu0 0.0
  %928 = vmatpush1.msra.mxu0 0.0
  %929 = vmatprep.subr.mxu0 0.0
  %930 = vmatpush1.msra.mxu0 0.0
  %931 = vmatprep.subr.mxu0 0.0
  %932 = vmatpush1.msra.mxu0 0.0
  %933 = vmatprep.subr.mxu0 0.0
  %934 = vmatpush1.msra.mxu0 0.0
  %935 = vmatprep.subr.mxu0 0.0
  %936 = vmatpush1.msra.mxu0 %v389
  %937 = vmatprep.subr.mxu0 0.0
  %938 = vmatpush2.msra.mxu0 0.0
  %939 = vmatprep.subr.mxu0 0.0
  %940 = vmatpush2.msra.mxu0 0.0
  %941 = vmatprep.subr.mxu0 0.0
  %942 = vmatpush2.msra.mxu0 0.0
  %943 = vmatprep.subr.mxu0 0.0
  %944 = vmatpush2.msra.mxu0 0.0
  %945 = vmatprep.subr.mxu0 0.0
  %946 = vmatpush2.msra.mxu0 0.0
  %947 = vmatprep.subr.mxu0 0.0
  %948 = vmatpush2.msra.mxu0 0.0
  %949 = vmatprep.subr.mxu0 0.0
  %950 = vmatpush2.msra.mxu0 0.0
  %951 = vmatprep.subr.mxu0 0.0
  %952 = vmatpush2.msra.mxu0 0.0
  %953 = vmatprep.subr.mxu0 0.0
  %954 = vmatpush2.msra.mxu0 0.0
  %955 = vmatprep.subr.mxu0 0.0
  %956 = vmatpush2.msra.mxu0 0.0
  %957 = vmatprep.subr.mxu0 0.0
  %958 = vmatpush2.msra.mxu0 0.0
  %959 = vmatprep.subr.mxu0 0.0
  %960 = vmatpush2.msra.mxu0 0.0
  %961 = vmatprep.subr.mxu0 0.0
  %962 = vmatpush2.msra.mxu0 0.0
  %963 = vmatprep.subr.mxu0 0.0
  %964 = vmatpush2.msra.mxu0 0.0
  %965 = vmatprep.subr.mxu0 0.0
  %966 = vmatpush2.msra.mxu0 0.0
  %967 = vmatprep.subr.mxu0 0.0
  %968 = vmatpush2.msra.mxu0 0.0
  %969 = vmatprep.mubr.f32.mxu0 0.0
  %970 = vmatmul.mubr.f32.gmra.mxu0 %v903
  %v971 = vpop.f32.mrf.mxu0
  %v972 = vadd.f32 %v822, %v971
  %v973 = vpop.f32.mrf.mxu0
  %974 = vdwg.mxu0
  %v976 = vsel %vm395, %v569, 0
  %978 = vmatprep.subr.mxu0 0.0
  %979 = vmatpush1.msra.mxu0 0.0
  %980 = vmatprep.subr.mxu0 0.0
  %981 = vmatpush1.msra.mxu0 0.0
  %982 = vmatprep.subr.mxu0 0.0
  %983 = vmatpush1.msra.mxu0 0.0
  %984 = vmatprep.subr.mxu0 0.0
  %985 = vmatpush1.msra.mxu0 0.0
  %986 = vmatprep.subr.mxu0 0.0
  %987 = vmatpush1.msra.mxu0 0.0
  %988 = vmatprep.subr.mxu0 0.0
  %989 = vmatpush1.msra.mxu0 0.0
  %990 = vmatprep.subr.mxu0 0.0
  %991 = vmatpush1.msra.mxu0 0.0
  %992 = vmatprep.subr.mxu0 0.0
  %993 = vmatpush1.msra.mxu0 0.0
  %994 = vmatprep.subr.mxu0 0.0
  %995 = vmatpush1.msra.mxu0 0.0
  %996 = vmatprep.subr.mxu0 0.0
  %997 = vmatpush1.msra.mxu0 0.0
  %998 = vmatprep.subr.mxu0 0.0
  %999 = vmatpush1.msra.mxu0 0.0
  %1000 = vmatprep.subr.mxu0 0.0
  %1001 = vmatpush1.msra.mxu0 0.0
  %1002 = vmatprep.subr.mxu0 0.0
  %1003 = vmatpush1.msra.mxu0 0.0
  %1004 = vmatprep.subr.mxu0 0.0
  %1005 = vmatpush1.msra.mxu0 0.0
  %1006 = vmatprep.subr.mxu0 0.0
  %1007 = vmatpush1.msra.mxu0 0.0
  %1008 = vmatprep.subr.mxu0 0.0
  %1009 = vmatpush1.msra.mxu0 %v392
  %1010 = vmatprep.subr.mxu0 0.0
  %1011 = vmatpush2.msra.mxu0 0.0
  %1012 = vmatprep.subr.mxu0 0.0
  %1013 = vmatpush2.msra.mxu0 0.0
  %1014 = vmatprep.subr.mxu0 0.0
  %1015 = vmatpush2.msra.mxu0 0.0
  %1016 = vmatprep.subr.mxu0 0.0
  %1017 = vmatpush2.msra.mxu0 0.0
  %1018 = vmatprep.subr.mxu0 0.0
  %1019 = vmatpush2.msra.mxu0 0.0
  %1020 = vmatprep.subr.mxu0 0.0
  %1021 = vmatpush2.msra.mxu0 0.0
  %1022 = vmatprep.subr.mxu0 0.0
  %1023 = vmatpush2.msra.mxu0 0.0
  %1024 = vmatprep.subr.mxu0 0.0
  %1025 = vmatpush2.msra.mxu0 0.0
  %1026 = vmatprep.subr.mxu0 0.0
  %1027 = vmatpush2.msra.mxu0 0.0
  %1028 = vmatprep.subr.mxu0 0.0
  %1029 = vmatpush2.msra.mxu0 0.0
  %1030 = vmatprep.subr.mxu0 0.0
  %1031 = vmatpush2.msra.mxu0 0.0
  %1032 = vmatprep.subr.mxu0 0.0
  %1033 = vmatpush2.msra.mxu0 0.0
  %1034 = vmatprep.subr.mxu0 0.0
  %1035 = vmatpush2.msra.mxu0 0.0
  %1036 = vmatprep.subr.mxu0 0.0
  %1037 = vmatpush2.msra.mxu0 0.0
  %1038 = vmatprep.subr.mxu0 0.0
  %1039 = vmatpush2.msra.mxu0 0.0
  %1040 = vmatprep.subr.mxu0 0.0
  %1041 = vmatpush2.msra.mxu0 0.0
  %1042 = vmatprep.mubr.f32.mxu0 0.0
  %1043 = vmatmul.mubr.f32.gmra.mxu0 %v976
  %v1044 = vpop.f32.mrf.mxu0
  %v1045 = vadd.f32 %v899, %v1044
  %v1046 = vpop.f32.mrf.mxu0
  %1047 = vdwg.mxu0
  %1048 = vrot.lane.b32.xlu0 %v269, 112
  %v1049 = vpop.permute.xlu0 %1048
  %1050 = vrot.lane.b32.xlu0 %v331, 112
  %v1051 = vpop.permute.xlu0 %1050
  %v1052 = vsel %vm395, %v1049, 0
  %v1054 = vsel %vm395, %v1051, 0
  %1056 = vmatprep.subr.mxu0 0.0
  %1057 = vmatpush1.xpose.msra.mxu0 0.0
  %1058 = vmatprep.subr.mxu0 0.0
  %1059 = vmatpush1.xpose.msra.mxu0 0.0
  %1060 = vmatprep.subr.mxu0 0.0
  %1061 = vmatpush1.xpose.msra.mxu0 0.0
  %1062 = vmatprep.subr.mxu0 0.0
  %1063 = vmatpush1.xpose.msra.mxu0 0.0
  %1064 = vmatprep.subr.mxu0 0.0
  %1065 = vmatpush1.xpose.msra.mxu0 0.0
  %1066 = vmatprep.subr.mxu0 0.0
  %1067 = vmatpush1.xpose.msra.mxu0 0.0
  %1068 = vmatprep.subr.mxu0 0.0
  %1069 = vmatpush1.xpose.msra.mxu0 0.0
  %1070 = vmatprep.subr.mxu0 0.0
  %1071 = vmatpush1.xpose.msra.mxu0 0.0
  %1072 = vmatprep.subr.mxu0 0.0
  %1073 = vmatpush1.xpose.msra.mxu0 0.0
  %1074 = vmatprep.subr.mxu0 0.0
  %1075 = vmatpush1.xpose.msra.mxu0 0.0
  %1076 = vmatprep.subr.mxu0 0.0
  %1077 = vmatpush1.xpose.msra.mxu0 0.0
  %1078 = vmatprep.subr.mxu0 0.0
  %1079 = vmatpush1.xpose.msra.mxu0 0.0
  %1080 = vmatprep.subr.mxu0 0.0
  %1081 = vmatpush1.xpose.msra.mxu0 0.0
  %1082 = vmatprep.subr.mxu0 0.0
  %1083 = vmatpush1.xpose.msra.mxu0 0.0
  %1084 = vmatprep.subr.mxu0 0.0
  %1085 = vmatpush1.xpose.msra.mxu0 0.0
  %1086 = vmatprep.subr.mxu0 0.0
  %1087 = vmatpush1.xpose.msra.mxu0 %v1054
  %1088 = vmatprep.subr.mxu0 0.0
  %1089 = vmatpush2.xpose.msra.mxu0 0.0
  %1090 = vmatprep.subr.mxu0 0.0
  %1091 = vmatpush2.xpose.msra.mxu0 0.0
  %1092 = vmatprep.subr.mxu0 0.0
  %1093 = vmatpush2.xpose.msra.mxu0 0.0
  %1094 = vmatprep.subr.mxu0 0.0
  %1095 = vmatpush2.xpose.msra.mxu0 0.0
  %1096 = vmatprep.subr.mxu0 0.0
  %1097 = vmatpush2.xpose.msra.mxu0 0.0
  %1098 = vmatprep.subr.mxu0 0.0
  %1099 = vmatpush2.xpose.msra.mxu0 0.0
  %1100 = vmatprep.subr.mxu0 0.0
  %1101 = vmatpush2.xpose.msra.mxu0 0.0
  %1102 = vmatprep.subr.mxu0 0.0
  %1103 = vmatpush2.xpose.msra.mxu0 0.0
  %1104 = vmatprep.subr.mxu0 0.0
  %1105 = vmatpush2.xpose.msra.mxu0 0.0
  %1106 = vmatprep.subr.mxu0 0.0
  %1107 = vmatpush2.xpose.msra.mxu0 0.0
  %1108 = vmatprep.subr.mxu0 0.0
  %1109 = vmatpush2.xpose.msra.mxu0 0.0
  %1110 = vmatprep.subr.mxu0 0.0
  %1111 = vmatpush2.xpose.msra.mxu0 0.0
  %1112 = vmatprep.subr.mxu0 0.0
  %1113 = vmatpush2.xpose.msra.mxu0 0.0
  %1114 = vmatprep.subr.mxu0 0.0
  %1115 = vmatpush2.xpose.msra.mxu0 0.0
  %1116 = vmatprep.subr.mxu0 0.0
  %1117 = vmatpush2.xpose.msra.mxu0 0.0
  %1118 = vmatprep.subr.mxu0 0.0
  %1119 = vmatpush2.xpose.msra.mxu0 0.0
  %1120 = vmatprep.mubr.f32.mxu0 0.0
  %1121 = vmatmul.mubr.f32.gmra.mxu0 %v1052
  %v1122 = vpop.f32.mrf.mxu0
  %v1123 = vadd.f32 %v21, %v1122
  %v1124 = vpop.f32.mrf.mxu0
  %1125 = vdwg.mxu0
  %1126 = vrot.lane.b32.xlu0 %v272, 112
  %v1127 = vpop.permute.xlu0 %1126
  %1128 = vrot.lane.b32.xlu0 %v334, 112
  %v1129 = vpop.permute.xlu0 %1128
  %v1130 = vsel %vm395, %v1127, 0
  %v1132 = vsel %vm395, %v1129, 0
  %1134 = vmatprep.subr.mxu0 0.0
  %1135 = vmatpush1.xpose.msra.mxu0 0.0
  %1136 = vmatprep.subr.mxu0 0.0
  %1137 = vmatpush1.xpose.msra.mxu0 0.0
  %1138 = vmatprep.subr.mxu0 0.0
  %1139 = vmatpush1.xpose.msra.mxu0 0.0
  %1140 = vmatprep.subr.mxu0 0.0
  %1141 = vmatpush1.xpose.msra.mxu0 0.0
  %1142 = vmatprep.subr.mxu0 0.0
  %1143 = vmatpush1.xpose.msra.mxu0 0.0
  %1144 = vmatprep.subr.mxu0 0.0
  %1145 = vmatpush1.xpose.msra.mxu0 0.0
  %1146 = vmatprep.subr.mxu0 0.0
  %1147 = vmatpush1.xpose.msra.mxu0 0.0
  %1148 = vmatprep.subr.mxu0 0.0
  %1149 = vmatpush1.xpose.msra.mxu0 0.0
  %1150 = vmatprep.subr.mxu0 0.0
  %1151 = vmatpush1.xpose.msra.mxu0 0.0
  %1152 = vmatprep.subr.mxu0 0.0
  %1153 = vmatpush1.xpose.msra.mxu0 0.0
  %1154 = vmatprep.subr.mxu0 0.0
  %1155 = vmatpush1.xpose.msra.mxu0 0.0
  %1156 = vmatprep.subr.mxu0 0.0
  %1157 = vmatpush1.xpose.msra.mxu0 0.0
  %1158 = vmatprep.subr.mxu0 0.0
  %1159 = vmatpush1.xpose.msra.mxu0 0.0
  %1160 = vmatprep.subr.mxu0 0.0
  %1161 = vmatpush1.xpose.msra.mxu0 0.0
  %1162 = vmatprep.subr.mxu0 0.0
  %1163 = vmatpush1.xpose.msra.mxu0 0.0
  %1164 = vmatprep.subr.mxu0 0.0
  %1165 = vmatpush1.xpose.msra.mxu0 %v1132
  %1166 = vmatprep.subr.mxu0 0.0
  %1167 = vmatpush2.xpose.msra.mxu0 0.0
  %1168 = vmatprep.subr.mxu0 0.0
  %1169 = vmatpush2.xpose.msra.mxu0 0.0
  %1170 = vmatprep.subr.mxu0 0.0
  %1171 = vmatpush2.xpose.msra.mxu0 0.0
  %1172 = vmatprep.subr.mxu0 0.0
  %1173 = vmatpush2.xpose.msra.mxu0 0.0
  %1174 = vmatprep.subr.mxu0 0.0
  %1175 = vmatpush2.xpose.msra.mxu0 0.0
  %1176 = vmatprep.subr.mxu0 0.0
  %1177 = vmatpush2.xpose.msra.mxu0 0.0
  %1178 = vmatprep.subr.mxu0 0.0
  %1179 = vmatpush2.xpose.msra.mxu0 0.0
  %1180 = vmatprep.subr.mxu0 0.0
  %1181 = vmatpush2.xpose.msra.mxu0 0.0
  %1182 = vmatprep.subr.mxu0 0.0
  %1183 = vmatpush2.xpose.msra.mxu0 0.0
  %1184 = vmatprep.subr.mxu0 0.0
  %1185 = vmatpush2.xpose.msra.mxu0 0.0
  %1186 = vmatprep.subr.mxu0 0.0
  %1187 = vmatpush2.xpose.msra.mxu0 0.0
  %1188 = vmatprep.subr.mxu0 0.0
  %1189 = vmatpush2.xpose.msra.mxu0 0.0
  %1190 = vmatprep.subr.mxu0 0.0
  %1191 = vmatpush2.xpose.msra.mxu0 0.0
  %1192 = vmatprep.subr.mxu0 0.0
  %1193 = vmatpush2.xpose.msra.mxu0 0.0
  %1194 = vmatprep.subr.mxu0 0.0
  %1195 = vmatpush2.xpose.msra.mxu0 0.0
  %1196 = vmatprep.subr.mxu0 0.0
  %1197 = vmatpush2.xpose.msra.mxu0 0.0
  %1198 = vmatprep.mubr.f32.mxu0 0.0
  %1199 = vmatmul.mubr.f32.gmra.mxu0 %v1130
  %v1200 = vpop.f32.mrf.mxu0
  %v1201 = vadd.f32 %v22, %v1200
  %v1202 = vpop.f32.mrf.mxu0
  %1203 = vdwg.mxu0
  %v1204 = vsel %vm395, %v1123, -inf
  %1205 = vmax.xlane.f32.xlu0 %v1204
  %v1206 = vpop.xlane.xlu0 %1205
  %v1207 = vsel %vm395, %v1201, -inf
  %1208 = vmax.xlane.f32.xlu0 %v1207
  %v1209 = vpop.xlane.xlu0 %1208
  %v1210 = vsub.f32 %v1123, %v1206
  %v1211 = vsub.f32 %v1201, %v1209
  %v1212 = vmul.f32 %v1210, 1.442695
  %v1213 = vpow.pop %v1212
  %v1214 = vmul.f32 %v1211, 1.442695
  %v1215 = vpow.pop %v1214
  %v1216 = vsel %vm395, %v1213, 0.0
  %1217 = vadd.xlane.f32.xlu0 %v1216
  %v1218 = vpop.xlane.xlu0 %1217
  %v1219 = vsel %vm395, %v1215, 0.0
  %1220 = vadd.xlane.f32.xlu0 %v1219
  %v1221 = vpop.xlane.xlu0 %1220
  %v1222 = vrcp.pop %v1218
  %v1223 = vrcp.pop %v1221
  %v1224 = vmul.f32 %v1213, %v1222
  %v1225 = vmul.f32 %v1215, %v1223
  %1226 = vrot.lane.b32.xlu0 %v389, 64
  %v1227 = vpop.permute.xlu0 %1226
  %v1230 = vsel %vm395, %v1224, 0
  %1232 = vmatprep.subr.mxu0 0.0
  %1233 = vmatpush1.msra.mxu0 0.0
  %1234 = vmatprep.subr.mxu0 0.0
  %1235 = vmatpush1.msra.mxu0 0.0
  %1236 = vmatprep.subr.mxu0 0.0
  %1237 = vmatpush1.msra.mxu0 0.0
  %1238 = vmatprep.subr.mxu0 0.0
  %1239 = vmatpush1.msra.mxu0 0.0
  %1240 = vmatprep.subr.mxu0 0.0
  %1241 = vmatpush1.msra.mxu0 0.0
  %1242 = vmatprep.subr.mxu0 0.0
  %1243 = vmatpush1.msra.mxu0 0.0
  %1244 = vmatprep.subr.mxu0 0.0
  %1245 = vmatpush1.msra.mxu0 0.0
  %1246 = vmatprep.subr.mxu0 0.0
  %1247 = vmatpush1.msra.mxu0 0.0
  %1248 = vmatprep.subr.mxu0 0.0
  %1249 = vmatpush1.msra.mxu0 0.0
  %1250 = vmatprep.subr.mxu0 0.0
  %1251 = vmatpush1.msra.mxu0 0.0
  %1252 = vmatprep.subr.mxu0 0.0
  %1253 = vmatpush1.msra.mxu0 0.0
  %1254 = vmatprep.subr.mxu0 0.0
  %1255 = vmatpush1.msra.mxu0 0.0
  %1256 = vmatprep.subr.mxu0 0.0
  %1257 = vmatpush1.msra.mxu0 0.0
  %1258 = vmatprep.subr.mxu0 0.0
  %1259 = vmatpush1.msra.mxu0 0.0
  %1260 = vmatprep.subr.mxu0 0.0
  %1261 = vmatpush1.msra.mxu0 0.0
  %1262 = vmatprep.subr.mxu0 0.0
  %1263 = vmatpush1.msra.mxu0 %v1227
  %1264 = vmatprep.subr.mxu0 0.0
  %1265 = vmatpush2.msra.mxu0 0.0
  %1266 = vmatprep.subr.mxu0 0.0
  %1267 = vmatpush2.msra.mxu0 0.0
  %1268 = vmatprep.subr.mxu0 0.0
  %1269 = vmatpush2.msra.mxu0 0.0
  %1270 = vmatprep.subr.mxu0 0.0
  %1271 = vmatpush2.msra.mxu0 0.0
  %1272 = vmatprep.subr.mxu0 0.0
  %1273 = vmatpush2.msra.mxu0 0.0
  %1274 = vmatprep.subr.mxu0 0.0
  %1275 = vmatpush2.msra.mxu0 0.0
  %1276 = vmatprep.subr.mxu0 0.0
  %1277 = vmatpush2.msra.mxu0 0.0
  %1278 = vmatprep.subr.mxu0 0.0
  %1279 = vmatpush2.msra.mxu0 0.0
  %1280 = vmatprep.subr.mxu0 0.0
  %1281 = vmatpush2.msra.mxu0 0.0
  %1282 = vmatprep.subr.mxu0 0.0
  %1283 = vmatpush2.msra.mxu0 0.0
  %1284 = vmatprep.subr.mxu0 0.0
  %1285 = vmatpush2.msra.mxu0 0.0
  %1286 = vmatprep.subr.mxu0 0.0
  %1287 = vmatpush2.msra.mxu0 0.0
  %1288 = vmatprep.subr.mxu0 0.0
  %1289 = vmatpush2.msra.mxu0 0.0
  %1290 = vmatprep.subr.mxu0 0.0
  %1291 = vmatpush2.msra.mxu0 0.0
  %1292 = vmatprep.subr.mxu0 0.0
  %1293 = vmatpush2.msra.mxu0 0.0
  %1294 = vmatprep.subr.mxu0 0.0
  %1295 = vmatpush2.msra.mxu0 0.0
  %1296 = vmatprep.mubr.f32.mxu0 0.0
  %1297 = vmatmul.mubr.f32.gmra.mxu0 %v1230
  %v1298 = vpop.f32.mrf.mxu0
  %v1299 = vadd.f32 0.0, %v1298
  %v1300 = vpop.f32.mrf.mxu0
  %1301 = vdwg.mxu0
  %1302 = vrot.lane.b32.xlu0 %v392, 64
  %v1303 = vpop.permute.xlu0 %1302
  %v1306 = vsel %vm395, %v1225, 0
  %1308 = vmatprep.subr.mxu0 0.0
  %1309 = vmatpush1.msra.mxu0 0.0
  %1310 = vmatprep.subr.mxu0 0.0
  %1311 = vmatpush1.msra.mxu0 0.0
  %1312 = vmatprep.subr.mxu0 0.0
  %1313 = vmatpush1.msra.mxu0 0.0
  %1314 = vmatprep.subr.mxu0 0.0
  %1315 = vmatpush1.msra.mxu0 0.0
  %1316 = vmatprep.subr.mxu0 0.0
  %1317 = vmatpush1.msra.mxu0 0.0
  %1318 = vmatprep.subr.mxu0 0.0
  %1319 = vmatpush1.msra.mxu0 0.0
  %1320 = vmatprep.subr.mxu0 0.0
  %1321 = vmatpush1.msra.mxu0 0.0
  %1322 = vmatprep.subr.mxu0 0.0
  %1323 = vmatpush1.msra.mxu0 0.0
  %1324 = vmatprep.subr.mxu0 0.0
  %1325 = vmatpush1.msra.mxu0 0.0
  %1326 = vmatprep.subr.mxu0 0.0
  %1327 = vmatpush1.msra.mxu0 0.0
  %1328 = vmatprep.subr.mxu0 0.0
  %1329 = vmatpush1.msra.mxu0 0.0
  %1330 = vmatprep.subr.mxu0 0.0
  %1331 = vmatpush1.msra.mxu0 0.0
  %1332 = vmatprep.subr.mxu0 0.0
  %1333 = vmatpush1.msra.mxu0 0.0
  %1334 = vmatprep.subr.mxu0 0.0
  %1335 = vmatpush1.msra.mxu0 0.0
  %1336 = vmatprep.subr.mxu0 0.0
  %1337 = vmatpush1.msra.mxu0 0.0
  %1338 = vmatprep.subr.mxu0 0.0
  %1339 = vmatpush1.msra.mxu0 %v1303
  %1340 = vmatprep.subr.mxu0 0.0
  %1341 = vmatpush2.msra.mxu0 0.0
  %1342 = vmatprep.subr.mxu0 0.0
  %1343 = vmatpush2.msra.mxu0 0.0
  %1344 = vmatprep.subr.mxu0 0.0
  %1345 = vmatpush2.msra.mxu0 0.0
  %1346 = vmatprep.subr.mxu0 0.0
  %1347 = vmatpush2.msra.mxu0 0.0
  %1348 = vmatprep.subr.mxu0 0.0
  %1349 = vmatpush2.msra.mxu0 0.0
  %1350 = vmatprep.subr.mxu0 0.0
  %1351 = vmatpush2.msra.mxu0 0.0
  %1352 = vmatprep.subr.mxu0 0.0
  %1353 = vmatpush2.msra.mxu0 0.0
  %1354 = vmatprep.subr.mxu0 0.0
  %1355 = vmatpush2.msra.mxu0 0.0
  %1356 = vmatprep.subr.mxu0 0.0
  %1357 = vmatpush2.msra.mxu0 0.0
  %1358 = vmatprep.subr.mxu0 0.0
  %1359 = vmatpush2.msra.mxu0 0.0
  %1360 = vmatprep.subr.mxu0 0.0
  %1361 = vmatpush2.msra.mxu0 0.0
  %1362 = vmatprep.subr.mxu0 0.0
  %1363 = vmatpush2.msra.mxu0 0.0
  %1364 = vmatprep.subr.mxu0 0.0
  %1365 = vmatpush2.msra.mxu0 0.0
  %1366 = vmatprep.subr.mxu0 0.0
  %1367 = vmatpush2.msra.mxu0 0.0
  %1368 = vmatprep.subr.mxu0 0.0
  %1369 = vmatpush2.msra.mxu0 0.0
  %1370 = vmatprep.subr.mxu0 0.0
  %1371 = vmatpush2.msra.mxu0 0.0
  %1372 = vmatprep.mubr.f32.mxu0 0.0
  %1373 = vmatmul.mubr.f32.gmra.mxu0 %v1306
  %v1374 = vpop.f32.mrf.mxu0
  %v1375 = vadd.f32 0.0, %v1374
  %v1376 = vpop.f32.mrf.mxu0
  %1377 = vdwg.mxu0
  %v1378 = vadd.f32 %v972, %v1299
  %v1379 = vadd.f32 %v1045, %v1375
  %1380 = vrot.lane.b32.xlu0 %v269, 104
  %v1381 = vpop.permute.xlu0 %1380
  %1382 = vrot.lane.b32.xlu0 %v331, 104
  %v1383 = vpop.permute.xlu0 %1382
  %v1384 = vsel %vm395, %v1381, 0
  %v1386 = vsel %vm395, %v1383, 0
  %1388 = vmatprep.subr.mxu0 0.0
  %1389 = vmatpush1.xpose.msra.mxu0 0.0
  %1390 = vmatprep.subr.mxu0 0.0
  %1391 = vmatpush1.xpose.msra.mxu0 0.0
  %1392 = vmatprep.subr.mxu0 0.0
  %1393 = vmatpush1.xpose.msra.mxu0 0.0
  %1394 = vmatprep.subr.mxu0 0.0
  %1395 = vmatpush1.xpose.msra.mxu0 0.0
  %1396 = vmatprep.subr.mxu0 0.0
  %1397 = vmatpush1.xpose.msra.mxu0 0.0
  %1398 = vmatprep.subr.mxu0 0.0
  %1399 = vmatpush1.xpose.msra.mxu0 0.0
  %1400 = vmatprep.subr.mxu0 0.0
  %1401 = vmatpush1.xpose.msra.mxu0 0.0
  %1402 = vmatprep.subr.mxu0 0.0
  %1403 = vmatpush1.xpose.msra.mxu0 0.0
  %1404 = vmatprep.subr.mxu0 0.0
  %1405 = vmatpush1.xpose.msra.mxu0 0.0
  %1406 = vmatprep.subr.mxu0 0.0
  %1407 = vmatpush1.xpose.msra.mxu0 0.0
  %1408 = vmatprep.subr.mxu0 0.0
  %1409 = vmatpush1.xpose.msra.mxu0 0.0
  %1410 = vmatprep.subr.mxu0 0.0
  %1411 = vmatpush1.xpose.msra.mxu0 0.0
  %1412 = vmatprep.subr.mxu0 0.0
  %1413 = vmatpush1.xpose.msra.mxu0 0.0
  %1414 = vmatprep.subr.mxu0 0.0
  %1415 = vmatpush1.xpose.msra.mxu0 0.0
  %1416 = vmatprep.subr.mxu0 0.0
  %1417 = vmatpush1.xpose.msra.mxu0 0.0
  %1418 = vmatprep.subr.mxu0 0.0
  %1419 = vmatpush1.xpose.msra.mxu0 %v1386
  %1420 = vmatprep.subr.mxu0 0.0
  %1421 = vmatpush2.xpose.msra.mxu0 0.0
  %1422 = vmatprep.subr.mxu0 0.0
  %1423 = vmatpush2.xpose.msra.mxu0 0.0
  %1424 = vmatprep.subr.mxu0 0.0
  %1425 = vmatpush2.xpose.msra.mxu0 0.0
  %1426 = vmatprep.subr.mxu0 0.0
  %1427 = vmatpush2.xpose.msra.mxu0 0.0
  %1428 = vmatprep.subr.mxu0 0.0
  %1429 = vmatpush2.xpose.msra.mxu0 0.0
  %1430 = vmatprep.subr.mxu0 0.0
  %1431 = vmatpush2.xpose.msra.mxu0 0.0
  %1432 = vmatprep.subr.mxu0 0.0
  %1433 = vmatpush2.xpose.msra.mxu0 0.0
  %1434 = vmatprep.subr.mxu0 0.0
  %1435 = vmatpush2.xpose.msra.mxu0 0.0
  %1436 = vmatprep.subr.mxu0 0.0
  %1437 = vmatpush2.xpose.msra.mxu0 0.0
  %1438 = vmatprep.subr.mxu0 0.0
  %1439 = vmatpush2.xpose.msra.mxu0 0.0
  %1440 = vmatprep.subr.mxu0 0.0
  %1441 = vmatpush2.xpose.msra.mxu0 0.0
  %1442 = vmatprep.subr.mxu0 0.0
  %1443 = vmatpush2.xpose.msra.mxu0 0.0
  %1444 = vmatprep.subr.mxu0 0.0
  %1445 = vmatpush2.xpose.msra.mxu0 0.0
  %1446 = vmatprep.subr.mxu0 0.0
  %1447 = vmatpush2.xpose.msra.mxu0 0.0
  %1448 = vmatprep.subr.mxu0 0.0
  %1449 = vmatpush2.xpose.msra.mxu0 0.0
  %1450 = vmatprep.subr.mxu0 0.0
  %1451 = vmatpush2.xpose.msra.mxu0 0.0
  %1452 = vmatprep.mubr.f32.mxu0 0.0
  %1453 = vmatmul.mubr.f32.gmra.mxu0 %v1384
  %v1454 = vpop.f32.mrf.mxu0
  %v1455 = vadd.f32 %v21, %v1454
  %v1456 = vpop.f32.mrf.mxu0
  %1457 = vdwg.mxu0
  %1458 = vrot.lane.b32.xlu0 %v272, 104
  %v1459 = vpop.permute.xlu0 %1458
  %1460 = vrot.lane.b32.xlu0 %v334, 104
  %v1461 = vpop.permute.xlu0 %1460
  %v1462 = vsel %vm395, %v1459, 0
  %v1464 = vsel %vm395, %v1461, 0
  %1466 = vmatprep.subr.mxu0 0.0
  %1467 = vmatpush1.xpose.msra.mxu0 0.0
  %1468 = vmatprep.subr.mxu0 0.0
  %1469 = vmatpush1.xpose.msra.mxu0 0.0
  %1470 = vmatprep.subr.mxu0 0.0
  %1471 = vmatpush1.xpose.msra.mxu0 0.0
  %1472 = vmatprep.subr.mxu0 0.0
  %1473 = vmatpush1.xpose.msra.mxu0 0.0
  %1474 = vmatprep.subr.mxu0 0.0
  %1475 = vmatpush1.xpose.msra.mxu0 0.0
  %1476 = vmatprep.subr.mxu0 0.0
  %1477 = vmatpush1.xpose.msra.mxu0 0.0
  %1478 = vmatprep.subr.mxu0 0.0
  %1479 = vmatpush1.xpose.msra.mxu0 0.0
  %1480 = vmatprep.subr.mxu0 0.0
  %1481 = vmatpush1.xpose.msra.mxu0 0.0
  %1482 = vmatprep.subr.mxu0 0.0
  %1483 = vmatpush1.xpose.msra.mxu0 0.0
  %1484 = vmatprep.subr.mxu0 0.0
  %1485 = vmatpush1.xpose.msra.mxu0 0.0
  %1486 = vmatprep.subr.mxu0 0.0
  %1487 = vmatpush1.xpose.msra.mxu0 0.0
  %1488 = vmatprep.subr.mxu0 0.0
  %1489 = vmatpush1.xpose.msra.mxu0 0.0
  %1490 = vmatprep.subr.mxu0 0.0
  %1491 = vmatpush1.xpose.msra.mxu0 0.0
  %1492 = vmatprep.subr.mxu0 0.0
  %1493 = vmatpush1.xpose.msra.mxu0 0.0
  %1494 = vmatprep.subr.mxu0 0.0
  %1495 = vmatpush1.xpose.msra.mxu0 0.0
  %1496 = vmatprep.subr.mxu0 0.0
  %1497 = vmatpush1.xpose.msra.mxu0 %v1464
  %1498 = vmatprep.subr.mxu0 0.0
  %1499 = vmatpush2.xpose.msra.mxu0 0.0
  %1500 = vmatprep.subr.mxu0 0.0
  %1501 = vmatpush2.xpose.msra.mxu0 0.0
  %1502 = vmatprep.subr.mxu0 0.0
  %1503 = vmatpush2.xpose.msra.mxu0 0.0
  %1504 = vmatprep.subr.mxu0 0.0
  %1505 = vmatpush2.xpose.msra.mxu0 0.0
  %1506 = vmatprep.subr.mxu0 0.0
  %1507 = vmatpush2.xpose.msra.mxu0 0.0
  %1508 = vmatprep.subr.mxu0 0.0
  %1509 = vmatpush2.xpose.msra.mxu0 0.0
  %1510 = vmatprep.subr.mxu0 0.0
  %1511 = vmatpush2.xpose.msra.mxu0 0.0
  %1512 = vmatprep.subr.mxu0 0.0
  %1513 = vmatpush2.xpose.msra.mxu0 0.0
  %1514 = vmatprep.subr.mxu0 0.0
  %1515 = vmatpush2.xpose.msra.mxu0 0.0
  %1516 = vmatprep.subr.mxu0 0.0
  %1517 = vmatpush2.xpose.msra.mxu0 0.0
  %1518 = vmatprep.subr.mxu0 0.0
  %1519 = vmatpush2.xpose.msra.mxu0 0.0
  %1520 = vmatprep.subr.mxu0 0.0
  %1521 = vmatpush2.xpose.msra.mxu0 0.0
  %1522 = vmatprep.subr.mxu0 0.0
  %1523 = vmatpush2.xpose.msra.mxu0 0.0
  %1524 = vmatprep.subr.mxu0 0.0
  %1525 = vmatpush2.xpose.msra.mxu0 0.0
  %1526 = vmatprep.subr.mxu0 0.0
  %1527 = vmatpush2.xpose.msra.mxu0 0.0
  %1528 = vmatprep.subr.mxu0 0.0
  %1529 = vmatpush2.xpose.msra.mxu0 0.0
  %1530 = vmatprep.mubr.f32.mxu0 0.0
  %1531 = vmatmul.mubr.f32.gmra.mxu0 %v1462
  %v1532 = vpop.f32.mrf.mxu0
  %v1533 = vadd.f32 %v22, %v1532
  %v1534 = vpop.f32.mrf.mxu0
  %1535 = vdwg.mxu0
  %v1536 = vsel %vm395, %v1455, -inf
  %1537 = vmax.xlane.f32.xlu0 %v1536
  %v1538 = vpop.xlane.xlu0 %1537
  %v1539 = vsel %vm395, %v1533, -inf
  %1540 = vmax.xlane.f32.xlu0 %v1539
  %v1541 = vpop.xlane.xlu0 %1540
  %v1542 = vsub.f32 %v1455, %v1538
  %v1543 = vsub.f32 %v1533, %v1541
  %v1544 = vmul.f32 %v1542, 1.442695
  %v1545 = vpow.pop %v1544
  %v1546 = vmul.f32 %v1543, 1.442695
  %v1547 = vpow.pop %v1546
  %v1548 = vsel %vm395, %v1545, 0.0
  %1549 = vadd.xlane.f32.xlu0 %v1548
  %v1550 = vpop.xlane.xlu0 %1549
  %v1551 = vsel %vm395, %v1547, 0.0
  %1552 = vadd.xlane.f32.xlu0 %v1551
  %v1553 = vpop.xlane.xlu0 %1552
  %v1554 = vrcp.pop %v1550
  %v1555 = vrcp.pop %v1553
  %v1556 = vmul.f32 %v1545, %v1554
  %v1557 = vmul.f32 %v1547, %v1555
  %1558 = vrot.lane.b32.xlu0 %v389, 32
  %v1559 = vpop.permute.xlu0 %1558
  %v1562 = vsel %vm395, %v1556, 0
  %1564 = vmatprep.subr.mxu0 0.0
  %1565 = vmatpush1.msra.mxu0 0.0
  %1566 = vmatprep.subr.mxu0 0.0
  %1567 = vmatpush1.msra.mxu0 0.0
  %1568 = vmatprep.subr.mxu0 0.0
  %1569 = vmatpush1.msra.mxu0 0.0
  %1570 = vmatprep.subr.mxu0 0.0
  %1571 = vmatpush1.msra.mxu0 0.0
  %1572 = vmatprep.subr.mxu0 0.0
  %1573 = vmatpush1.msra.mxu0 0.0
  %1574 = vmatprep.subr.mxu0 0.0
  %1575 = vmatpush1.msra.mxu0 0.0
  %1576 = vmatprep.subr.mxu0 0.0
  %1577 = vmatpush1.msra.mxu0 0.0
  %1578 = vmatprep.subr.mxu0 0.0
  %1579 = vmatpush1.msra.mxu0 0.0
  %1580 = vmatprep.subr.mxu0 0.0
  %1581 = vmatpush1.msra.mxu0 0.0
  %1582 = vmatprep.subr.mxu0 0.0
  %1583 = vmatpush1.msra.mxu0 0.0
  %1584 = vmatprep.subr.mxu0 0.0
  %1585 = vmatpush1.msra.mxu0 0.0
  %1586 = vmatprep.subr.mxu0 0.0
  %1587 = vmatpush1.msra.mxu0 0.0
  %1588 = vmatprep.subr.mxu0 0.0
  %1589 = vmatpush1.msra.mxu0 0.0
  %1590 = vmatprep.subr.mxu0 0.0
  %1591 = vmatpush1.msra.mxu0 0.0
  %1592 = vmatprep.subr.mxu0 0.0
  %1593 = vmatpush1.msra.mxu0 0.0
  %1594 = vmatprep.subr.mxu0 0.0
  %1595 = vmatpush1.msra.mxu0 %v1559
  %1596 = vmatprep.subr.mxu0 0.0
  %1597 = vmatpush2.msra.mxu0 0.0
  %1598 = vmatprep.subr.mxu0 0.0
  %1599 = vmatpush2.msra.mxu0 0.0
  %1600 = vmatprep.subr.mxu0 0.0
  %1601 = vmatpush2.msra.mxu0 0.0
  %1602 = vmatprep.subr.mxu0 0.0
  %1603 = vmatpush2.msra.mxu0 0.0
  %1604 = vmatprep.subr.mxu0 0.0
  %1605 = vmatpush2.msra.mxu0 0.0
  %1606 = vmatprep.subr.mxu0 0.0
  %1607 = vmatpush2.msra.mxu0 0.0
  %1608 = vmatprep.subr.mxu0 0.0
  %1609 = vmatpush2.msra.mxu0 0.0
  %1610 = vmatprep.subr.mxu0 0.0
  %1611 = vmatpush2.msra.mxu0 0.0
  %1612 = vmatprep.subr.mxu0 0.0
  %1613 = vmatpush2.msra.mxu0 0.0
  %1614 = vmatprep.subr.mxu0 0.0
  %1615 = vmatpush2.msra.mxu0 0.0
  %1616 = vmatprep.subr.mxu0 0.0
  %1617 = vmatpush2.msra.mxu0 0.0
  %1618 = vmatprep.subr.mxu0 0.0
  %1619 = vmatpush2.msra.mxu0 0.0
  %1620 = vmatprep.subr.mxu0 0.0
  %1621 = vmatpush2.msra.mxu0 0.0
  %1622 = vmatprep.subr.mxu0 0.0
  %1623 = vmatpush2.msra.mxu0 0.0
  %1624 = vmatprep.subr.mxu0 0.0
  %1625 = vmatpush2.msra.mxu0 0.0
  %1626 = vmatprep.subr.mxu0 0.0
  %1627 = vmatpush2.msra.mxu0 0.0
  %1628 = vmatprep.mubr.f32.mxu0 0.0
  %1629 = vmatmul.mubr.f32.gmra.mxu0 %v1562
  %v1630 = vpop.f32.mrf.mxu0
  %v1631 = vadd.f32 0.0, %v1630
  %v1632 = vpop.f32.mrf.mxu0
  %1633 = vdwg.mxu0
  %1634 = vrot.lane.b32.xlu0 %v392, 32
  %v1635 = vpop.permute.xlu0 %1634
  %v1638 = vsel %vm395, %v1557, 0
  %1640 = vmatprep.subr.mxu0 0.0
  %1641 = vmatpush1.msra.mxu0 0.0
  %1642 = vmatprep.subr.mxu0 0.0
  %1643 = vmatpush1.msra.mxu0 0.0
  %1644 = vmatprep.subr.mxu0 0.0
  %1645 = vmatpush1.msra.mxu0 0.0
  %1646 = vmatprep.subr.mxu0 0.0
  %1647 = vmatpush1.msra.mxu0 0.0
  %1648 = vmatprep.subr.mxu0 0.0
  %1649 = vmatpush1.msra.mxu0 0.0
  %1650 = vmatprep.subr.mxu0 0.0
  %1651 = vmatpush1.msra.mxu0 0.0
  %1652 = vmatprep.subr.mxu0 0.0
  %1653 = vmatpush1.msra.mxu0 0.0
  %1654 = vmatprep.subr.mxu0 0.0
  %1655 = vmatpush1.msra.mxu0 0.0
  %1656 = vmatprep.subr.mxu0 0.0
  %1657 = vmatpush1.msra.mxu0 0.0
  %1658 = vmatprep.subr.mxu0 0.0
  %1659 = vmatpush1.msra.mxu0 0.0
  %1660 = vmatprep.subr.mxu0 0.0
  %1661 = vmatpush1.msra.mxu0 0.0
  %1662 = vmatprep.subr.mxu0 0.0
  %1663 = vmatpush1.msra.mxu0 0.0
  %1664 = vmatprep.subr.mxu0 0.0
  %1665 = vmatpush1.msra.mxu0 0.0
  %1666 = vmatprep.subr.mxu0 0.0
  %1667 = vmatpush1.msra.mxu0 0.0
  %1668 = vmatprep.subr.mxu0 0.0
  %1669 = vmatpush1.msra.mxu0 0.0
  %1670 = vmatprep.subr.mxu0 0.0
  %1671 = vmatpush1.msra.mxu0 %v1635
  %1672 = vmatprep.subr.mxu0 0.0
  %1673 = vmatpush2.msra.mxu0 0.0
  %1674 = vmatprep.subr.mxu0 0.0
  %1675 = vmatpush2.msra.mxu0 0.0
  %1676 = vmatprep.subr.mxu0 0.0
  %1677 = vmatpush2.msra.mxu0 0.0
  %1678 = vmatprep.subr.mxu0 0.0
  %1679 = vmatpush2.msra.mxu0 0.0
  %1680 = vmatprep.subr.mxu0 0.0
  %1681 = vmatpush2.msra.mxu0 0.0
  %1682 = vmatprep.subr.mxu0 0.0
  %1683 = vmatpush2.msra.mxu0 0.0
  %1684 = vmatprep.subr.mxu0 0.0
  %1685 = vmatpush2.msra.mxu0 0.0
  %1686 = vmatprep.subr.mxu0 0.0
  %1687 = vmatpush2.msra.mxu0 0.0
  %1688 = vmatprep.subr.mxu0 0.0
  %1689 = vmatpush2.msra.mxu0 0.0
  %1690 = vmatprep.subr.mxu0 0.0
  %1691 = vmatpush2.msra.mxu0 0.0
  %1692 = vmatprep.subr.mxu0 0.0
  %1693 = vmatpush2.msra.mxu0 0.0
  %1694 = vmatprep.subr.mxu0 0.0
  %1695 = vmatpush2.msra.mxu0 0.0
  %1696 = vmatprep.subr.mxu0 0.0
  %1697 = vmatpush2.msra.mxu0 0.0
  %1698 = vmatprep.subr.mxu0 0.0
  %1699 = vmatpush2.msra.mxu0 0.0
  %1700 = vmatprep.subr.mxu0 0.0
  %1701 = vmatpush2.msra.mxu0 0.0
  %1702 = vmatprep.subr.mxu0 0.0
  %1703 = vmatpush2.msra.mxu0 0.0
  %1704 = vmatprep.mubr.f32.mxu0 0.0
  %1705 = vmatmul.mubr.f32.gmra.mxu0 %v1638
  %v1706 = vpop.f32.mrf.mxu0
  %v1707 = vadd.f32 0.0, %v1706
  %v1708 = vpop.f32.mrf.mxu0
  %1709 = vdwg.mxu0
  %v1710 = vadd.f32 %v1378, %v1631
  %v1711 = vadd.f32 %v1379, %v1707
  %v1712 = vld [vmem:[%s3 + $0xa] sm:$0x1]
  %v1713 = vlaneseq
  %v1714 = vshrl.u32 %v1713, 7
  %v1715 = vsub.s32 0, %v1714
  %v1716 = vrot.slane %v1712, %v1715
  %v1717 = vadd.f32 %v1710, %v1716
  %v1718 = vadd.f32 %v1711, %v1716
  %v1719 = vadd.f32 %v207, %v1717
  %v1720 = vadd.f32 %v208, %v1718
  %v1721 = vsel %vm47, %v1719, 0.0
  %1722 = vadd.xlane.f32.xlu0 %v1721
  %v1723 = vpop.xlane.xlu0 %1722
  %v1724 = vsel %vm47, %v1720, 0.0
  %1725 = vadd.xlane.f32.xlu0 %v1724
  %v1726 = vpop.xlane.xlu0 %1725
  %v1727 = vmul.f32 %v1723, %v100
  %v1728 = vmul.f32 %v1726, %v100
  %v1729 = vmul.f32 %v1719, %v1719
  %v1730 = vmul.f32 %v1720, %v1720
  %v1731 = vsel %vm47, %v1729, 0.0
  %1732 = vadd.xlane.f32.xlu0 %v1731
  %v1733 = vpop.xlane.xlu0 %1732
  %v1734 = vsel %vm47, %v1730, 0.0
  %1735 = vadd.xlane.f32.xlu0 %v1734
  %v1736 = vpop.xlane.xlu0 %1735
  %v1737 = vmul.f32 %v1733, %v100
  %v1738 = vmul.f32 %v1736, %v100
  %v1739 = vmul.f32 %v1727, %v1727
  %v1740 = vmul.f32 %v1728, %v1728
  %v1741 = vsub.f32 %v1737, %v1739
  %v1742 = vsub.f32 %v1738, %v1740
  %v1743 = vsub.f32 %v1719, %v1727
  %v1744 = vsub.f32 %v1720, %v1728
  %v1745 = vadd.f32 %v1741, 1e-05
  %v1746 = vadd.f32 %v1742, 1e-05
  %v1747 = vrsqrt.pop %v1745
  %v1748 = vrsqrt.pop %v1746
  %v1749 = vmul.f32 %v1743, %v1747
  %v1750 = vmul.f32 %v1744, %v1748
  %v1751 = vld [vmem:[%s3 + $0xb] sm:$0x1]
  %v1752 = vlaneseq
  %v1753 = vshrl.u32 %v1752, 7
  %v1754 = vsub.s32 0, %v1753
  %v1755 = vrot.slane %v1751, %v1754
  %v1756 = vmul.f32 %v1749, %v1755
  %v1757 = vmul.f32 %v1750, %v1755
  %v1758 = vld [vmem:[%s3 + $0xc] sm:$0x1]
  %v1759 = vlaneseq
  %v1760 = vshrl.u32 %v1759, 7
  %v1761 = vsub.s32 0, %v1760
  %v1762 = vrot.slane %v1758, %v1761
  %v1763 = vadd.f32 %v1756, %v1762
  %v1764 = vadd.f32 %v1757, %v1762
  %v1765 = vld [vmem:[%s2] sm:$0xf]
  %v1766 = vld [vmem:[%s2 + $0x8] sm:$0xf]
  %v1767 = vld [vmem:[%s2 + $0x10] sm:$0xf]
  %v1768 = vld [vmem:[%s2 + $0x18] sm:$0xf]
  %v1769 = vpack.c.bf16 %v1764, %v1763
  %v1770 = vld [vmem:[%s4] ss:$0 sm:$0xff]
  %v1775 = vunpack.c.l.b16 %v1765
  %v1776 = vunpack.c.l.b16 %v1766
  %v1777 = vunpack.c.l.b16 %v1767
  %v1778 = vunpack.c.l.b16 %v1768
  %v1779 = vpack.c.b16 %v1776, %v1775
  %v1780 = vpack.c.b16 %v1778, %v1777
  %v1784 = vsel %vm47, %v1769, 0
  %1786 = vmatprep.subr.bf16.mxu0 0
  %1787 = vmatpush1.bf16.msra.mxu0 0
  %1788 = vmatprep.subr.bf16.mxu0 0
  %1789 = vmatpush1.bf16.msra.mxu0 0
  %1790 = vmatprep.subr.bf16.mxu0 0
  %1791 = vmatpush1.bf16.msra.mxu0 0
  %1792 = vmatprep.subr.bf16.mxu0 0
  %1793 = vmatpush1.bf16.msra.mxu0 0
  %1794 = vmatprep.subr.bf16.mxu0 0
  %1795 = vmatpush1.bf16.msra.mxu0 0
  %1796 = vmatprep.subr.bf16.mxu0 0
  %1797 = vmatpush1.bf16.msra.mxu0 0
  %1798 = vmatprep.subr.bf16.mxu0 0
  %1799 = vmatpush1.bf16.msra.mxu0 %v1780
  %1800 = vmatprep.subr.bf16.mxu0 0
  %1801 = vmatpush1.bf16.msra.mxu0 %v1779
  %1802 = vmatprep.subr.bf16.mxu0 0
  %1803 = vmatpush2.bf16.msra.mxu0 0
  %1804 = vmatprep.subr.bf16.mxu0 0
  %1805 = vmatpush2.bf16.msra.mxu0 0
  %1806 = vmatprep.subr.bf16.mxu0 0
  %1807 = vmatpush2.bf16.msra.mxu0 0
  %1808 = vmatprep.subr.bf16.mxu0 0
  %1809 = vmatpush2.bf16.msra.mxu0 0
  %1810 = vmatprep.subr.bf16.mxu0 0
  %1811 = vmatpush2.bf16.msra.mxu0 0
  %1812 = vmatprep.subr.bf16.mxu0 0
  %1813 = vmatpush2.bf16.msra.mxu0 0
  %1814 = vmatprep.subr.bf16.mxu0 0
  %1815 = vmatpush2.bf16.msra.mxu0 0
  %1816 = vmatprep.subr.bf16.mxu0 0
  %1817 = vmatpush2.bf16.msra.mxu0 0
  %1818 = vmatprep.mubr.bf16.mxu0 0
  %1819 = vmatmul.mubr.bf16.gmra.mxu0 %v1784
  %v1820 = vpop.f32.mrf.mxu0
  %v1821 = vadd.f32 %v1770, %v1820
  %v1822 = vpop.f32.mrf.mxu0
  %v1823 = vpop.f32.mrf.mxu0
  %v1824 = vadd.f32 %v1770, %v1823
  %v1825 = vpop.f32.mrf.mxu0
  %1826 = vdwg.mxu0
  %v1827 = vmax.f32 %v1821, 0.0
  %v1828 = vmax.f32 %v1824, 0.0
  %v1829 = vld [vmem:[%s1 + $0x70] sm:$0xf]
  %v1830 = vld [vmem:[%s1 + $0x74] sm:$0xf]
  %v1831 = vld [vmem:[%s1 + $0x78] sm:$0xf]
  %v1832 = vld [vmem:[%s1 + $0x7c] sm:$0xf]
  %v1833 = vld [vmem:[%s1 + $0x80] sm:$0xf]
  %v1834 = vld [vmem:[%s1 + $0x84] sm:$0xf]
  %v1835 = vld [vmem:[%s1 + $0x88] sm:$0xf]
  %v1836 = vld [vmem:[%s1 + $0x8c] sm:$0xf]
  %v1837 = vpack.c.bf16 %v1828, %v1827
  %v1838 = vld [vmem:[%s3 + $0xd] sm:$0x1]
  %v1839 = vlaneseq
  %v1840 = vshrl.u32 %v1839, 7
  %v1841 = vsub.s32 0, %v1840
  %v1842 = vrot.slane %v1838, %v1841
  %v1851 = vunpack.c.l.b16 %v1829
  %v1852 = vunpack.c.l.b16 %v1830
  %v1853 = vunpack.c.l.b16 %v1831
  %v1854 = vunpack.c.l.b16 %v1832
  %v1855 = vunpack.c.l.b16 %v1833
  %v1856 = vunpack.c.l.b16 %v1834
  %v1857 = vunpack.c.l.b16 %v1835
  %v1858 = vunpack.c.l.b16 %v1836
  %v1859 = vpack.c.b16 %v1852, %v1851
  %v1860 = vpack.c.b16 %v1854, %v1853
  %v1861 = vpack.c.b16 %v1856, %v1855
  %v1862 = vpack.c.b16 %v1858, %v1857
  %vm1867 = vcmask 523264
  %v1869 = vsel %vm1867, %v1837, 0
  %1871 = vmatprep.subr.bf16.mxu0 0
  %1872 = vmatpush1.bf16.msra.mxu0 0
  %1873 = vmatprep.subr.bf16.mxu0 0
  %1874 = vmatpush1.bf16.msra.mxu0 0
  %1875 = vmatprep.subr.bf16.mxu0 0
  %1876 = vmatpush1.bf16.msra.mxu0 0
  %1877 = vmatprep.subr.bf16.mxu0 0
  %1878 = vmatpush1.bf16.msra.mxu0 0
  %1879 = vmatprep.subr.bf16.mxu0 0
  %1880 = vmatpush1.bf16.msra.mxu0 %v1862
  %1881 = vmatprep.subr.bf16.mxu0 0
  %1882 = vmatpush1.bf16.msra.mxu0 %v1861
  %1883 = vmatprep.subr.bf16.mxu0 0
  %1884 = vmatpush1.bf16.msra.mxu0 %v1860
  %1885 = vmatprep.subr.bf16.mxu0 0
  %1886 = vmatpush1.bf16.msra.mxu0 %v1859
  %1887 = vmatprep.subr.bf16.mxu0 0
  %1888 = vmatpush2.bf16.msra.mxu0 0
  %1889 = vmatprep.subr.bf16.mxu0 0
  %1890 = vmatpush2.bf16.msra.mxu0 0
  %1891 = vmatprep.subr.bf16.mxu0 0
  %1892 = vmatpush2.bf16.msra.mxu0 0
  %1893 = vmatprep.subr.bf16.mxu0 0
  %1894 = vmatpush2.bf16.msra.mxu0 0
  %1895 = vmatprep.subr.bf16.mxu0 0
  %1896 = vmatpush2.bf16.msra.mxu0 0
  %1897 = vmatprep.subr.bf16.mxu0 0
  %1898 = vmatpush2.bf16.msra.mxu0 0
  %1899 = vmatprep.subr.bf16.mxu0 0
  %1900 = vmatpush2.bf16.msra.mxu0 0
  %1901 = vmatprep.subr.bf16.mxu0 0
  %1902 = vmatpush2.bf16.msra.mxu0 0
  %1903 = vmatprep.mubr.bf16.mxu0 0
  %1904 = vmatmul.mubr.bf16.gmra.mxu0 %v1869
  %v1905 = vpop.f32.mrf.mxu0
  %v1906 = vadd.f32 %v1842, %v1905
  %v1907 = vpop.f32.mrf.mxu0
  %v1908 = vpop.f32.mrf.mxu0
  %v1909 = vadd.f32 %v1842, %v1908
  %v1910 = vpop.f32.mrf.mxu0
  %1911 = vdwg.mxu0
  %v1912 = vadd.f32 %v1763, %v1906
  %v1913 = vadd.f32 %v1764, %v1909
  %v1914 = vsel %vm47, %v1912, 0.0
  %1915 = vadd.xlane.f32.xlu0 %v1914
  %v1916 = vpop.xlane.xlu0 %1915
  %v1917 = vsel %vm47, %v1913, 0.0
  %1918 = vadd.xlane.f32.xlu0 %v1917
  %v1919 = vpop.xlane.xlu0 %1918
  %v1920 = vmul.f32 %v1916, %v100
  %v1921 = vmul.f32 %v1919, %v100
  %v1922 = vmul.f32 %v1912, %v1912
  %v1923 = vmul.f32 %v1913, %v1913
  %v1924 = vsel %vm47, %v1922, 0.0
  %1925 = vadd.xlane.f32.xlu0 %v1924
  %v1926 = vpop.xlane.xlu0 %1925
  %v1927 = vsel %vm47, %v1923, 0.0
  %1928 = vadd.xlane.f32.xlu0 %v1927
  %v1929 = vpop.xlane.xlu0 %1928
  %v1930 = vmul.f32 %v1926, %v100
  %v1931 = vmul.f32 %v1929, %v100
  %v1932 = vmul.f32 %v1920, %v1920
  %v1933 = vmul.f32 %v1921, %v1921
  %v1934 = vsub.f32 %v1930, %v1932
  %v1935 = vsub.f32 %v1931, %v1933
  %v1936 = vsub.f32 %v1912, %v1920
  %v1937 = vsub.f32 %v1913, %v1921
  %v1938 = vadd.f32 %v1934, 1e-05
  %v1939 = vadd.f32 %v1935, 1e-05
  %v1940 = vrsqrt.pop %v1938
  %v1941 = vrsqrt.pop %v1939
  %v1942 = vmul.f32 %v1936, %v1940
  %v1943 = vmul.f32 %v1937, %v1941
  %v1944 = vld [vmem:[%s3 + $0xe] sm:$0x1]
  %v1945 = vlaneseq
  %v1946 = vshrl.u32 %v1945, 7
  %v1947 = vsub.s32 0, %v1946
  %v1948 = vrot.slane %v1944, %v1947
  %v1949 = vmul.f32 %v1942, %v1948
  %v1950 = vmul.f32 %v1943, %v1948
  %v1951 = vld [vmem:[%s3 + $0xf] sm:$0x1]
  %v1952 = vlaneseq
  %v1953 = vshrl.u32 %v1952, 7
  %v1954 = vsub.s32 0, %v1953
  %v1955 = vrot.slane %v1951, %v1954
  %v1956 = vadd.f32 %v1949, %v1955
  %v1957 = vadd.f32 %v1950, %v1955
  %v1958 = vld [vmem:[%s0 + $0x20] sm:$0xff]
  %v1959 = vld [vmem:[%s0 + $0x28] sm:$0xff]
  %v1960 = vadd.f32 %v1956, %v1958
  %v1961 = vadd.f32 %v1957, %v1959
  %v1962 = vld [vmem:[%s1 + $0x40] sm:$0xf]
  %v1963 = vld [vmem:[%s1 + $0x44] sm:$0xf]
  %v1964 = vld [vmem:[%s1 + $0x48] sm:$0xf]
  %v1965 = vld [vmem:[%s1 + $0x4c] sm:$0xf]
  %v1966 = vpack.c.bf16 %v1961, %v1960
  %v1967 = vld [vmem:[%s3 + $0x10] sm:$0x1]
  %v1968 = vlaneseq
  %v1969 = vshrl.u32 %v1968, 7
  %v1970 = vsub.s32 0, %v1969
  %v1971 = vrot.slane %v1967, %v1970
  %v1976 = vunpack.c.l.b16 %v1962
  %v1977 = vunpack.c.l.b16 %v1963
  %v1978 = vunpack.c.l.b16 %v1964
  %v1979 = vunpack.c.l.b16 %v1965
  %v1980 = vpack.c.b16 %v1977, %v1976
  %v1981 = vpack.c.b16 %v1979, %v1978
  %v1985 = vsel %vm47, %v1966, 0
  %1987 = vmatprep.subr.bf16.mxu0 0
  %1988 = vmatpush1.bf16.msra.mxu0 0
  %1989 = vmatprep.subr.bf16.mxu0 0
  %1990 = vmatpush1.bf16.msra.mxu0 0
  %1991 = vmatprep.subr.bf16.mxu0 0
  %1992 = vmatpush1.bf16.msra.mxu0 0
  %1993 = vmatprep.subr.bf16.mxu0 0
  %1994 = vmatpush1.bf16.msra.mxu0 0
  %1995 = vmatprep.subr.bf16.mxu0 0
  %1996 = vmatpush1.bf16.msra.mxu0 0
  %1997 = vmatprep.subr.bf16.mxu0 0
  %1998 = vmatpush1.bf16.msra.mxu0 0
  %1999 = vmatprep.subr.bf16.mxu0 0
  %2000 = vmatpush1.bf16.msra.mxu0 %v1981
  %2001 = vmatprep.subr.bf16.mxu0 0
  %2002 = vmatpush1.bf16.msra.mxu0 %v1980
  %2003 = vmatprep.subr.bf16.mxu0 0
  %2004 = vmatpush2.bf16.msra.mxu0 0
  %2005 = vmatprep.subr.bf16.mxu0 0
  %2006 = vmatpush2.bf16.msra.mxu0 0
  %2007 = vmatprep.subr.bf16.mxu0 0
  %2008 = vmatpush2.bf16.msra.mxu0 0
  %2009 = vmatprep.subr.bf16.mxu0 0
  %2010 = vmatpush2.bf16.msra.mxu0 0
  %2011 = vmatprep.subr.bf16.mxu0 0
  %2012 = vmatpush2.bf16.msra.mxu0 0
  %2013 = vmatprep.subr.bf16.mxu0 0
  %2014 = vmatpush2.bf16.msra.mxu0 0
  %2015 = vmatprep.subr.bf16.mxu0 0
  %2016 = vmatpush2.bf16.msra.mxu0 0
  %2017 = vmatprep.subr.bf16.mxu0 0
  %2018 = vmatpush2.bf16.msra.mxu0 0
  %2019 = vmatprep.mubr.bf16.mxu0 0
  %2020 = vmatmul.mubr.bf16.gmra.mxu0 %v1985
  %v2021 = vpop.f32.mrf.mxu0
  %v2022 = vadd.f32 %v1971, %v2021
  %v2023 = vpop.f32.mrf.mxu0
  %v2024 = vpop.f32.mrf.mxu0
  %v2025 = vadd.f32 %v1971, %v2024
  %v2026 = vpop.f32.mrf.mxu0
  %2027 = vdwg.mxu0
  %v2028 = vld [vmem:[%s1 + $0x50] sm:$0xf]
  %v2029 = vld [vmem:[%s1 + $0x54] sm:$0xf]
  %v2030 = vld [vmem:[%s1 + $0x58] sm:$0xf]
  %v2031 = vld [vmem:[%s1 + $0x5c] sm:$0xf]
  %v2032 = vpack.c.bf16 %v1957, %v1956
  %v2033 = vld [vmem:[%s3 + $0x11] sm:$0x1]
  %v2034 = vlaneseq
  %v2035 = vshrl.u32 %v2034, 7
  %v2036 = vsub.s32 0, %v2035
  %v2037 = vrot.slane %v2033, %v2036
  %v2042 = vunpack.c.l.b16 %v2028
  %v2043 = vunpack.c.l.b16 %v2029
  %v2044 = vunpack.c.l.b16 %v2030
  %v2045 = vunpack.c.l.b16 %v2031
  %v2046 = vpack.c.b16 %v2043, %v2042
  %v2047 = vpack.c.b16 %v2045, %v2044
  %v2051 = vsel %vm47, %v2032, 0
  %2053 = vmatprep.subr.bf16.mxu0 0
  %2054 = vmatpush1.bf16.msra.mxu0 0
  %2055 = vmatprep.subr.bf16.mxu0 0
  %2056 = vmatpush1.bf16.msra.mxu0 0
  %2057 = vmatprep.subr.bf16.mxu0 0
  %2058 = vmatpush1.bf16.msra.mxu0 0
  %2059 = vmatprep.subr.bf16.mxu0 0
  %2060 = vmatpush1.bf16.msra.mxu0 0
  %2061 = vmatprep.subr.bf16.mxu0 0
  %2062 = vmatpush1.bf16.msra.mxu0 0
  %2063 = vmatprep.subr.bf16.mxu0 0
  %2064 = vmatpush1.bf16.msra.mxu0 0
  %2065 = vmatprep.subr.bf16.mxu0 0
  %2066 = vmatpush1.bf16.msra.mxu0 %v2047
  %2067 = vmatprep.subr.bf16.mxu0 0
  %2068 = vmatpush1.bf16.msra.mxu0 %v2046
  %2069 = vmatprep.subr.bf16.mxu0 0
  %2070 = vmatpush2.bf16.msra.mxu0 0
  %2071 = vmatprep.subr.bf16.mxu0 0
  %2072 = vmatpush2.bf16.msra.mxu0 0
  %2073 = vmatprep.subr.bf16.mxu0 0
  %2074 = vmatpush2.bf16.msra.mxu0 0
  %2075 = vmatprep.subr.bf16.mxu0 0
  %2076 = vmatpush2.bf16.msra.mxu0 0
  %2077 = vmatprep.subr.bf16.mxu0 0
  %2078 = vmatpush2.bf16.msra.mxu0 0
  %2079 = vmatprep.subr.bf16.mxu0 0
  %2080 = vmatpush2.bf16.msra.mxu0 0
  %2081 = vmatprep.subr.bf16.mxu0 0
  %2082 = vmatpush2.bf16.msra.mxu0 0
  %2083 = vmatprep.subr.bf16.mxu0 0
  %2084 = vmatpush2.bf16.msra.mxu0 0
  %2085 = vmatprep.mubr.bf16.mxu0 0
  %2086 = vmatmul.mubr.bf16.gmra.mxu0 %v2051
  %v2087 = vpop.f32.mrf.mxu0
  %v2088 = vadd.f32 %v2037, %v2087
  %v2089 = vpop.f32.mrf.mxu0
  %v2090 = vpop.f32.mrf.mxu0
  %v2091 = vadd.f32 %v2037, %v2090
  %v2092 = vpop.f32.mrf.mxu0
  %2093 = vdwg.mxu0
  %v2094 = vld [vmem:[%s2 + $0x40] sm:$0xf]
  %v2095 = vld [vmem:[%s2 + $0x48] sm:$0xf]
  %v2096 = vld [vmem:[%s2 + $0x50] sm:$0xf]
  %v2097 = vld [vmem:[%s2 + $0x58] sm:$0xf]
  %v2098 = vld [vmem:[%s4 + $0x5] ss:$0 sm:$0xff]
  %v2103 = vunpack.c.l.b16 %v2094
  %v2104 = vunpack.c.l.b16 %v2095
  %v2105 = vunpack.c.l.b16 %v2096
  %v2106 = vunpack.c.l.b16 %v2097
  %v2107 = vpack.c.b16 %v2104, %v2103
  %v2108 = vpack.c.b16 %v2106, %v2105
  %2111 = vmatprep.subr.bf16.mxu0 0
  %2112 = vmatpush1.bf16.msra.mxu0 0
  %2113 = vmatprep.subr.bf16.mxu0 0
  %2114 = vmatpush1.bf16.msra.mxu0 0
  %2115 = vmatprep.subr.bf16.mxu0 0
  %2116 = vmatpush1.bf16.msra.mxu0 0
  %2117 = vmatprep.subr.bf16.mxu0 0
  %2118 = vmatpush1.bf16.msra.mxu0 0
  %2119 = vmatprep.subr.bf16.mxu0 0
  %2120 = vmatpush1.bf16.msra.mxu0 0
  %2121 = vmatprep.subr.bf16.mxu0 0
  %2122 = vmatpush1.bf16.msra.mxu0 0
  %2123 = vmatprep.subr.bf16.mxu0 0
  %2124 = vmatpush1.bf16.msra.mxu0 %v2108
  %2125 = vmatprep.subr.bf16.mxu0 0
  %2126 = vmatpush1.bf16.msra.mxu0 %v2107
  %2127 = vmatprep.subr.bf16.mxu0 0
  %2128 = vmatpush2.bf16.msra.mxu0 0
  %2129 = vmatprep.subr.bf16.mxu0 0
  %2130 = vmatpush2.bf16.msra.mxu0 0
  %2131 = vmatprep.subr.bf16.mxu0 0
  %2132 = vmatpush2.bf16.msra.mxu0 0
  %2133 = vmatprep.subr.bf16.mxu0 0
  %2134 = vmatpush2.bf16.msra.mxu0 0
  %2135 = vmatprep.subr.bf16.mxu0 0
  %2136 = vmatpush2.bf16.msra.mxu0 0
  %2137 = vmatprep.subr.bf16.mxu0 0
  %2138 = vmatpush2.bf16.msra.mxu0 0
  %2139 = vmatprep.subr.bf16.mxu0 0
  %2140 = vmatpush2.bf16.msra.mxu0 0
  %2141 = vmatprep.subr.bf16.mxu0 0
  %2142 = vmatpush2.bf16.msra.mxu0 0
  %2143 = vmatprep.mubr.bf16.mxu0 0
  %2144 = vmatmul.mubr.bf16.gmra.mxu0 %v2051
  %v2145 = vpop.f32.mrf.mxu0
  %v2146 = vadd.f32 %v2098, %v2145
  %v2147 = vpop.f32.mrf.mxu0
  %v2148 = vpop.f32.mrf.mxu0
  %v2149 = vadd.f32 %v2098, %v2148
  %v2150 = vpop.f32.mrf.mxu0
  %2151 = vdwg.mxu0
  %v2153 = vsel %vm395, %v2022, 0
  %v2156 = vsel %vm395, %v2088, 0
  %2158 = vmatprep.subr.mxu0 0.0
  %2159 = vmatpush1.xpose.msra.mxu0 0.0
  %2160 = vmatprep.subr.mxu0 0.0
  %2161 = vmatpush1.xpose.msra.mxu0 0.0
  %2162 = vmatprep.subr.mxu0 0.0
  %2163 = vmatpush1.xpose.msra.mxu0 0.0
  %2164 = vmatprep.subr.mxu0 0.0
  %2165 = vmatpush1.xpose.msra.mxu0 0.0
  %2166 = vmatprep.subr.mxu0 0.0
  %2167 = vmatpush1.xpose.msra.mxu0 0.0
  %2168 = vmatprep.subr.mxu0 0.0
  %2169 = vmatpush1.xpose.msra.mxu0 0.0
  %2170 = vmatprep.subr.mxu0 0.0
  %2171 = vmatpush1.xpose.msra.mxu0 0.0
  %2172 = vmatprep.subr.mxu0 0.0
  %2173 = vmatpush1.xpose.msra.mxu0 0.0
  %2174 = vmatprep.subr.mxu0 0.0
  %2175 = vmatpush1.xpose.msra.mxu0 0.0
  %2176 = vmatprep.subr.mxu0 0.0
  %2177 = vmatpush1.xpose.msra.mxu0 0.0
  %2178 = vmatprep.subr.mxu0 0.0
  %2179 = vmatpush1.xpose.msra.mxu0 0.0
  %2180 = vmatprep.subr.mxu0 0.0
  %2181 = vmatpush1.xpose.msra.mxu0 0.0
  %2182 = vmatprep.subr.mxu0 0.0
  %2183 = vmatpush1.xpose.msra.mxu0 0.0
  %2184 = vmatprep.subr.mxu0 0.0
  %2185 = vmatpush1.xpose.msra.mxu0 0.0
  %2186 = vmatprep.subr.mxu0 0.0
  %2187 = vmatpush1.xpose.msra.mxu0 0.0
  %2188 = vmatprep.subr.mxu0 0.0
  %2189 = vmatpush1.xpose.msra.mxu0 %v2156
  %2190 = vmatprep.subr.mxu0 0.0
  %2191 = vmatpush2.xpose.msra.mxu0 0.0
  %2192 = vmatprep.subr.mxu0 0.0
  %2193 = vmatpush2.xpose.msra.mxu0 0.0
  %2194 = vmatprep.subr.mxu0 0.0
  %2195 = vmatpush2.xpose.msra.mxu0 0.0
  %2196 = vmatprep.subr.mxu0 0.0
  %2197 = vmatpush2.xpose.msra.mxu0 0.0
  %2198 = vmatprep.subr.mxu0 0.0
  %2199 = vmatpush2.xpose.msra.mxu0 0.0
  %2200 = vmatprep.subr.mxu0 0.0
  %2201 = vmatpush2.xpose.msra.mxu0 0.0
  %2202 = vmatprep.subr.mxu0 0.0
  %2203 = vmatpush2.xpose.msra.mxu0 0.0
  %2204 = vmatprep.subr.mxu0 0.0
  %2205 = vmatpush2.xpose.msra.mxu0 0.0
  %2206 = vmatprep.subr.mxu0 0.0
  %2207 = vmatpush2.xpose.msra.mxu0 0.0
  %2208 = vmatprep.subr.mxu0 0.0
  %2209 = vmatpush2.xpose.msra.mxu0 0.0
  %2210 = vmatprep.subr.mxu0 0.0
  %2211 = vmatpush2.xpose.msra.mxu0 0.0
  %2212 = vmatprep.subr.mxu0 0.0
  %2213 = vmatpush2.xpose.msra.mxu0 0.0
  %2214 = vmatprep.subr.mxu0 0.0
  %2215 = vmatpush2.xpose.msra.mxu0 0.0
  %2216 = vmatprep.subr.mxu0 0.0
  %2217 = vmatpush2.xpose.msra.mxu0 0.0
  %2218 = vmatprep.subr.mxu0 0.0
  %2219 = vmatpush2.xpose.msra.mxu0 0.0
  %2220 = vmatprep.subr.mxu0 0.0
  %2221 = vmatpush2.xpose.msra.mxu0 0.0
  %2222 = vmatprep.mubr.f32.mxu0 0.0
  %2223 = vmatmul.mubr.f32.gmra.mxu0 %v2153
  %v2224 = vpop.f32.mrf.mxu0
  %v2225 = vadd.f32 %v21, %v2224
  %v2226 = vpop.f32.mrf.mxu0
  %2227 = vdwg.mxu0
  %v2229 = vsel %vm395, %v2025, 0
  %v2232 = vsel %vm395, %v2091, 0
  %2234 = vmatprep.subr.mxu0 0.0
  %2235 = vmatpush1.xpose.msra.mxu0 0.0
  %2236 = vmatprep.subr.mxu0 0.0
  %2237 = vmatpush1.xpose.msra.mxu0 0.0
  %2238 = vmatprep.subr.mxu0 0.0
  %2239 = vmatpush1.xpose.msra.mxu0 0.0
  %2240 = vmatprep.subr.mxu0 0.0
  %2241 = vmatpush1.xpose.msra.mxu0 0.0
  %2242 = vmatprep.subr.mxu0 0.0
  %2243 = vmatpush1.xpose.msra.mxu0 0.0
  %2244 = vmatprep.subr.mxu0 0.0
  %2245 = vmatpush1.xpose.msra.mxu0 0.0
  %2246 = vmatprep.subr.mxu0 0.0
  %2247 = vmatpush1.xpose.msra.mxu0 0.0
  %2248 = vmatprep.subr.mxu0 0.0
  %2249 = vmatpush1.xpose.msra.mxu0 0.0
  %2250 = vmatprep.subr.mxu0 0.0
  %2251 = vmatpush1.xpose.msra.mxu0 0.0
  %2252 = vmatprep.subr.mxu0 0.0
  %2253 = vmatpush1.xpose.msra.mxu0 0.0
  %2254 = vmatprep.subr.mxu0 0.0
  %2255 = vmatpush1.xpose.msra.mxu0 0.0
  %2256 = vmatprep.subr.mxu0 0.0
  %2257 = vmatpush1.xpose.msra.mxu0 0.0
  %2258 = vmatprep.subr.mxu0 0.0
  %2259 = vmatpush1.xpose.msra.mxu0 0.0
  %2260 = vmatprep.subr.mxu0 0.0
  %2261 = vmatpush1.xpose.msra.mxu0 0.0
  %2262 = vmatprep.subr.mxu0 0.0
  %2263 = vmatpush1.xpose.msra.mxu0 0.0
  %2264 = vmatprep.subr.mxu0 0.0
  %2265 = vmatpush1.xpose.msra.mxu0 %v2232
  %2266 = vmatprep.subr.mxu0 0.0
  %2267 = vmatpush2.xpose.msra.mxu0 0.0
  %2268 = vmatprep.subr.mxu0 0.0
  %2269 = vmatpush2.xpose.msra.mxu0 0.0
  %2270 = vmatprep.subr.mxu0 0.0
  %2271 = vmatpush2.xpose.msra.mxu0 0.0
  %2272 = vmatprep.subr.mxu0 0.0
  %2273 = vmatpush2.xpose.msra.mxu0 0.0
  %2274 = vmatprep.subr.mxu0 0.0
  %2275 = vmatpush2.xpose.msra.mxu0 0.0
  %2276 = vmatprep.subr.mxu0 0.0
  %2277 = vmatpush2.xpose.msra.mxu0 0.0
  %2278 = vmatprep.subr.mxu0 0.0
  %2279 = vmatpush2.xpose.msra.mxu0 0.0
  %2280 = vmatprep.subr.mxu0 0.0
  %2281 = vmatpush2.xpose.msra.mxu0 0.0
  %2282 = vmatprep.subr.mxu0 0.0
  %2283 = vmatpush2.xpose.msra.mxu0 0.0
  %2284 = vmatprep.subr.mxu0 0.0
  %2285 = vmatpush2.xpose.msra.mxu0 0.0
  %2286 = vmatprep.subr.mxu0 0.0
  %2287 = vmatpush2.xpose.msra.mxu0 0.0
  %2288 = vmatprep.subr.mxu0 0.0
  %2289 = vmatpush2.xpose.msra.mxu0 0.0
  %2290 = vmatprep.subr.mxu0 0.0
  %2291 = vmatpush2.xpose.msra.mxu0 0.0
  %2292 = vmatprep.subr.mxu0 0.0
  %2293 = vmatpush2.xpose.msra.mxu0 0.0
  %2294 = vmatprep.subr.mxu0 0.0
  %2295 = vmatpush2.xpose.msra.mxu0 0.0
  %2296 = vmatprep.subr.mxu0 0.0
  %2297 = vmatpush2.xpose.msra.mxu0 0.0
  %2298 = vmatprep.mubr.f32.mxu0 0.0
  %2299 = vmatmul.mubr.f32.gmra.mxu0 %v2229
  %v2300 = vpop.f32.mrf.mxu0
  %v2301 = vadd.f32 %v22, %v2300
  %v2302 = vpop.f32.mrf.mxu0
  %2303 = vdwg.mxu0
  %v2304 = vsel %vm395, %v2225, -inf
  %2305 = vmax.xlane.f32.xlu0 %v2304
  %v2306 = vpop.xlane.xlu0 %2305
  %v2307 = vsel %vm395, %v2301, -inf
  %2308 = vmax.xlane.f32.xlu0 %v2307
  %v2309 = vpop.xlane.xlu0 %2308
  %v2310 = vsub.f32 %v2225, %v2306
  %v2311 = vsub.f32 %v2301, %v2309
  %v2312 = vmul.f32 %v2310, 1.442695
  %v2313 = vpow.pop %v2312
  %v2314 = vmul.f32 %v2311, 1.442695
  %v2315 = vpow.pop %v2314
  %v2316 = vsel %vm395, %v2313, 0.0
  %2317 = vadd.xlane.f32.xlu0 %v2316
  %v2318 = vpop.xlane.xlu0 %2317
  %v2319 = vsel %vm395, %v2315, 0.0
  %2320 = vadd.xlane.f32.xlu0 %v2319
  %v2321 = vpop.xlane.xlu0 %2320
  %v2322 = vrcp.pop %v2318
  %v2323 = vrcp.pop %v2321
  %v2324 = vmul.f32 %v2313, %v2322
  %v2325 = vmul.f32 %v2315, %v2323
  %2326 = vrot.lane.b32.xlu0 %v2022, 120
  %v2327 = vpop.permute.xlu0 %2326
  %2328 = vrot.lane.b32.xlu0 %v2088, 120
  %v2329 = vpop.permute.xlu0 %2328
  %v2330 = vsel %vm395, %v2327, 0
  %v2332 = vsel %vm395, %v2329, 0
  %2334 = vmatprep.subr.mxu0 0.0
  %2335 = vmatpush1.xpose.msra.mxu0 0.0
  %2336 = vmatprep.subr.mxu0 0.0
  %2337 = vmatpush1.xpose.msra.mxu0 0.0
  %2338 = vmatprep.subr.mxu0 0.0
  %2339 = vmatpush1.xpose.msra.mxu0 0.0
  %2340 = vmatprep.subr.mxu0 0.0
  %2341 = vmatpush1.xpose.msra.mxu0 0.0
  %2342 = vmatprep.subr.mxu0 0.0
  %2343 = vmatpush1.xpose.msra.mxu0 0.0
  %2344 = vmatprep.subr.mxu0 0.0
  %2345 = vmatpush1.xpose.msra.mxu0 0.0
  %2346 = vmatprep.subr.mxu0 0.0
  %2347 = vmatpush1.xpose.msra.mxu0 0.0
  %2348 = vmatprep.subr.mxu0 0.0
  %2349 = vmatpush1.xpose.msra.mxu0 0.0
  %2350 = vmatprep.subr.mxu0 0.0
  %2351 = vmatpush1.xpose.msra.mxu0 0.0
  %2352 = vmatprep.subr.mxu0 0.0
  %2353 = vmatpush1.xpose.msra.mxu0 0.0
  %2354 = vmatprep.subr.mxu0 0.0
  %2355 = vmatpush1.xpose.msra.mxu0 0.0
  %2356 = vmatprep.subr.mxu0 0.0
  %2357 = vmatpush1.xpose.msra.mxu0 0.0
  %2358 = vmatprep.subr.mxu0 0.0
  %2359 = vmatpush1.xpose.msra.mxu0 0.0
  %2360 = vmatprep.subr.mxu0 0.0
  %2361 = vmatpush1.xpose.msra.mxu0 0.0
  %2362 = vmatprep.subr.mxu0 0.0
  %2363 = vmatpush1.xpose.msra.mxu0 0.0
  %2364 = vmatprep.subr.mxu0 0.0
  %2365 = vmatpush1.xpose.msra.mxu0 %v2332
  %2366 = vmatprep.subr.mxu0 0.0
  %2367 = vmatpush2.xpose.msra.mxu0 0.0
  %2368 = vmatprep.subr.mxu0 0.0
  %2369 = vmatpush2.xpose.msra.mxu0 0.0
  %2370 = vmatprep.subr.mxu0 0.0
  %2371 = vmatpush2.xpose.msra.mxu0 0.0
  %2372 = vmatprep.subr.mxu0 0.0
  %2373 = vmatpush2.xpose.msra.mxu0 0.0
  %2374 = vmatprep.subr.mxu0 0.0
  %2375 = vmatpush2.xpose.msra.mxu0 0.0
  %2376 = vmatprep.subr.mxu0 0.0
  %2377 = vmatpush2.xpose.msra.mxu0 0.0
  %2378 = vmatprep.subr.mxu0 0.0
  %2379 = vmatpush2.xpose.msra.mxu0 0.0
  %2380 = vmatprep.subr.mxu0 0.0
  %2381 = vmatpush2.xpose.msra.mxu0 0.0
  %2382 = vmatprep.subr.mxu0 0.0
  %2383 = vmatpush2.xpose.msra.mxu0 0.0
  %2384 = vmatprep.subr.mxu0 0.0
  %2385 = vmatpush2.xpose.msra.mxu0 0.0
  %2386 = vmatprep.subr.mxu0 0.0
  %2387 = vmatpush2.xpose.msra.mxu0 0.0
  %2388 = vmatprep.subr.mxu0 0.0
  %2389 = vmatpush2.xpose.msra.mxu0 0.0
  %2390 = vmatprep.subr.mxu0 0.0
  %2391 = vmatpush2.xpose.msra.mxu0 0.0
  %2392 = vmatprep.subr.mxu0 0.0
  %2393 = vmatpush2.xpose.msra.mxu0 0.0
  %2394 = vmatprep.subr.mxu0 0.0
  %2395 = vmatpush2.xpose.msra.mxu0 0.0
  %2396 = vmatprep.subr.mxu0 0.0
  %2397 = vmatpush2.xpose.msra.mxu0 0.0
  %2398 = vmatprep.mubr.f32.mxu0 0.0
  %2399 = vmatmul.mubr.f32.gmra.mxu0 %v2330
  %v2400 = vpop.f32.mrf.mxu0
  %v2401 = vadd.f32 %v21, %v2400
  %v2402 = vpop.f32.mrf.mxu0
  %2403 = vdwg.mxu0
  %2404 = vrot.lane.b32.xlu0 %v2025, 120
  %v2405 = vpop.permute.xlu0 %2404
  %2406 = vrot.lane.b32.xlu0 %v2091, 120
  %v2407 = vpop.permute.xlu0 %2406
  %v2408 = vsel %vm395, %v2405, 0
  %v2410 = vsel %vm395, %v2407, 0
  %2412 = vmatprep.subr.mxu0 0.0
  %2413 = vmatpush1.xpose.msra.mxu0 0.0
  %2414 = vmatprep.subr.mxu0 0.0
  %2415 = vmatpush1.xpose.msra.mxu0 0.0
  %2416 = vmatprep.subr.mxu0 0.0
  %2417 = vmatpush1.xpose.msra.mxu0 0.0
  %2418 = vmatprep.subr.mxu0 0.0
  %2419 = vmatpush1.xpose.msra.mxu0 0.0
  %2420 = vmatprep.subr.mxu0 0.0
  %2421 = vmatpush1.xpose.msra.mxu0 0.0
  %2422 = vmatprep.subr.mxu0 0.0
  %2423 = vmatpush1.xpose.msra.mxu0 0.0
  %2424 = vmatprep.subr.mxu0 0.0
  %2425 = vmatpush1.xpose.msra.mxu0 0.0
  %2426 = vmatprep.subr.mxu0 0.0
  %2427 = vmatpush1.xpose.msra.mxu0 0.0
  %2428 = vmatprep.subr.mxu0 0.0
  %2429 = vmatpush1.xpose.msra.mxu0 0.0
  %2430 = vmatprep.subr.mxu0 0.0
  %2431 = vmatpush1.xpose.msra.mxu0 0.0
  %2432 = vmatprep.subr.mxu0 0.0
  %2433 = vmatpush1.xpose.msra.mxu0 0.0
  %2434 = vmatprep.subr.mxu0 0.0
  %2435 = vmatpush1.xpose.msra.mxu0 0.0
  %2436 = vmatprep.subr.mxu0 0.0
  %2437 = vmatpush1.xpose.msra.mxu0 0.0
  %2438 = vmatprep.subr.mxu0 0.0
  %2439 = vmatpush1.xpose.msra.mxu0 0.0
  %2440 = vmatprep.subr.mxu0 0.0
  %2441 = vmatpush1.xpose.msra.mxu0 0.0
  %2442 = vmatprep.subr.mxu0 0.0
  %2443 = vmatpush1.xpose.msra.mxu0 %v2410
  %2444 = vmatprep.subr.mxu0 0.0
  %2445 = vmatpush2.xpose.msra.mxu0 0.0
  %2446 = vmatprep.subr.mxu0 0.0
  %2447 = vmatpush2.xpose.msra.mxu0 0.0
  %2448 = vmatprep.subr.mxu0 0.0
  %2449 = vmatpush2.xpose.msra.mxu0 0.0
  %2450 = vmatprep.subr.mxu0 0.0
  %2451 = vmatpush2.xpose.msra.mxu0 0.0
  %2452 = vmatprep.subr.mxu0 0.0
  %2453 = vmatpush2.xpose.msra.mxu0 0.0
  %2454 = vmatprep.subr.mxu0 0.0
  %2455 = vmatpush2.xpose.msra.mxu0 0.0
  %2456 = vmatprep.subr.mxu0 0.0
  %2457 = vmatpush2.xpose.msra.mxu0 0.0
  %2458 = vmatprep.subr.mxu0 0.0
  %2459 = vmatpush2.xpose.msra.mxu0 0.0
  %2460 = vmatprep.subr.mxu0 0.0
  %2461 = vmatpush2.xpose.msra.mxu0 0.0
  %2462 = vmatprep.subr.mxu0 0.0
  %2463 = vmatpush2.xpose.msra.mxu0 0.0
  %2464 = vmatprep.subr.mxu0 0.0
  %2465 = vmatpush2.xpose.msra.mxu0 0.0
  %2466 = vmatprep.subr.mxu0 0.0
  %2467 = vmatpush2.xpose.msra.mxu0 0.0
  %2468 = vmatprep.subr.mxu0 0.0
  %2469 = vmatpush2.xpose.msra.mxu0 0.0
  %2470 = vmatprep.subr.mxu0 0.0
  %2471 = vmatpush2.xpose.msra.mxu0 0.0
  %2472 = vmatprep.subr.mxu0 0.0
  %2473 = vmatpush2.xpose.msra.mxu0 0.0
  %2474 = vmatprep.subr.mxu0 0.0
  %2475 = vmatpush2.xpose.msra.mxu0 0.0
  %2476 = vmatprep.mubr.f32.mxu0 0.0
  %2477 = vmatmul.mubr.f32.gmra.mxu0 %v2408
  %v2478 = vpop.f32.mrf.mxu0
  %v2479 = vadd.f32 %v22, %v2478
  %v2480 = vpop.f32.mrf.mxu0
  %2481 = vdwg.mxu0
  %v2482 = vsel %vm395, %v2401, -inf
  %2483 = vmax.xlane.f32.xlu0 %v2482
  %v2484 = vpop.xlane.xlu0 %2483
  %v2485 = vsel %vm395, %v2479, -inf
  %2486 = vmax.xlane.f32.xlu0 %v2485
  %v2487 = vpop.xlane.xlu0 %2486
  %v2488 = vsub.f32 %v2401, %v2484
  %v2489 = vsub.f32 %v2479, %v2487
  %v2490 = vmul.f32 %v2488, 1.442695
  %v2491 = vpow.pop %v2490
  %v2492 = vmul.f32 %v2489, 1.442695
  %v2493 = vpow.pop %v2492
  %v2494 = vsel %vm395, %v2491, 0.0
  %2495 = vadd.xlane.f32.xlu0 %v2494
  %v2496 = vpop.xlane.xlu0 %2495
  %v2497 = vsel %vm395, %v2493, 0.0
  %2498 = vadd.xlane.f32.xlu0 %v2497
  %v2499 = vpop.xlane.xlu0 %2498
  %v2500 = vrcp.pop %v2496
  %v2501 = vrcp.pop %v2499
  %v2502 = vmul.f32 %v2491, %v2500
  %v2503 = vmul.f32 %v2493, %v2501
  %2505 = vrot.lane.b32.xlu0 %v2146, 96
  %v2506 = vpop.permute.xlu0 %2505
  %v2509 = vsel %vm395, %v2502, 0
  %2511 = vmatprep.subr.mxu0 0.0
  %2512 = vmatpush1.msra.mxu0 0.0
  %2513 = vmatprep.subr.mxu0 0.0
  %2514 = vmatpush1.msra.mxu0 0.0
  %2515 = vmatprep.subr.mxu0 0.0
  %2516 = vmatpush1.msra.mxu0 0.0
  %2517 = vmatprep.subr.mxu0 0.0
  %2518 = vmatpush1.msra.mxu0 0.0
  %2519 = vmatprep.subr.mxu0 0.0
  %2520 = vmatpush1.msra.mxu0 0.0
  %2521 = vmatprep.subr.mxu0 0.0
  %2522 = vmatpush1.msra.mxu0 0.0
  %2523 = vmatprep.subr.mxu0 0.0
  %2524 = vmatpush1.msra.mxu0 0.0
  %2525 = vmatprep.subr.mxu0 0.0
  %2526 = vmatpush1.msra.mxu0 0.0
  %2527 = vmatprep.subr.mxu0 0.0
  %2528 = vmatpush1.msra.mxu0 0.0
  %2529 = vmatprep.subr.mxu0 0.0
  %2530 = vmatpush1.msra.mxu0 0.0
  %2531 = vmatprep.subr.mxu0 0.0
  %2532 = vmatpush1.msra.mxu0 0.0
  %2533 = vmatprep.subr.mxu0 0.0
  %2534 = vmatpush1.msra.mxu0 0.0
  %2535 = vmatprep.subr.mxu0 0.0
  %2536 = vmatpush1.msra.mxu0 0.0
  %2537 = vmatprep.subr.mxu0 0.0
  %2538 = vmatpush1.msra.mxu0 0.0
  %2539 = vmatprep.subr.mxu0 0.0
  %2540 = vmatpush1.msra.mxu0 0.0
  %2541 = vmatprep.subr.mxu0 0.0
  %2542 = vmatpush1.msra.mxu0 %v2506
  %2543 = vmatprep.subr.mxu0 0.0
  %2544 = vmatpush2.msra.mxu0 0.0
  %2545 = vmatprep.subr.mxu0 0.0
  %2546 = vmatpush2.msra.mxu0 0.0
  %2547 = vmatprep.subr.mxu0 0.0
  %2548 = vmatpush2.msra.mxu0 0.0
  %2549 = vmatprep.subr.mxu0 0.0
  %2550 = vmatpush2.msra.mxu0 0.0
  %2551 = vmatprep.subr.mxu0 0.0
  %2552 = vmatpush2.msra.mxu0 0.0
  %2553 = vmatprep.subr.mxu0 0.0
  %2554 = vmatpush2.msra.mxu0 0.0
  %2555 = vmatprep.subr.mxu0 0.0
  %2556 = vmatpush2.msra.mxu0 0.0
  %2557 = vmatprep.subr.mxu0 0.0
  %2558 = vmatpush2.msra.mxu0 0.0
  %2559 = vmatprep.subr.mxu0 0.0
  %2560 = vmatpush2.msra.mxu0 0.0
  %2561 = vmatprep.subr.mxu0 0.0
  %2562 = vmatpush2.msra.mxu0 0.0
  %2563 = vmatprep.subr.mxu0 0.0
  %2564 = vmatpush2.msra.mxu0 0.0
  %2565 = vmatprep.subr.mxu0 0.0
  %2566 = vmatpush2.msra.mxu0 0.0
  %2567 = vmatprep.subr.mxu0 0.0
  %2568 = vmatpush2.msra.mxu0 0.0
  %2569 = vmatprep.subr.mxu0 0.0
  %2570 = vmatpush2.msra.mxu0 0.0
  %2571 = vmatprep.subr.mxu0 0.0
  %2572 = vmatpush2.msra.mxu0 0.0
  %2573 = vmatprep.subr.mxu0 0.0
  %2574 = vmatpush2.msra.mxu0 0.0
  %2575 = vmatprep.mubr.f32.mxu0 0.0
  %2576 = vmatmul.mubr.f32.gmra.mxu0 %v2509
  %v2577 = vpop.f32.mrf.mxu0
  %v2578 = vadd.f32 0.0, %v2577
  %v2579 = vpop.f32.mrf.mxu0
  %2580 = vdwg.mxu0
  %2582 = vrot.lane.b32.xlu0 %v2149, 96
  %v2583 = vpop.permute.xlu0 %2582
  %v2586 = vsel %vm395, %v2503, 0
  %2588 = vmatprep.subr.mxu0 0.0
  %2589 = vmatpush1.msra.mxu0 0.0
  %2590 = vmatprep.subr.mxu0 0.0
  %2591 = vmatpush1.msra.mxu0 0.0
  %2592 = vmatprep.subr.mxu0 0.0
  %2593 = vmatpush1.msra.mxu0 0.0
  %2594 = vmatprep.subr.mxu0 0.0
  %2595 = vmatpush1.msra.mxu0 0.0
  %2596 = vmatprep.subr.mxu0 0.0
  %2597 = vmatpush1.msra.mxu0 0.0
  %2598 = vmatprep.subr.mxu0 0.0
  %2599 = vmatpush1.msra.mxu0 0.0
  %2600 = vmatprep.subr.mxu0 0.0
  %2601 = vmatpush1.msra.mxu0 0.0
  %2602 = vmatprep.subr.mxu0 0.0
  %2603 = vmatpush1.msra.mxu0 0.0
  %2604 = vmatprep.subr.mxu0 0.0
  %2605 = vmatpush1.msra.mxu0 0.0
  %2606 = vmatprep.subr.mxu0 0.0
  %2607 = vmatpush1.msra.mxu0 0.0
  %2608 = vmatprep.subr.mxu0 0.0
  %2609 = vmatpush1.msra.mxu0 0.0
  %2610 = vmatprep.subr.mxu0 0.0
  %2611 = vmatpush1.msra.mxu0 0.0
  %2612 = vmatprep.subr.mxu0 0.0
  %2613 = vmatpush1.msra.mxu0 0.0
  %2614 = vmatprep.subr.mxu0 0.0
  %2615 = vmatpush1.msra.mxu0 0.0
  %2616 = vmatprep.subr.mxu0 0.0
  %2617 = vmatpush1.msra.mxu0 0.0
  %2618 = vmatprep.subr.mxu0 0.0
  %2619 = vmatpush1.msra.mxu0 %v2583
  %2620 = vmatprep.subr.mxu0 0.0
  %2621 = vmatpush2.msra.mxu0 0.0
  %2622 = vmatprep.subr.mxu0 0.0
  %2623 = vmatpush2.msra.mxu0 0.0
  %2624 = vmatprep.subr.mxu0 0.0
  %2625 = vmatpush2.msra.mxu0 0.0
  %2626 = vmatprep.subr.mxu0 0.0
  %2627 = vmatpush2.msra.mxu0 0.0
  %2628 = vmatprep.subr.mxu0 0.0
  %2629 = vmatpush2.msra.mxu0 0.0
  %2630 = vmatprep.subr.mxu0 0.0
  %2631 = vmatpush2.msra.mxu0 0.0
  %2632 = vmatprep.subr.mxu0 0.0
  %2633 = vmatpush2.msra.mxu0 0.0
  %2634 = vmatprep.subr.mxu0 0.0
  %2635 = vmatpush2.msra.mxu0 0.0
  %2636 = vmatprep.subr.mxu0 0.0
  %2637 = vmatpush2.msra.mxu0 0.0
  %2638 = vmatprep.subr.mxu0 0.0
  %2639 = vmatpush2.msra.mxu0 0.0
  %2640 = vmatprep.subr.mxu0 0.0
  %2641 = vmatpush2.msra.mxu0 0.0
  %2642 = vmatprep.subr.mxu0 0.0
  %2643 = vmatpush2.msra.mxu0 0.0
  %2644 = vmatprep.subr.mxu0 0.0
  %2645 = vmatpush2.msra.mxu0 0.0
  %2646 = vmatprep.subr.mxu0 0.0
  %2647 = vmatpush2.msra.mxu0 0.0
  %2648 = vmatprep.subr.mxu0 0.0
  %2649 = vmatpush2.msra.mxu0 0.0
  %2650 = vmatprep.subr.mxu0 0.0
  %2651 = vmatpush2.msra.mxu0 0.0
  %2652 = vmatprep.mubr.f32.mxu0 0.0
  %2653 = vmatmul.mubr.f32.gmra.mxu0 %v2586
  %v2654 = vpop.f32.mrf.mxu0
  %v2655 = vadd.f32 0.0, %v2654
  %v2656 = vpop.f32.mrf.mxu0
  %2657 = vdwg.mxu0
  %v2659 = vsel %vm395, %v2324, 0
  %2661 = vmatprep.subr.mxu0 0.0
  %2662 = vmatpush1.msra.mxu0 0.0
  %2663 = vmatprep.subr.mxu0 0.0
  %2664 = vmatpush1.msra.mxu0 0.0
  %2665 = vmatprep.subr.mxu0 0.0
  %2666 = vmatpush1.msra.mxu0 0.0
  %2667 = vmatprep.subr.mxu0 0.0
  %2668 = vmatpush1.msra.mxu0 0.0
  %2669 = vmatprep.subr.mxu0 0.0
  %2670 = vmatpush1.msra.mxu0 0.0
  %2671 = vmatprep.subr.mxu0 0.0
  %2672 = vmatpush1.msra.mxu0 0.0
  %2673 = vmatprep.subr.mxu0 0.0
  %2674 = vmatpush1.msra.mxu0 0.0
  %2675 = vmatprep.subr.mxu0 0.0
  %2676 = vmatpush1.msra.mxu0 0.0
  %2677 = vmatprep.subr.mxu0 0.0
  %2678 = vmatpush1.msra.mxu0 0.0
  %2679 = vmatprep.subr.mxu0 0.0
  %2680 = vmatpush1.msra.mxu0 0.0
  %2681 = vmatprep.subr.mxu0 0.0
  %2682 = vmatpush1.msra.mxu0 0.0
  %2683 = vmatprep.subr.mxu0 0.0
  %2684 = vmatpush1.msra.mxu0 0.0
  %2685 = vmatprep.subr.mxu0 0.0
  %2686 = vmatpush1.msra.mxu0 0.0
  %2687 = vmatprep.subr.mxu0 0.0
  %2688 = vmatpush1.msra.mxu0 0.0
  %2689 = vmatprep.subr.mxu0 0.0
  %2690 = vmatpush1.msra.mxu0 0.0
  %2691 = vmatprep.subr.mxu0 0.0
  %2692 = vmatpush1.msra.mxu0 %v2146
  %2693 = vmatprep.subr.mxu0 0.0
  %2694 = vmatpush2.msra.mxu0 0.0
  %2695 = vmatprep.subr.mxu0 0.0
  %2696 = vmatpush2.msra.mxu0 0.0
  %2697 = vmatprep.subr.mxu0 0.0
  %2698 = vmatpush2.msra.mxu0 0.0
  %2699 = vmatprep.subr.mxu0 0.0
  %2700 = vmatpush2.msra.mxu0 0.0
  %2701 = vmatprep.subr.mxu0 0.0
  %2702 = vmatpush2.msra.mxu0 0.0
  %2703 = vmatprep.subr.mxu0 0.0
  %2704 = vmatpush2.msra.mxu0 0.0
  %2705 = vmatprep.subr.mxu0 0.0
  %2706 = vmatpush2.msra.mxu0 0.0
  %2707 = vmatprep.subr.mxu0 0.0
  %2708 = vmatpush2.msra.mxu0 0.0
  %2709 = vmatprep.subr.mxu0 0.0
  %2710 = vmatpush2.msra.mxu0 0.0
  %2711 = vmatprep.subr.mxu0 0.0
  %2712 = vmatpush2.msra.mxu0 0.0
  %2713 = vmatprep.subr.mxu0 0.0
  %2714 = vmatpush2.msra.mxu0 0.0
  %2715 = vmatprep.subr.mxu0 0.0
  %2716 = vmatpush2.msra.mxu0 0.0
  %2717 = vmatprep.subr.mxu0 0.0
  %2718 = vmatpush2.msra.mxu0 0.0
  %2719 = vmatprep.subr.mxu0 0.0
  %2720 = vmatpush2.msra.mxu0 0.0
  %2721 = vmatprep.subr.mxu0 0.0
  %2722 = vmatpush2.msra.mxu0 0.0
  %2723 = vmatprep.subr.mxu0 0.0
  %2724 = vmatpush2.msra.mxu0 0.0
  %2725 = vmatprep.mubr.f32.mxu0 0.0
  %2726 = vmatmul.mubr.f32.gmra.mxu0 %v2659
  %v2727 = vpop.f32.mrf.mxu0
  %v2728 = vadd.f32 %v2578, %v2727
  %v2729 = vpop.f32.mrf.mxu0
  %2730 = vdwg.mxu0
  %v2732 = vsel %vm395, %v2325, 0
  %2734 = vmatprep.subr.mxu0 0.0
  %2735 = vmatpush1.msra.mxu0 0.0
  %2736 = vmatprep.subr.mxu0 0.0
  %2737 = vmatpush1.msra.mxu0 0.0
  %2738 = vmatprep.subr.mxu0 0.0
  %2739 = vmatpush1.msra.mxu0 0.0
  %2740 = vmatprep.subr.mxu0 0.0
  %2741 = vmatpush1.msra.mxu0 0.0
  %2742 = vmatprep.subr.mxu0 0.0
  %2743 = vmatpush1.msra.mxu0 0.0
  %2744 = vmatprep.subr.mxu0 0.0
  %2745 = vmatpush1.msra.mxu0 0.0
  %2746 = vmatprep.subr.mxu0 0.0
  %2747 = vmatpush1.msra.mxu0 0.0
  %2748 = vmatprep.subr.mxu0 0.0
  %2749 = vmatpush1.msra.mxu0 0.0
  %2750 = vmatprep.subr.mxu0 0.0
  %2751 = vmatpush1.msra.mxu0 0.0
  %2752 = vmatprep.subr.mxu0 0.0
  %2753 = vmatpush1.msra.mxu0 0.0
  %2754 = vmatprep.subr.mxu0 0.0
  %2755 = vmatpush1.msra.mxu0 0.0
  %2756 = vmatprep.subr.mxu0 0.0
  %2757 = vmatpush1.msra.mxu0 0.0
  %2758 = vmatprep.subr.mxu0 0.0
  %2759 = vmatpush1.msra.mxu0 0.0
  %2760 = vmatprep.subr.mxu0 0.0
  %2761 = vmatpush1.msra.mxu0 0.0
  %2762 = vmatprep.subr.mxu0 0.0
  %2763 = vmatpush1.msra.mxu0 0.0
  %2764 = vmatprep.subr.mxu0 0.0
  %2765 = vmatpush1.msra.mxu0 %v2149
  %2766 = vmatprep.subr.mxu0 0.0
  %2767 = vmatpush2.msra.mxu0 0.0
  %2768 = vmatprep.subr.mxu0 0.0
  %2769 = vmatpush2.msra.mxu0 0.0
  %2770 = vmatprep.subr.mxu0 0.0
  %2771 = vmatpush2.msra.mxu0 0.0
  %2772 = vmatprep.subr.mxu0 0.0
  %2773 = vmatpush2.msra.mxu0 0.0
  %2774 = vmatprep.subr.mxu0 0.0
  %2775 = vmatpush2.msra.mxu0 0.0
  %2776 = vmatprep.subr.mxu0 0.0
  %2777 = vmatpush2.msra.mxu0 0.0
  %2778 = vmatprep.subr.mxu0 0.0
  %2779 = vmatpush2.msra.mxu0 0.0
  %2780 = vmatprep.subr.mxu0 0.0
  %2781 = vmatpush2.msra.mxu0 0.0
  %2782 = vmatprep.subr.mxu0 0.0
  %2783 = vmatpush2.msra.mxu0 0.0
  %2784 = vmatprep.subr.mxu0 0.0
  %2785 = vmatpush2.msra.mxu0 0.0
  %2786 = vmatprep.subr.mxu0 0.0
  %2787 = vmatpush2.msra.mxu0 0.0
  %2788 = vmatprep.subr.mxu0 0.0
  %2789 = vmatpush2.msra.mxu0 0.0
  %2790 = vmatprep.subr.mxu0 0.0
  %2791 = vmatpush2.msra.mxu0 0.0
  %2792 = vmatprep.subr.mxu0 0.0
  %2793 = vmatpush2.msra.mxu0 0.0
  %2794 = vmatprep.subr.mxu0 0.0
  %2795 = vmatpush2.msra.mxu0 0.0
  %2796 = vmatprep.subr.mxu0 0.0
  %2797 = vmatpush2.msra.mxu0 0.0
  %2798 = vmatprep.mubr.f32.mxu0 0.0
  %2799 = vmatmul.mubr.f32.gmra.mxu0 %v2732
  %v2800 = vpop.f32.mrf.mxu0
  %v2801 = vadd.f32 %v2655, %v2800
  %v2802 = vpop.f32.mrf.mxu0
  %2803 = vdwg.mxu0
  %2804 = vrot.lane.b32.xlu0 %v2022, 112
  %v2805 = vpop.permute.xlu0 %2804
  %2806 = vrot.lane.b32.xlu0 %v2088, 112
  %v2807 = vpop.permute.xlu0 %2806
  %v2808 = vsel %vm395, %v2805, 0
  %v2810 = vsel %vm395, %v2807, 0
  %2812 = vmatprep.subr.mxu0 0.0
  %2813 = vmatpush1.xpose.msra.mxu0 0.0
  %2814 = vmatprep.subr.mxu0 0.0
  %2815 = vmatpush1.xpose.msra.mxu0 0.0
  %2816 = vmatprep.subr.mxu0 0.0
  %2817 = vmatpush1.xpose.msra.mxu0 0.0
  %2818 = vmatprep.subr.mxu0 0.0
  %2819 = vmatpush1.xpose.msra.mxu0 0.0
  %2820 = vmatprep.subr.mxu0 0.0
  %2821 = vmatpush1.xpose.msra.mxu0 0.0
  %2822 = vmatprep.subr.mxu0 0.0
  %2823 = vmatpush1.xpose.msra.mxu0 0.0
  %2824 = vmatprep.subr.mxu0 0.0
  %2825 = vmatpush1.xpose.msra.mxu0 0.0
  %2826 = vmatprep.subr.mxu0 0.0
  %2827 = vmatpush1.xpose.msra.mxu0 0.0
  %2828 = vmatprep.subr.mxu0 0.0
  %2829 = vmatpush1.xpose.msra.mxu0 0.0
  %2830 = vmatprep.subr.mxu0 0.0
  %2831 = vmatpush1.xpose.msra.mxu0 0.0
  %2832 = vmatprep.subr.mxu0 0.0
  %2833 = vmatpush1.xpose.msra.mxu0 0.0
  %2834 = vmatprep.subr.mxu0 0.0
  %2835 = vmatpush1.xpose.msra.mxu0 0.0
  %2836 = vmatprep.subr.mxu0 0.0
  %2837 = vmatpush1.xpose.msra.mxu0 0.0
  %2838 = vmatprep.subr.mxu0 0.0
  %2839 = vmatpush1.xpose.msra.mxu0 0.0
  %2840 = vmatprep.subr.mxu0 0.0
  %2841 = vmatpush1.xpose.msra.mxu0 0.0
  %2842 = vmatprep.subr.mxu0 0.0
  %2843 = vmatpush1.xpose.msra.mxu0 %v2810
  %2844 = vmatprep.subr.mxu0 0.0
  %2845 = vmatpush2.xpose.msra.mxu0 0.0
  %2846 = vmatprep.subr.mxu0 0.0
  %2847 = vmatpush2.xpose.msra.mxu0 0.0
  %2848 = vmatprep.subr.mxu0 0.0
  %2849 = vmatpush2.xpose.msra.mxu0 0.0
  %2850 = vmatprep.subr.mxu0 0.0
  %2851 = vmatpush2.xpose.msra.mxu0 0.0
  %2852 = vmatprep.subr.mxu0 0.0
  %2853 = vmatpush2.xpose.msra.mxu0 0.0
  %2854 = vmatprep.subr.mxu0 0.0
  %2855 = vmatpush2.xpose.msra.mxu0 0.0
  %2856 = vmatprep.subr.mxu0 0.0
  %2857 = vmatpush2.xpose.msra.mxu0 0.0
  %2858 = vmatprep.subr.mxu0 0.0
  %2859 = vmatpush2.xpose.msra.mxu0 0.0
  %2860 = vmatprep.subr.mxu0 0.0
  %2861 = vmatpush2.xpose.msra.mxu0 0.0
  %2862 = vmatprep.subr.mxu0 0.0
  %2863 = vmatpush2.xpose.msra.mxu0 0.0
  %2864 = vmatprep.subr.mxu0 0.0
  %2865 = vmatpush2.xpose.msra.mxu0 0.0
  %2866 = vmatprep.subr.mxu0 0.0
  %2867 = vmatpush2.xpose.msra.mxu0 0.0
  %2868 = vmatprep.subr.mxu0 0.0
  %2869 = vmatpush2.xpose.msra.mxu0 0.0
  %2870 = vmatprep.subr.mxu0 0.0
  %2871 = vmatpush2.xpose.msra.mxu0 0.0
  %2872 = vmatprep.subr.mxu0 0.0
  %2873 = vmatpush2.xpose.msra.mxu0 0.0
  %2874 = vmatprep.subr.mxu0 0.0
  %2875 = vmatpush2.xpose.msra.mxu0 0.0
  %2876 = vmatprep.mubr.f32.mxu0 0.0
  %2877 = vmatmul.mubr.f32.gmra.mxu0 %v2808
  %v2878 = vpop.f32.mrf.mxu0
  %v2879 = vadd.f32 %v21, %v2878
  %v2880 = vpop.f32.mrf.mxu0
  %2881 = vdwg.mxu0
  %2882 = vrot.lane.b32.xlu0 %v2025, 112
  %v2883 = vpop.permute.xlu0 %2882
  %2884 = vrot.lane.b32.xlu0 %v2091, 112
  %v2885 = vpop.permute.xlu0 %2884
  %v2886 = vsel %vm395, %v2883, 0
  %v2888 = vsel %vm395, %v2885, 0
  %2890 = vmatprep.subr.mxu0 0.0
  %2891 = vmatpush1.xpose.msra.mxu0 0.0
  %2892 = vmatprep.subr.mxu0 0.0
  %2893 = vmatpush1.xpose.msra.mxu0 0.0
  %2894 = vmatprep.subr.mxu0 0.0
  %2895 = vmatpush1.xpose.msra.mxu0 0.0
  %2896 = vmatprep.subr.mxu0 0.0
  %2897 = vmatpush1.xpose.msra.mxu0 0.0
  %2898 = vmatprep.subr.mxu0 0.0
  %2899 = vmatpush1.xpose.msra.mxu0 0.0
  %2900 = vmatprep.subr.mxu0 0.0
  %2901 = vmatpush1.xpose.msra.mxu0 0.0
  %2902 = vmatprep.subr.mxu0 0.0
  %2903 = vmatpush1.xpose.msra.mxu0 0.0
  %2904 = vmatprep.subr.mxu0 0.0
  %2905 = vmatpush1.xpose.msra.mxu0 0.0
  %2906 = vmatprep.subr.mxu0 0.0
  %2907 = vmatpush1.xpose.msra.mxu0 0.0
  %2908 = vmatprep.subr.mxu0 0.0
  %2909 = vmatpush1.xpose.msra.mxu0 0.0
  %2910 = vmatprep.subr.mxu0 0.0
  %2911 = vmatpush1.xpose.msra.mxu0 0.0
  %2912 = vmatprep.subr.mxu0 0.0
  %2913 = vmatpush1.xpose.msra.mxu0 0.0
  %2914 = vmatprep.subr.mxu0 0.0
  %2915 = vmatpush1.xpose.msra.mxu0 0.0
  %2916 = vmatprep.subr.mxu0 0.0
  %2917 = vmatpush1.xpose.msra.mxu0 0.0
  %2918 = vmatprep.subr.mxu0 0.0
  %2919 = vmatpush1.xpose.msra.mxu0 0.0
  %2920 = vmatprep.subr.mxu0 0.0
  %2921 = vmatpush1.xpose.msra.mxu0 %v2888
  %2922 = vmatprep.subr.mxu0 0.0
  %2923 = vmatpush2.xpose.msra.mxu0 0.0
  %2924 = vmatprep.subr.mxu0 0.0
  %2925 = vmatpush2.xpose.msra.mxu0 0.0
  %2926 = vmatprep.subr.mxu0 0.0
  %2927 = vmatpush2.xpose.msra.mxu0 0.0
  %2928 = vmatprep.subr.mxu0 0.0
  %2929 = vmatpush2.xpose.msra.mxu0 0.0
  %2930 = vmatprep.subr.mxu0 0.0
  %2931 = vmatpush2.xpose.msra.mxu0 0.0
  %2932 = vmatprep.subr.mxu0 0.0
  %2933 = vmatpush2.xpose.msra.mxu0 0.0
  %2934 = vmatprep.subr.mxu0 0.0
  %2935 = vmatpush2.xpose.msra.mxu0 0.0
  %2936 = vmatprep.subr.mxu0 0.0
  %2937 = vmatpush2.xpose.msra.mxu0 0.0
  %2938 = vmatprep.subr.mxu0 0.0
  %2939 = vmatpush2.xpose.msra.mxu0 0.0
  %2940 = vmatprep.subr.mxu0 0.0
  %2941 = vmatpush2.xpose.msra.mxu0 0.0
  %2942 = vmatprep.subr.mxu0 0.0
  %2943 = vmatpush2.xpose.msra.mxu0 0.0
  %2944 = vmatprep.subr.mxu0 0.0
  %2945 = vmatpush2.xpose.msra.mxu0 0.0
  %2946 = vmatprep.subr.mxu0 0.0
  %2947 = vmatpush2.xpose.msra.mxu0 0.0
  %2948 = vmatprep.subr.mxu0 0.0
  %2949 = vmatpush2.xpose.msra.mxu0 0.0
  %2950 = vmatprep.subr.mxu0 0.0
  %2951 = vmatpush2.xpose.msra.mxu0 0.0
  %2952 = vmatprep.subr.mxu0 0.0
  %2953 = vmatpush2.xpose.msra.mxu0 0.0
  %2954 = vmatprep.mubr.f32.mxu0 0.0
  %2955 = vmatmul.mubr.f32.gmra.mxu0 %v2886
  %v2956 = vpop.f32.mrf.mxu0
  %v2957 = vadd.f32 %v22, %v2956
  %v2958 = vpop.f32.mrf.mxu0
  %2959 = vdwg.mxu0
  %v2960 = vsel %vm395, %v2879, -inf
  %2961 = vmax.xlane.f32.xlu0 %v2960
  %v2962 = vpop.xlane.xlu0 %2961
  %v2963 = vsel %vm395, %v2957, -inf
  %2964 = vmax.xlane.f32.xlu0 %v2963
  %v2965 = vpop.xlane.xlu0 %2964
  %v2966 = vsub.f32 %v2879, %v2962
  %v2967 = vsub.f32 %v2957, %v2965
  %v2968 = vmul.f32 %v2966, 1.442695
  %v2969 = vpow.pop %v2968
  %v2970 = vmul.f32 %v2967, 1.442695
  %v2971 = vpow.pop %v2970
  %v2972 = vsel %vm395, %v2969, 0.0
  %2973 = vadd.xlane.f32.xlu0 %v2972
  %v2974 = vpop.xlane.xlu0 %2973
  %v2975 = vsel %vm395, %v2971, 0.0
  %2976 = vadd.xlane.f32.xlu0 %v2975
  %v2977 = vpop.xlane.xlu0 %2976
  %v2978 = vrcp.pop %v2974
  %v2979 = vrcp.pop %v2977
  %v2980 = vmul.f32 %v2969, %v2978
  %v2981 = vmul.f32 %v2971, %v2979
  %2982 = vrot.lane.b32.xlu0 %v2146, 64
  %v2983 = vpop.permute.xlu0 %2982
  %v2986 = vsel %vm395, %v2980, 0
  %2988 = vmatprep.subr.mxu0 0.0
  %2989 = vmatpush1.msra.mxu0 0.0
  %2990 = vmatprep.subr.mxu0 0.0
  %2991 = vmatpush1.msra.mxu0 0.0
  %2992 = vmatprep.subr.mxu0 0.0
  %2993 = vmatpush1.msra.mxu0 0.0
  %2994 = vmatprep.subr.mxu0 0.0
  %2995 = vmatpush1.msra.mxu0 0.0
  %2996 = vmatprep.subr.mxu0 0.0
  %2997 = vmatpush1.msra.mxu0 0.0
  %2998 = vmatprep.subr.mxu0 0.0
  %2999 = vmatpush1.msra.mxu0 0.0
  %3000 = vmatprep.subr.mxu0 0.0
  %3001 = vmatpush1.msra.mxu0 0.0
  %3002 = vmatprep.subr.mxu0 0.0
  %3003 = vmatpush1.msra.mxu0 0.0
  %3004 = vmatprep.subr.mxu0 0.0
  %3005 = vmatpush1.msra.mxu0 0.0
  %3006 = vmatprep.subr.mxu0 0.0
  %3007 = vmatpush1.msra.mxu0 0.0
  %3008 = vmatprep.subr.mxu0 0.0
  %3009 = vmatpush1.msra.mxu0 0.0
  %3010 = vmatprep.subr.mxu0 0.0
  %3011 = vmatpush1.msra.mxu0 0.0
  %3012 = vmatprep.subr.mxu0 0.0
  %3013 = vmatpush1.msra.mxu0 0.0
  %3014 = vmatprep.subr.mxu0 0.0
  %3015 = vmatpush1.msra.mxu0 0.0
  %3016 = vmatprep.subr.mxu0 0.0
  %3017 = vmatpush1.msra.mxu0 0.0
  %3018 = vmatprep.subr.mxu0 0.0
  %3019 = vmatpush1.msra.mxu0 %v2983
  %3020 = vmatprep.subr.mxu0 0.0
  %3021 = vmatpush2.msra.mxu0 0.0
  %3022 = vmatprep.subr.mxu0 0.0
  %3023 = vmatpush2.msra.mxu0 0.0
  %3024 = vmatprep.subr.mxu0 0.0
  %3025 = vmatpush2.msra.mxu0 0.0
  %3026 = vmatprep.subr.mxu0 0.0
  %3027 = vmatpush2.msra.mxu0 0.0
  %3028 = vmatprep.subr.mxu0 0.0
  %3029 = vmatpush2.msra.mxu0 0.0
  %3030 = vmatprep.subr.mxu0 0.0
  %3031 = vmatpush2.msra.mxu0 0.0
  %3032 = vmatprep.subr.mxu0 0.0
  %3033 = vmatpush2.msra.mxu0 0.0
  %3034 = vmatprep.subr.mxu0 0.0
  %3035 = vmatpush2.msra.mxu0 0.0
  %3036 = vmatprep.subr.mxu0 0.0
  %3037 = vmatpush2.msra.mxu0 0.0
  %3038 = vmatprep.subr.mxu0 0.0
  %3039 = vmatpush2.msra.mxu0 0.0
  %3040 = vmatprep.subr.mxu0 0.0
  %3041 = vmatpush2.msra.mxu0 0.0
  %3042 = vmatprep.subr.mxu0 0.0
  %3043 = vmatpush2.msra.mxu0 0.0
  %3044 = vmatprep.subr.mxu0 0.0
  %3045 = vmatpush2.msra.mxu0 0.0
  %3046 = vmatprep.subr.mxu0 0.0
  %3047 = vmatpush2.msra.mxu0 0.0
  %3048 = vmatprep.subr.mxu0 0.0
  %3049 = vmatpush2.msra.mxu0 0.0
  %3050 = vmatprep.subr.mxu0 0.0
  %3051 = vmatpush2.msra.mxu0 0.0
  %3052 = vmatprep.mubr.f32.mxu0 0.0
  %3053 = vmatmul.mubr.f32.gmra.mxu0 %v2986
  %v3054 = vpop.f32.mrf.mxu0
  %v3055 = vadd.f32 0.0, %v3054
  %v3056 = vpop.f32.mrf.mxu0
  %3057 = vdwg.mxu0
  %3058 = vrot.lane.b32.xlu0 %v2149, 64
  %v3059 = vpop.permute.xlu0 %3058
  %v3062 = vsel %vm395, %v2981, 0
  %3064 = vmatprep.subr.mxu0 0.0
  %3065 = vmatpush1.msra.mxu0 0.0
  %3066 = vmatprep.subr.mxu0 0.0
  %3067 = vmatpush1.msra.mxu0 0.0
  %3068 = vmatprep.subr.mxu0 0.0
  %3069 = vmatpush1.msra.mxu0 0.0
  %3070 = vmatprep.subr.mxu0 0.0
  %3071 = vmatpush1.msra.mxu0 0.0
  %3072 = vmatprep.subr.mxu0 0.0
  %3073 = vmatpush1.msra.mxu0 0.0
  %3074 = vmatprep.subr.mxu0 0.0
  %3075 = vmatpush1.msra.mxu0 0.0
  %3076 = vmatprep.subr.mxu0 0.0
  %3077 = vmatpush1.msra.mxu0 0.0
  %3078 = vmatprep.subr.mxu0 0.0
  %3079 = vmatpush1.msra.mxu0 0.0
  %3080 = vmatprep.subr.mxu0 0.0
  %3081 = vmatpush1.msra.mxu0 0.0
  %3082 = vmatprep.subr.mxu0 0.0
  %3083 = vmatpush1.msra.mxu0 0.0
  %3084 = vmatprep.subr.mxu0 0.0
  %3085 = vmatpush1.msra.mxu0 0.0
  %3086 = vmatprep.subr.mxu0 0.0
  %3087 = vmatpush1.msra.mxu0 0.0
  %3088 = vmatprep.subr.mxu0 0.0
  %3089 = vmatpush1.msra.mxu0 0.0
  %3090 = vmatprep.subr.mxu0 0.0
  %3091 = vmatpush1.msra.mxu0 0.0
  %3092 = vmatprep.subr.mxu0 0.0
  %3093 = vmatpush1.msra.mxu0 0.0
  %3094 = vmatprep.subr.mxu0 0.0
  %3095 = vmatpush1.msra.mxu0 %v3059
  %3096 = vmatprep.subr.mxu0 0.0
  %3097 = vmatpush2.msra.mxu0 0.0
  %3098 = vmatprep.subr.mxu0 0.0
  %3099 = vmatpush2.msra.mxu0 0.0
  %3100 = vmatprep.subr.mxu0 0.0
  %3101 = vmatpush2.msra.mxu0 0.0
  %3102 = vmatprep.subr.mxu0 0.0
  %3103 = vmatpush2.msra.mxu0 0.0
  %3104 = vmatprep.subr.mxu0 0.0
  %3105 = vmatpush2.msra.mxu0 0.0
  %3106 = vmatprep.subr.mxu0 0.0
  %3107 = vmatpush2.msra.mxu0 0.0
  %3108 = vmatprep.subr.mxu0 0.0
  %3109 = vmatpush2.msra.mxu0 0.0
  %3110 = vmatprep.subr.mxu0 0.0
  %3111 = vmatpush2.msra.mxu0 0.0
  %3112 = vmatprep.subr.mxu0 0.0
  %3113 = vmatpush2.msra.mxu0 0.0
  %3114 = vmatprep.subr.mxu0 0.0
  %3115 = vmatpush2.msra.mxu0 0.0
  %3116 = vmatprep.subr.mxu0 0.0
  %3117 = vmatpush2.msra.mxu0 0.0
  %3118 = vmatprep.subr.mxu0 0.0
  %3119 = vmatpush2.msra.mxu0 0.0
  %3120 = vmatprep.subr.mxu0 0.0
  %3121 = vmatpush2.msra.mxu0 0.0
  %3122 = vmatprep.subr.mxu0 0.0
  %3123 = vmatpush2.msra.mxu0 0.0
  %3124 = vmatprep.subr.mxu0 0.0
  %3125 = vmatpush2.msra.mxu0 0.0
  %3126 = vmatprep.subr.mxu0 0.0
  %3127 = vmatpush2.msra.mxu0 0.0
  %3128 = vmatprep.mubr.f32.mxu0 0.0
  %3129 = vmatmul.mubr.f32.gmra.mxu0 %v3062
  %v3130 = vpop.f32.mrf.mxu0
  %v3131 = vadd.f32 0.0, %v3130
  %v3132 = vpop.f32.mrf.mxu0
  %3133 = vdwg.mxu0
  %v3134 = vadd.f32 %v2728, %v3055
  %v3135 = vadd.f32 %v2801, %v3131
  %3136 = vrot.lane.b32.xlu0 %v2022, 104
  %v3137 = vpop.permute.xlu0 %3136
  %3138 = vrot.lane.b32.xlu0 %v2088, 104
  %v3139 = vpop.permute.xlu0 %3138
  %v3140 = vsel %vm395, %v3137, 0
  %v3142 = vsel %vm395, %v3139, 0
  %3144 = vmatprep.subr.mxu0 0.0
  %3145 = vmatpush1.xpose.msra.mxu0 0.0
  %3146 = vmatprep.subr.mxu0 0.0
  %3147 = vmatpush1.xpose.msra.mxu0 0.0
  %3148 = vmatprep.subr.mxu0 0.0
  %3149 = vmatpush1.xpose.msra.mxu0 0.0
  %3150 = vmatprep.subr.mxu0 0.0
  %3151 = vmatpush1.xpose.msra.mxu0 0.0
  %3152 = vmatprep.subr.mxu0 0.0
  %3153 = vmatpush1.xpose.msra.mxu0 0.0
  %3154 = vmatprep.subr.mxu0 0.0
  %3155 = vmatpush1.xpose.msra.mxu0 0.0
  %3156 = vmatprep.subr.mxu0 0.0
  %3157 = vmatpush1.xpose.msra.mxu0 0.0
  %3158 = vmatprep.subr.mxu0 0.0
  %3159 = vmatpush1.xpose.msra.mxu0 0.0
  %3160 = vmatprep.subr.mxu0 0.0
  %3161 = vmatpush1.xpose.msra.mxu0 0.0
  %3162 = vmatprep.subr.mxu0 0.0
  %3163 = vmatpush1.xpose.msra.mxu0 0.0
  %3164 = vmatprep.subr.mxu0 0.0
  %3165 = vmatpush1.xpose.msra.mxu0 0.0
  %3166 = vmatprep.subr.mxu0 0.0
  %3167 = vmatpush1.xpose.msra.mxu0 0.0
  %3168 = vmatprep.subr.mxu0 0.0
  %3169 = vmatpush1.xpose.msra.mxu0 0.0
  %3170 = vmatprep.subr.mxu0 0.0
  %3171 = vmatpush1.xpose.msra.mxu0 0.0
  %3172 = vmatprep.subr.mxu0 0.0
  %3173 = vmatpush1.xpose.msra.mxu0 0.0
  %3174 = vmatprep.subr.mxu0 0.0
  %3175 = vmatpush1.xpose.msra.mxu0 %v3142
  %3176 = vmatprep.subr.mxu0 0.0
  %3177 = vmatpush2.xpose.msra.mxu0 0.0
  %3178 = vmatprep.subr.mxu0 0.0
  %3179 = vmatpush2.xpose.msra.mxu0 0.0
  %3180 = vmatprep.subr.mxu0 0.0
  %3181 = vmatpush2.xpose.msra.mxu0 0.0
  %3182 = vmatprep.subr.mxu0 0.0
  %3183 = vmatpush2.xpose.msra.mxu0 0.0
  %3184 = vmatprep.subr.mxu0 0.0
  %3185 = vmatpush2.xpose.msra.mxu0 0.0
  %3186 = vmatprep.subr.mxu0 0.0
  %3187 = vmatpush2.xpose.msra.mxu0 0.0
  %3188 = vmatprep.subr.mxu0 0.0
  %3189 = vmatpush2.xpose.msra.mxu0 0.0
  %3190 = vmatprep.subr.mxu0 0.0
  %3191 = vmatpush2.xpose.msra.mxu0 0.0
  %3192 = vmatprep.subr.mxu0 0.0
  %3193 = vmatpush2.xpose.msra.mxu0 0.0
  %3194 = vmatprep.subr.mxu0 0.0
  %3195 = vmatpush2.xpose.msra.mxu0 0.0
  %3196 = vmatprep.subr.mxu0 0.0
  %3197 = vmatpush2.xpose.msra.mxu0 0.0
  %3198 = vmatprep.subr.mxu0 0.0
  %3199 = vmatpush2.xpose.msra.mxu0 0.0
  %3200 = vmatprep.subr.mxu0 0.0
  %3201 = vmatpush2.xpose.msra.mxu0 0.0
  %3202 = vmatprep.subr.mxu0 0.0
  %3203 = vmatpush2.xpose.msra.mxu0 0.0
  %3204 = vmatprep.subr.mxu0 0.0
  %3205 = vmatpush2.xpose.msra.mxu0 0.0
  %3206 = vmatprep.subr.mxu0 0.0
  %3207 = vmatpush2.xpose.msra.mxu0 0.0
  %3208 = vmatprep.mubr.f32.mxu0 0.0
  %3209 = vmatmul.mubr.f32.gmra.mxu0 %v3140
  %v3210 = vpop.f32.mrf.mxu0
  %v3211 = vadd.f32 %v21, %v3210
  %v3212 = vpop.f32.mrf.mxu0
  %3213 = vdwg.mxu0
  %3214 = vrot.lane.b32.xlu0 %v2025, 104
  %v3215 = vpop.permute.xlu0 %3214
  %3216 = vrot.lane.b32.xlu0 %v2091, 104
  %v3217 = vpop.permute.xlu0 %3216
  %v3218 = vsel %vm395, %v3215, 0
  %v3220 = vsel %vm395, %v3217, 0
  %3222 = vmatprep.subr.mxu0 0.0
  %3223 = vmatpush1.xpose.msra.mxu0 0.0
  %3224 = vmatprep.subr.mxu0 0.0
  %3225 = vmatpush1.xpose.msra.mxu0 0.0
  %3226 = vmatprep.subr.mxu0 0.0
  %3227 = vmatpush1.xpose.msra.mxu0 0.0
  %3228 = vmatprep.subr.mxu0 0.0
  %3229 = vmatpush1.xpose.msra.mxu0 0.0
  %3230 = vmatprep.subr.mxu0 0.0
  %3231 = vmatpush1.xpose.msra.mxu0 0.0
  %3232 = vmatprep.subr.mxu0 0.0
  %3233 = vmatpush1.xpose.msra.mxu0 0.0
  %3234 = vmatprep.subr.mxu0 0.0
  %3235 = vmatpush1.xpose.msra.mxu0 0.0
  %3236 = vmatprep.subr.mxu0 0.0
  %3237 = vmatpush1.xpose.msra.mxu0 0.0
  %3238 = vmatprep.subr.mxu0 0.0
  %3239 = vmatpush1.xpose.msra.mxu0 0.0
  %3240 = vmatprep.subr.mxu0 0.0
  %3241 = vmatpush1.xpose.msra.mxu0 0.0
  %3242 = vmatprep.subr.mxu0 0.0
  %3243 = vmatpush1.xpose.msra.mxu0 0.0
  %3244 = vmatprep.subr.mxu0 0.0
  %3245 = vmatpush1.xpose.msra.mxu0 0.0
  %3246 = vmatprep.subr.mxu0 0.0
  %3247 = vmatpush1.xpose.msra.mxu0 0.0
  %3248 = vmatprep.subr.mxu0 0.0
  %3249 = vmatpush1.xpose.msra.mxu0 0.0
  %3250 = vmatprep.subr.mxu0 0.0
  %3251 = vmatpush1.xpose.msra.mxu0 0.0
  %3252 = vmatprep.subr.mxu0 0.0
  %3253 = vmatpush1.xpose.msra.mxu0 %v3220
  %3254 = vmatprep.subr.mxu0 0.0
  %3255 = vmatpush2.xpose.msra.mxu0 0.0
  %3256 = vmatprep.subr.mxu0 0.0
  %3257 = vmatpush2.xpose.msra.mxu0 0.0
  %3258 = vmatprep.subr.mxu0 0.0
  %3259 = vmatpush2.xpose.msra.mxu0 0.0
  %3260 = vmatprep.subr.mxu0 0.0
  %3261 = vmatpush2.xpose.msra.mxu0 0.0
  %3262 = vmatprep.subr.mxu0 0.0
  %3263 = vmatpush2.xpose.msra.mxu0 0.0
  %3264 = vmatprep.subr.mxu0 0.0
  %3265 = vmatpush2.xpose.msra.mxu0 0.0
  %3266 = vmatprep.subr.mxu0 0.0
  %3267 = vmatpush2.xpose.msra.mxu0 0.0
  %3268 = vmatprep.subr.mxu0 0.0
  %3269 = vmatpush2.xpose.msra.mxu0 0.0
  %3270 = vmatprep.subr.mxu0 0.0
  %3271 = vmatpush2.xpose.msra.mxu0 0.0
  %3272 = vmatprep.subr.mxu0 0.0
  %3273 = vmatpush2.xpose.msra.mxu0 0.0
  %3274 = vmatprep.subr.mxu0 0.0
  %3275 = vmatpush2.xpose.msra.mxu0 0.0
  %3276 = vmatprep.subr.mxu0 0.0
  %3277 = vmatpush2.xpose.msra.mxu0 0.0
  %3278 = vmatprep.subr.mxu0 0.0
  %3279 = vmatpush2.xpose.msra.mxu0 0.0
  %3280 = vmatprep.subr.mxu0 0.0
  %3281 = vmatpush2.xpose.msra.mxu0 0.0
  %3282 = vmatprep.subr.mxu0 0.0
  %3283 = vmatpush2.xpose.msra.mxu0 0.0
  %3284 = vmatprep.subr.mxu0 0.0
  %3285 = vmatpush2.xpose.msra.mxu0 0.0
  %3286 = vmatprep.mubr.f32.mxu0 0.0
  %3287 = vmatmul.mubr.f32.gmra.mxu0 %v3218
  %v3288 = vpop.f32.mrf.mxu0
  %v3289 = vadd.f32 %v22, %v3288
  %v3290 = vpop.f32.mrf.mxu0
  %3291 = vdwg.mxu0
  %v3292 = vsel %vm395, %v3211, -inf
  %3293 = vmax.xlane.f32.xlu0 %v3292
  %v3294 = vpop.xlane.xlu0 %3293
  %v3295 = vsel %vm395, %v3289, -inf
  %3296 = vmax.xlane.f32.xlu0 %v3295
  %v3297 = vpop.xlane.xlu0 %3296
  %v3298 = vsub.f32 %v3211, %v3294
  %v3299 = vsub.f32 %v3289, %v3297
  %v3300 = vmul.f32 %v3298, 1.442695
  %v3301 = vpow.pop %v3300
  %v3302 = vmul.f32 %v3299, 1.442695
  %v3303 = vpow.pop %v3302
  %v3304 = vsel %vm395, %v3301, 0.0
  %3305 = vadd.xlane.f32.xlu0 %v3304
  %v3306 = vpop.xlane.xlu0 %3305
  %v3307 = vsel %vm395, %v3303, 0.0
  %3308 = vadd.xlane.f32.xlu0 %v3307
  %v3309 = vpop.xlane.xlu0 %3308
  %v3310 = vrcp.pop %v3306
  %v3311 = vrcp.pop %v3309
  %v3312 = vmul.f32 %v3301, %v3310
  %v3313 = vmul.f32 %v3303, %v3311
  %3314 = vrot.lane.b32.xlu0 %v2146, 32
  %v3315 = vpop.permute.xlu0 %3314
  %v3318 = vsel %vm395, %v3312, 0
  %3320 = vmatprep.subr.mxu0 0.0
  %3321 = vmatpush1.msra.mxu0 0.0
  %3322 = vmatprep.subr.mxu0 0.0
  %3323 = vmatpush1.msra.mxu0 0.0
  %3324 = vmatprep.subr.mxu0 0.0
  %3325 = vmatpush1.msra.mxu0 0.0
  %3326 = vmatprep.subr.mxu0 0.0
  %3327 = vmatpush1.msra.mxu0 0.0
  %3328 = vmatprep.subr.mxu0 0.0
  %3329 = vmatpush1.msra.mxu0 0.0
  %3330 = vmatprep.subr.mxu0 0.0
  %3331 = vmatpush1.msra.mxu0 0.0
  %3332 = vmatprep.subr.mxu0 0.0
  %3333 = vmatpush1.msra.mxu0 0.0
  %3334 = vmatprep.subr.mxu0 0.0
  %3335 = vmatpush1.msra.mxu0 0.0
  %3336 = vmatprep.subr.mxu0 0.0
  %3337 = vmatpush1.msra.mxu0 0.0
  %3338 = vmatprep.subr.mxu0 0.0
  %3339 = vmatpush1.msra.mxu0 0.0
  %3340 = vmatprep.subr.mxu0 0.0
  %3341 = vmatpush1.msra.mxu0 0.0
  %3342 = vmatprep.subr.mxu0 0.0
  %3343 = vmatpush1.msra.mxu0 0.0
  %3344 = vmatprep.subr.mxu0 0.0
  %3345 = vmatpush1.msra.mxu0 0.0
  %3346 = vmatprep.subr.mxu0 0.0
  %3347 = vmatpush1.msra.mxu0 0.0
  %3348 = vmatprep.subr.mxu0 0.0
  %3349 = vmatpush1.msra.mxu0 0.0
  %3350 = vmatprep.subr.mxu0 0.0
  %3351 = vmatpush1.msra.mxu0 %v3315
  %3352 = vmatprep.subr.mxu0 0.0
  %3353 = vmatpush2.msra.mxu0 0.0
  %3354 = vmatprep.subr.mxu0 0.0
  %3355 = vmatpush2.msra.mxu0 0.0
  %3356 = vmatprep.subr.mxu0 0.0
  %3357 = vmatpush2.msra.mxu0 0.0
  %3358 = vmatprep.subr.mxu0 0.0
  %3359 = vmatpush2.msra.mxu0 0.0
  %3360 = vmatprep.subr.mxu0 0.0
  %3361 = vmatpush2.msra.mxu0 0.0
  %3362 = vmatprep.subr.mxu0 0.0
  %3363 = vmatpush2.msra.mxu0 0.0
  %3364 = vmatprep.subr.mxu0 0.0
  %3365 = vmatpush2.msra.mxu0 0.0
  %3366 = vmatprep.subr.mxu0 0.0
  %3367 = vmatpush2.msra.mxu0 0.0
  %3368 = vmatprep.subr.mxu0 0.0
  %3369 = vmatpush2.msra.mxu0 0.0
  %3370 = vmatprep.subr.mxu0 0.0
  %3371 = vmatpush2.msra.mxu0 0.0
  %3372 = vmatprep.subr.mxu0 0.0
  %3373 = vmatpush2.msra.mxu0 0.0
  %3374 = vmatprep.subr.mxu0 0.0
  %3375 = vmatpush2.msra.mxu0 0.0
  %3376 = vmatprep.subr.mxu0 0.0
  %3377 = vmatpush2.msra.mxu0 0.0
  %3378 = vmatprep.subr.mxu0 0.0
  %3379 = vmatpush2.msra.mxu0 0.0
  %3380 = vmatprep.subr.mxu0 0.0
  %3381 = vmatpush2.msra.mxu0 0.0
  %3382 = vmatprep.subr.mxu0 0.0
  %3383 = vmatpush2.msra.mxu0 0.0
  %3384 = vmatprep.mubr.f32.mxu0 0.0
  %3385 = vmatmul.mubr.f32.gmra.mxu0 %v3318
  %v3386 = vpop.f32.mrf.mxu0
  %v3387 = vadd.f32 0.0, %v3386
  %v3388 = vpop.f32.mrf.mxu0
  %3389 = vdwg.mxu0
  %3390 = vrot.lane.b32.xlu0 %v2149, 32
  %v3391 = vpop.permute.xlu0 %3390
  %v3394 = vsel %vm395, %v3313, 0
  %3396 = vmatprep.subr.mxu0 0.0
  %3397 = vmatpush1.msra.mxu0 0.0
  %3398 = vmatprep.subr.mxu0 0.0
  %3399 = vmatpush1.msra.mxu0 0.0
  %3400 = vmatprep.subr.mxu0 0.0
  %3401 = vmatpush1.msra.mxu0 0.0
  %3402 = vmatprep.subr.mxu0 0.0
  %3403 = vmatpush1.msra.mxu0 0.0
  %3404 = vmatprep.subr.mxu0 0.0
  %3405 = vmatpush1.msra.mxu0 0.0
  %3406 = vmatprep.subr.mxu0 0.0
  %3407 = vmatpush1.msra.mxu0 0.0
  %3408 = vmatprep.subr.mxu0 0.0
  %3409 = vmatpush1.msra.mxu0 0.0
  %3410 = vmatprep.subr.mxu0 0.0
  %3411 = vmatpush1.msra.mxu0 0.0
  %3412 = vmatprep.subr.mxu0 0.0
  %3413 = vmatpush1.msra.mxu0 0.0
  %3414 = vmatprep.subr.mxu0 0.0
  %3415 = vmatpush1.msra.mxu0 0.0
  %3416 = vmatprep.subr.mxu0 0.0
  %3417 = vmatpush1.msra.mxu0 0.0
  %3418 = vmatprep.subr.mxu0 0.0
  %3419 = vmatpush1.msra.mxu0 0.0
  %3420 = vmatprep.subr.mxu0 0.0
  %3421 = vmatpush1.msra.mxu0 0.0
  %3422 = vmatprep.subr.mxu0 0.0
  %3423 = vmatpush1.msra.mxu0 0.0
  %3424 = vmatprep.subr.mxu0 0.0
  %3425 = vmatpush1.msra.mxu0 0.0
  %3426 = vmatprep.subr.mxu0 0.0
  %3427 = vmatpush1.msra.mxu0 %v3391
  %3428 = vmatprep.subr.mxu0 0.0
  %3429 = vmatpush2.msra.mxu0 0.0
  %3430 = vmatprep.subr.mxu0 0.0
  %3431 = vmatpush2.msra.mxu0 0.0
  %3432 = vmatprep.subr.mxu0 0.0
  %3433 = vmatpush2.msra.mxu0 0.0
  %3434 = vmatprep.subr.mxu0 0.0
  %3435 = vmatpush2.msra.mxu0 0.0
  %3436 = vmatprep.subr.mxu0 0.0
  %3437 = vmatpush2.msra.mxu0 0.0
  %3438 = vmatprep.subr.mxu0 0.0
  %3439 = vmatpush2.msra.mxu0 0.0
  %3440 = vmatprep.subr.mxu0 0.0
  %3441 = vmatpush2.msra.mxu0 0.0
  %3442 = vmatprep.subr.mxu0 0.0
  %3443 = vmatpush2.msra.mxu0 0.0
  %3444 = vmatprep.subr.mxu0 0.0
  %3445 = vmatpush2.msra.mxu0 0.0
  %3446 = vmatprep.subr.mxu0 0.0
  %3447 = vmatpush2.msra.mxu0 0.0
  %3448 = vmatprep.subr.mxu0 0.0
  %3449 = vmatpush2.msra.mxu0 0.0
  %3450 = vmatprep.subr.mxu0 0.0
  %3451 = vmatpush2.msra.mxu0 0.0
  %3452 = vmatprep.subr.mxu0 0.0
  %3453 = vmatpush2.msra.mxu0 0.0
  %3454 = vmatprep.subr.mxu0 0.0
  %3455 = vmatpush2.msra.mxu0 0.0
  %3456 = vmatprep.subr.mxu0 0.0
  %3457 = vmatpush2.msra.mxu0 0.0
  %3458 = vmatprep.subr.mxu0 0.0
  %3459 = vmatpush2.msra.mxu0 0.0
  %3460 = vmatprep.mubr.f32.mxu0 0.0
  %3461 = vmatmul.mubr.f32.gmra.mxu0 %v3394
  %v3462 = vpop.f32.mrf.mxu0
  %v3463 = vadd.f32 0.0, %v3462
  %v3464 = vpop.f32.mrf.mxu0
  %3465 = vdwg.mxu0
  %v3466 = vadd.f32 %v3134, %v3387
  %v3467 = vadd.f32 %v3135, %v3463
  %v3468 = vld [vmem:[%s3 + $0x12] sm:$0x1]
  %v3469 = vlaneseq
  %v3470 = vshrl.u32 %v3469, 7
  %v3471 = vsub.s32 0, %v3470
  %v3472 = vrot.slane %v3468, %v3471
  %v3473 = vadd.f32 %v3466, %v3472
  %v3474 = vadd.f32 %v3467, %v3472
  %v3475 = vadd.f32 %v1960, %v3473
  %v3476 = vadd.f32 %v1961, %v3474
  %v3477 = vsel %vm47, %v3475, 0.0
  %3478 = vadd.xlane.f32.xlu0 %v3477
  %v3479 = vpop.xlane.xlu0 %3478
  %v3480 = vsel %vm47, %v3476, 0.0
  %3481 = vadd.xlane.f32.xlu0 %v3480
  %v3482 = vpop.xlane.xlu0 %3481
  %v3483 = vmul.f32 %v3479, %v100
  %v3484 = vmul.f32 %v3482, %v100
  %v3485 = vmul.f32 %v3475, %v3475
  %v3486 = vmul.f32 %v3476, %v3476
  %v3487 = vsel %vm47, %v3485, 0.0
  %3488 = vadd.xlane.f32.xlu0 %v3487
  %v3489 = vpop.xlane.xlu0 %3488
  %v3490 = vsel %vm47, %v3486, 0.0
  %3491 = vadd.xlane.f32.xlu0 %v3490
  %v3492 = vpop.xlane.xlu0 %3491
  %v3493 = vmul.f32 %v3489, %v100
  %v3494 = vmul.f32 %v3492, %v100
  %v3495 = vmul.f32 %v3483, %v3483
  %v3496 = vmul.f32 %v3484, %v3484
  %v3497 = vsub.f32 %v3493, %v3495
  %v3498 = vsub.f32 %v3494, %v3496
  %v3499 = vsub.f32 %v3475, %v3483
  %v3500 = vsub.f32 %v3476, %v3484
  %v3501 = vadd.f32 %v3497, 1e-05
  %v3502 = vadd.f32 %v3498, 1e-05
  %v3503 = vrsqrt.pop %v3501
  %v3504 = vrsqrt.pop %v3502
  %v3505 = vmul.f32 %v3499, %v3503
  %v3506 = vmul.f32 %v3500, %v3504
  %v3507 = vld [vmem:[%s3 + $0x13] sm:$0x1]
  %v3508 = vlaneseq
  %v3509 = vshrl.u32 %v3508, 7
  %v3510 = vsub.s32 0, %v3509
  %v3511 = vrot.slane %v3507, %v3510
  %v3512 = vmul.f32 %v3505, %v3511
  %v3513 = vmul.f32 %v3506, %v3511
  %v3514 = vld [vmem:[%s3 + $0x14] sm:$0x1]
  %v3515 = vlaneseq
  %v3516 = vshrl.u32 %v3515, 7
  %v3517 = vsub.s32 0, %v3516
  %v3518 = vrot.slane %v3514, %v3517
  %v3519 = vadd.f32 %v3512, %v3518
  %v3520 = vadd.f32 %v3513, %v3518
  %v3521 = vld [vmem:[%s1 + $0x60] sm:$0xf]
  %v3522 = vld [vmem:[%s1 + $0x64] sm:$0xf]
  %v3523 = vld [vmem:[%s1 + $0x68] sm:$0xf]
  %v3524 = vld [vmem:[%s1 + $0x6c] sm:$0xf]
  %v3525 = vpack.c.bf16 %v3520, %v3519
  %v3526 = vld [vmem:[%s4 + $0x2] ss:$0 sm:$0xff]
  %v3531 = vunpack.c.l.b16 %v3521
  %v3532 = vunpack.c.l.b16 %v3522
  %v3533 = vunpack.c.l.b16 %v3523
  %v3534 = vunpack.c.l.b16 %v3524
  %v3535 = vpack.c.b16 %v3532, %v3531
  %v3536 = vpack.c.b16 %v3534, %v3533
  %v3540 = vsel %vm47, %v3525, 0
  %3542 = vmatprep.subr.bf16.mxu0 0
  %3543 = vmatpush1.bf16.msra.mxu0 0
  %3544 = vmatprep.subr.bf16.mxu0 0
  %3545 = vmatpush1.bf16.msra.mxu0 0
  %3546 = vmatprep.subr.bf16.mxu0 0
  %3547 = vmatpush1.bf16.msra.mxu0 0
  %3548 = vmatprep.subr.bf16.mxu0 0
  %3549 = vmatpush1.bf16.msra.mxu0 0
  %3550 = vmatprep.subr.bf16.mxu0 0
  %3551 = vmatpush1.bf16.msra.mxu0 0
  %3552 = vmatprep.subr.bf16.mxu0 0
  %3553 = vmatpush1.bf16.msra.mxu0 0
  %3554 = vmatprep.subr.bf16.mxu0 0
  %3555 = vmatpush1.bf16.msra.mxu0 %v3536
  %3556 = vmatprep.subr.bf16.mxu0 0
  %3557 = vmatpush1.bf16.msra.mxu0 %v3535
  %3558 = vmatprep.subr.bf16.mxu0 0
  %3559 = vmatpush2.bf16.msra.mxu0 0
  %3560 = vmatprep.subr.bf16.mxu0 0
  %3561 = vmatpush2.bf16.msra.mxu0 0
  %3562 = vmatprep.subr.bf16.mxu0 0
  %3563 = vmatpush2.bf16.msra.mxu0 0
  %3564 = vmatprep.subr.bf16.mxu0 0
  %3565 = vmatpush2.bf16.msra.mxu0 0
  %3566 = vmatprep.subr.bf16.mxu0 0
  %3567 = vmatpush2.bf16.msra.mxu0 0
  %3568 = vmatprep.subr.bf16.mxu0 0
  %3569 = vmatpush2.bf16.msra.mxu0 0
  %3570 = vmatprep.subr.bf16.mxu0 0
  %3571 = vmatpush2.bf16.msra.mxu0 0
  %3572 = vmatprep.subr.bf16.mxu0 0
  %3573 = vmatpush2.bf16.msra.mxu0 0
  %3574 = vmatprep.mubr.bf16.mxu0 0
  %3575 = vmatmul.mubr.bf16.gmra.mxu0 %v3540
  %v3576 = vpop.f32.mrf.mxu0
  %v3577 = vadd.f32 %v3526, %v3576
  %v3578 = vpop.f32.mrf.mxu0
  %v3579 = vpop.f32.mrf.mxu0
  %v3580 = vadd.f32 %v3526, %v3579
  %v3581 = vpop.f32.mrf.mxu0
  %3582 = vdwg.mxu0
  %vm3583 = vcmask 31744
  %v3584 = vsel %vm3583, %v3577, -inf
  %3585 = vmax.xlane.f32.xlu0 %v3584
  %v3586 = vpop.xlane.xlu0 %3585
  %v3587 = vsel %vm3583, %v3580, -inf
  %3588 = vmax.xlane.f32.xlu0 %v3587
  %v3589 = vpop.xlane.xlu0 %3588
  %v3590 = vsub.f32 %v3577, %v3586
  %v3591 = vsub.f32 %v3580, %v3589
  %v3592 = vmul.f32 %v3590, 1.442695
  %v3593 = vpow.pop %v3592
  %v3594 = vmul.f32 %v3591, 1.442695
  %v3595 = vpow.pop %v3594
  %v3596 = vsel %vm3583, %v3593, 0.0
  %3597 = vadd.xlane.f32.xlu0 %v3596
  %v3598 = vpop.xlane.xlu0 %3597
  %v3599 = vsel %vm3583, %v3595, 0.0
  %3600 = vadd.xlane.f32.xlu0 %v3599
  %v3601 = vpop.xlane.xlu0 %3600
  %v3602 = vrcp.pop %v3598
  %v3603 = vmul.f32 %v3593, %v3602
  %v3604 = vrcp.pop %v3601
  %v3605 = vmul.f32 %v3595, %v3604
  %vm3606 = vcmask 64544
  %v3607 = vsel %vm3606, %v3577, -inf
  %3608 = vmax.xlane.f32.xlu0 %v3607
  %v3609 = vpop.xlane.xlu0 %3608
  %v3610 = vsel %vm3606, %v3580, -inf
  %3611 = vmax.xlane.f32.xlu0 %v3610
  %v3612 = vpop.xlane.xlu0 %3611
  %v3613 = vsub.f32 %v3577, %v3609
  %v3614 = vsub.f32 %v3580, %v3612
  %v3615 = vmul.f32 %v3613, 1.442695
  %v3616 = vpow.pop %v3615
  %v3617 = vmul.f32 %v3614, 1.442695
  %v3618 = vpow.pop %v3617
  %3621 = vrot.lane.b32.xlu0 %v3616, 124
  %v3622 = vpop.permute.xlu0 %3621
  %3623 = vrot.lane.b32.xlu0 %v3618, 124
  %v3624 = vpop.permute.xlu0 %3623
  %v3627 = vsel %vm3583, %v3622, 0.0
  %3628 = vadd.xlane.f32.xlu0 %v3627
  %v3629 = vpop.xlane.xlu0 %3628
  %v3630 = vsel %vm3583, %v3624, 0.0
  %3631 = vadd.xlane.f32.xlu0 %v3630
  %v3632 = vpop.xlane.xlu0 %3631
  %v3633 = vrcp.pop %v3629
  %v3634 = vmul.f32 %v3616, %v3633
  %v3635 = vrcp.pop %v3632
  %v3636 = vmul.f32 %v3618, %v3635
  %3639 = vrot.lane.b32.xlu0 %v3634, 124
  %v3640 = vpop.permute.xlu0 %3639
  %3641 = vrot.lane.b32.xlu0 %v3636, 124
  %v3642 = vpop.permute.xlu0 %3641
  %v3643 = vld [vmem:[%s2 + $0xa0] sm:$0xff]
  %v3644 = vld [vmem:[%s2 + $0xa8] sm:$0xff]
  %v3645 = vld [vmem:[%s2 + $0xb0] sm:$0xff]
  %v3646 = vld [vmem:[%s2 + $0xb8] sm:$0xff]
  %s3647 = scalar_lea.vmem %s4, 1
  %v3648 = vld [vmem:[%s3647] ss:$8 sm:$0x3]
  %v3650 = vlaneseq
  %v3651 = vshrl.u32 %v3650, 7
  %v3652 = vsub.s32 0, %v3651
  %v3653 = vrot.slane %v3648, %v3652
  %v3654 = vlaneseq
  %v3655 = vshrl.u32 %v3654, 7
  %v3656 = vsub.s32 1, %v3655
  %v3657 = vrot.slane %v3648, %v3656
  %v3664 = vunpack.c.l.b16 %v3643
  %v3665 = vunpack.c.h.b16 %v3643
  %v3666 = vunpack.c.l.b16 %v3644
  %v3667 = vunpack.c.h.b16 %v3644
  %v3668 = vunpack.c.l.b16 %v3645
  %v3669 = vunpack.c.h.b16 %v3645
  %v3670 = vunpack.c.l.b16 %v3646
  %v3671 = vunpack.c.h.b16 %v3646
  %v3672 = vpack.c.b16 %v3666, %v3664
  %v3673 = vpack.c.b16 %v3667, %v3665
  %v3674 = vpack.c.b16 %v3670, %v3668
  %v3675 = vpack.c.b16 %v3671, %v3669
  %3680 = vmatprep.subr.bf16.mxu0 0
  %3681 = vmatpush1.bf16.msra.mxu0 0
  %3682 = vmatprep.subr.bf16.mxu0 0
  %3683 = vmatpush1.bf16.msra.mxu0 0
  %3684 = vmatprep.subr.bf16.mxu0 0
  %3685 = vmatpush1.bf16.msra.mxu0 0
  %3686 = vmatprep.subr.bf16.mxu0 0
  %3687 = vmatpush1.bf16.msra.mxu0 0
  %3688 = vmatprep.subr.bf16.mxu0 0
  %3689 = vmatpush1.bf16.msra.mxu0 0
  %3690 = vmatprep.subr.bf16.mxu0 0
  %3691 = vmatpush1.bf16.msra.mxu0 0
  %3692 = vmatprep.subr.bf16.mxu0 %v3675
  %3693 = vmatpush1.bf16.msra.mxu0 %v3674
  %3694 = vmatprep.subr.bf16.mxu0 %v3673
  %3695 = vmatpush1.bf16.msra.mxu0 %v3672
  %3696 = vmatprep.subr.bf16.mxu0 0
  %3697 = vmatpush2.bf16.msra.mxu0 0
  %3698 = vmatprep.subr.bf16.mxu0 0
  %3699 = vmatpush2.bf16.msra.mxu0 0
  %3700 = vmatprep.subr.bf16.mxu0 0
  %3701 = vmatpush2.bf16.msra.mxu0 0
  %3702 = vmatprep.subr.bf16.mxu0 0
  %3703 = vmatpush2.bf16.msra.mxu0 0
  %3704 = vmatprep.subr.bf16.mxu0 0
  %3705 = vmatpush2.bf16.msra.mxu0 0
  %3706 = vmatprep.subr.bf16.mxu0 0
  %3707 = vmatpush2.bf16.msra.mxu0 0
  %3708 = vmatprep.subr.bf16.mxu0 0
  %3709 = vmatpush2.bf16.msra.mxu0 0
  %3710 = vmatprep.subr.bf16.mxu0 0
  %3711 = vmatpush2.bf16.msra.mxu0 0
  %3712 = vmatprep.mubr.bf16.mxu0 0
  %3713 = vmatmul.mubr.bf16.gmra.mxu0 %v3540
  %v3714 = vpop.f32.mrf.mxu0
  %v3715 = vadd.f32 %v3653, %v3714
  %v3716 = vpop.f32.mrf.mxu0
  %v3717 = vadd.f32 %v3657, %v3716
  %v3718 = vpop.f32.mrf.mxu0
  %v3719 = vadd.f32 %v3653, %v3718
  %v3720 = vpop.f32.mrf.mxu0
  %v3721 = vadd.f32 %v3657, %v3720
  %3722 = vdwg.mxu0
  %v3723 = vmax.f32 %v3715, 0.0
  %v3724 = vmax.f32 %v3717, 0.0
  %v3725 = vmax.f32 %v3719, 0.0
  %v3726 = vmax.f32 %v3721, 0.0
  %v3727 = vld [vmem:[%s4 + $0x10] sm:$0xf]
  %v3728 = vld [vmem:[%s4 + $0x18] sm:$0xf]
  %v3730 = vsel %vm3583, %v3603, 0
  %v3733 = vsel %vm3583, %v3605, 0
  %v3735 = vsel %vm3583, %v3640, 0
  %v3737 = vsel %vm3583, %v3642, 0
  %vm3739 = vcmask 1043456
  %v3741 = vsel %vm3739, %v3727, 0
  %v3744 = vsel %vm3739, %v3728, 0
  %3746 = vmatprep.subr.mxu0 0.0
  %3747 = vmatpush1.msra.mxu0 0.0
  %3748 = vmatprep.subr.mxu0 0.0
  %3749 = vmatpush1.msra.mxu0 0.0
  %3750 = vmatprep.subr.mxu0 0.0
  %3751 = vmatpush1.msra.mxu0 0.0
  %3752 = vmatprep.subr.mxu0 0.0
  %3753 = vmatpush1.msra.mxu0 0.0
  %3754 = vmatprep.subr.mxu0 0.0
  %3755 = vmatpush1.msra.mxu0 0.0
  %3756 = vmatprep.subr.mxu0 0.0
  %3757 = vmatpush1.msra.mxu0 0.0
  %3758 = vmatprep.subr.mxu0 0.0
  %3759 = vmatpush1.msra.mxu0 0.0
  %3760 = vmatprep.subr.mxu0 0.0
  %3761 = vmatpush1.msra.mxu0 0.0
  %3762 = vmatprep.subr.mxu0 0.0
  %3763 = vmatpush1.msra.mxu0 0.0
  %3764 = vmatprep.subr.mxu0 0.0
  %3765 = vmatpush1.msra.mxu0 0.0
  %3766 = vmatprep.subr.mxu0 0.0
  %3767 = vmatpush1.msra.mxu0 0.0
  %3768 = vmatprep.subr.mxu0 0.0
  %3769 = vmatpush1.msra.mxu0 0.0
  %3770 = vmatprep.subr.mxu0 0.0
  %3771 = vmatpush1.msra.mxu0 0.0
  %3772 = vmatprep.subr.mxu0 0.0
  %3773 = vmatpush1.msra.mxu0 0.0
  %3774 = vmatprep.subr.mxu0 0.0
  %3775 = vmatpush1.msra.mxu0 0.0
  %3776 = vmatprep.subr.mxu0 %v3744
  %3777 = vmatpush1.msra.mxu0 %v3741
  %3778 = vmatprep.subr.mxu0 0.0
  %3779 = vmatpush2.msra.mxu0 0.0
  %3780 = vmatprep.subr.mxu0 0.0
  %3781 = vmatpush2.msra.mxu0 0.0
  %3782 = vmatprep.subr.mxu0 0.0
  %3783 = vmatpush2.msra.mxu0 0.0
  %3784 = vmatprep.subr.mxu0 0.0
  %3785 = vmatpush2.msra.mxu0 0.0
  %3786 = vmatprep.subr.mxu0 0.0
  %3787 = vmatpush2.msra.mxu0 0.0
  %3788 = vmatprep.subr.mxu0 0.0
  %3789 = vmatpush2.msra.mxu0 0.0
  %3790 = vmatprep.subr.mxu0 0.0
  %3791 = vmatpush2.msra.mxu0 0.0
  %3792 = vmatprep.subr.mxu0 0.0
  %3793 = vmatpush2.msra.mxu0 0.0
  %3794 = vmatprep.subr.mxu0 0.0
  %3795 = vmatpush2.msra.mxu0 0.0
  %3796 = vmatprep.subr.mxu0 0.0
  %3797 = vmatpush2.msra.mxu0 0.0
  %3798 = vmatprep.subr.mxu0 0.0
  %3799 = vmatpush2.msra.mxu0 0.0
  %3800 = vmatprep.subr.mxu0 0.0
  %3801 = vmatpush2.msra.mxu0 0.0
  %3802 = vmatprep.subr.mxu0 0.0
  %3803 = vmatpush2.msra.mxu0 0.0
  %3804 = vmatprep.subr.mxu0 0.0
  %3805 = vmatpush2.msra.mxu0 0.0
  %3806 = vmatprep.subr.mxu0 0.0
  %3807 = vmatpush2.msra.mxu0 0.0
  %3808 = vmatprep.subr.mxu0 0.0
  %3809 = vmatpush2.msra.mxu0 0.0
  %3810 = vmatprep.mubr.f32.mxu0 0.0
  %3811 = vmatmul.mubr.f32.gmra.mxu0 %v3730
  %v3812 = vpop.f32.mrf.mxu0
  %v3813 = vadd.f32 0.0, %v3812
  %v3814 = vpop.f32.mrf.mxu0
  %v3815 = vadd.f32 0.0, %v3814
  %3816 = vmatprep.mubr.f32.mxu0 0.0
  %3817 = vmatmul.mubr.f32.gmra.mxu0 %v3733
  %v3818 = vpop.f32.mrf.mxu0
  %v3819 = vadd.f32 0.0, %v3818
  %v3820 = vpop.f32.mrf.mxu0
  %v3821 = vadd.f32 0.0, %v3820
  %3822 = vmatprep.mubr.f32.mxu0 0.0
  %3823 = vmatmul.mubr.f32.gmra.mxu0 %v3735
  %v3824 = vpop.f32.mrf.mxu0
  %v3825 = vadd.f32 0.0, %v3824
  %v3826 = vpop.f32.mrf.mxu0
  %v3827 = vadd.f32 0.0, %v3826
  %3828 = vmatprep.mubr.f32.mxu0 0.0
  %3829 = vmatmul.mubr.f32.gmra.mxu0 %v3737
  %v3830 = vpop.f32.mrf.mxu0
  %v3831 = vadd.f32 0.0, %v3830
  %v3832 = vpop.f32.mrf.mxu0
  %v3833 = vadd.f32 0.0, %v3832
  %3834 = vdwg.mxu0
  %v3835 = vld [vmem:[%s3] sm:$0xf]
  %v3837 = vsel %vm3739, %v3835, 0
  %3839 = vmatprep.subr.mxu0 0.0
  %3840 = vmatpush1.msra.mxu0 0.0
  %3841 = vmatprep.subr.mxu0 0.0
  %3842 = vmatpush1.msra.mxu0 0.0
  %3843 = vmatprep.subr.mxu0 0.0
  %3844 = vmatpush1.msra.mxu0 0.0
  %3845 = vmatprep.subr.mxu0 0.0
  %3846 = vmatpush1.msra.mxu0 0.0
  %3847 = vmatprep.subr.mxu0 0.0
  %3848 = vmatpush1.msra.mxu0 0.0
  %3849 = vmatprep.subr.mxu0 0.0
  %3850 = vmatpush1.msra.mxu0 0.0
  %3851 = vmatprep.subr.mxu0 0.0
  %3852 = vmatpush1.msra.mxu0 0.0
  %3853 = vmatprep.subr.mxu0 0.0
  %3854 = vmatpush1.msra.mxu0 0.0
  %3855 = vmatprep.subr.mxu0 0.0
  %3856 = vmatpush1.msra.mxu0 0.0
  %3857 = vmatprep.subr.mxu0 0.0
  %3858 = vmatpush1.msra.mxu0 0.0
  %3859 = vmatprep.subr.mxu0 0.0
  %3860 = vmatpush1.msra.mxu0 0.0
  %3861 = vmatprep.subr.mxu0 0.0
  %3862 = vmatpush1.msra.mxu0 0.0
  %3863 = vmatprep.subr.mxu0 0.0
  %3864 = vmatpush1.msra.mxu0 0.0
  %3865 = vmatprep.subr.mxu0 0.0
  %3866 = vmatpush1.msra.mxu0 0.0
  %3867 = vmatprep.subr.mxu0 0.0
  %3868 = vmatpush1.msra.mxu0 0.0
  %3869 = vmatprep.subr.mxu0 0.0
  %3870 = vmatpush1.msra.mxu0 %v3837
  %3871 = vmatprep.subr.mxu0 0.0
  %3872 = vmatpush2.msra.mxu0 0.0
  %3873 = vmatprep.subr.mxu0 0.0
  %3874 = vmatpush2.msra.mxu0 0.0
  %3875 = vmatprep.subr.mxu0 0.0
  %3876 = vmatpush2.msra.mxu0 0.0
  %3877 = vmatprep.subr.mxu0 0.0
  %3878 = vmatpush2.msra.mxu0 0.0
  %3879 = vmatprep.subr.mxu0 0.0
  %3880 = vmatpush2.msra.mxu0 0.0
  %3881 = vmatprep.subr.mxu0 0.0
  %3882 = vmatpush2.msra.mxu0 0.0
  %3883 = vmatprep.subr.mxu0 0.0
  %3884 = vmatpush2.msra.mxu0 0.0
  %3885 = vmatprep.subr.mxu0 0.0
  %3886 = vmatpush2.msra.mxu0 0.0
  %3887 = vmatprep.subr.mxu0 0.0
  %3888 = vmatpush2.msra.mxu0 0.0
  %3889 = vmatprep.subr.mxu0 0.0
  %3890 = vmatpush2.msra.mxu0 0.0
  %3891 = vmatprep.subr.mxu0 0.0
  %3892 = vmatpush2.msra.mxu0 0.0
  %3893 = vmatprep.subr.mxu0 0.0
  %3894 = vmatpush2.msra.mxu0 0.0
  %3895 = vmatprep.subr.mxu0 0.0
  %3896 = vmatpush2.msra.mxu0 0.0
  %3897 = vmatprep.subr.mxu0 0.0
  %3898 = vmatpush2.msra.mxu0 0.0
  %3899 = vmatprep.subr.mxu0 0.0
  %3900 = vmatpush2.msra.mxu0 0.0
  %3901 = vmatprep.subr.mxu0 0.0
  %3902 = vmatpush2.msra.mxu0 0.0
  %3903 = vmatprep.mubr.f32.mxu0 0.0
  %3904 = vmatmul.mubr.f32.gmra.mxu0 %v3730
  %v3905 = vpop.f32.mrf.mxu0
  %v3906 = vadd.f32 0.0, %v3905
  %v3907 = vpop.f32.mrf.mxu0
  %3908 = vmatprep.mubr.f32.mxu0 0.0
  %3909 = vmatmul.mubr.f32.gmra.mxu0 %v3733
  %v3910 = vpop.f32.mrf.mxu0
  %v3911 = vadd.f32 0.0, %v3910
  %v3912 = vpop.f32.mrf.mxu0
  %3913 = vmatprep.mubr.f32.mxu0 0.0
  %3914 = vmatmul.mubr.f32.gmra.mxu0 %v3735
  %v3915 = vpop.f32.mrf.mxu0
  %v3916 = vadd.f32 0.0, %v3915
  %v3917 = vpop.f32.mrf.mxu0
  %3918 = vmatprep.mubr.f32.mxu0 0.0
  %3919 = vmatmul.mubr.f32.gmra.mxu0 %v3737
  %v3920 = vpop.f32.mrf.mxu0
  %v3921 = vadd.f32 0.0, %v3920
  %v3922 = vpop.f32.mrf.mxu0
  %3923 = vdwg.mxu0
  %v3924 = vmul.f32 %v3723, %v3813
  %v3925 = vmul.f32 %v3724, %v3815
  %v3926 = vmul.f32 %v3725, %v3819
  %v3927 = vmul.f32 %v3726, %v3821
  %v3928 = vmul.f32 %v3723, %v3825
  %v3929 = vmul.f32 %v3724, %v3827
  %v3930 = vmul.f32 %v3725, %v3831
  %v3931 = vmul.f32 %v3726, %v3833
  %v3932 = vld [vmem:[%s1 + $0x90] sm:$0xf]
  %v3933 = vld [vmem:[%s1 + $0x94] sm:$0xf]
  %v3934 = vld [vmem:[%s1 + $0x98] sm:$0xf]
  %v3935 = vld [vmem:[%s1 + $0x9c] sm:$0xf]
  %v3936 = vld [vmem:[%s1 + $0xa0] sm:$0xf]
  %v3937 = vld [vmem:[%s1 + $0xa4] sm:$0xf]
  %v3938 = vld [vmem:[%s1 + $0xa8] sm:$0xf]
  %v3939 = vld [vmem:[%s1 + $0xac] sm:$0xf]
  %v3940 = vld [vmem:[%s1 + $0xb0] sm:$0xf]
  %v3941 = vld [vmem:[%s1 + $0xb4] sm:$0xf]
  %v3942 = vld [vmem:[%s1 + $0xb8] sm:$0xf]
  %v3943 = vld [vmem:[%s1 + $0xbc] sm:$0xf]
  %v3944 = vld [vmem:[%s1 + $0xc0] sm:$0xf]
  %v3945 = vld [vmem:[%s1 + $0xc4] sm:$0xf]
  %v3946 = vld [vmem:[%s1 + $0xc8] sm:$0xf]
  %v3947 = vld [vmem:[%s1 + $0xcc] sm:$0xf]
  %v3948 = vld [vmem:[%s1 + $0xd0] sm:$0xf]
  %v3949 = vld [vmem:[%s1 + $0xd4] sm:$0xf]
  %v3950 = vld [vmem:[%s1 + $0xd8] sm:$0xf]
  %v3951 = vld [vmem:[%s1 + $0xdc] sm:$0xf]
  %v3952 = vld [vmem:[%s1 + $0xe0] sm:$0xf]
  %v3953 = vld [vmem:[%s1 + $0xe4] sm:$0xf]
  %v3954 = vld [vmem:[%s1 + $0xe8] sm:$0xf]
  %v3955 = vld [vmem:[%s1 + $0xec] sm:$0xf]
  %v3956 = vld [vmem:[%s1 + $0xf0] sm:$0xf]
  %v3957 = vld [vmem:[%s1 + $0xf4] sm:$0xf]
  %v3958 = vld [vmem:[%s1 + $0xf8] sm:$0xf]
  %v3959 = vld [vmem:[%s1 + $0xfc] sm:$0xf]
  %v3960 = vld [vmem:[%s1 + $0x100] sm:$0xf]
  %v3961 = vld [vmem:[%s1 + $0x104] sm:$0xf]
  %v3962 = vld [vmem:[%s1 + $0x108] sm:$0xf]
  %v3963 = vld [vmem:[%s1 + $0x10c] sm:$0xf]
  %v3964 = vpack.c.bf16 %v3926, %v3924
  %v3965 = vpack.c.bf16 %v3927, %v3925
  %v3966 = vpack.c.bf16 %v3930, %v3928
  %v3967 = vpack.c.bf16 %v3931, %v3929
  %v4000 = vunpack.c.l.b16 %v3932
  %v4001 = vunpack.c.l.b16 %v3933
  %v4002 = vunpack.c.l.b16 %v3934
  %v4003 = vunpack.c.l.b16 %v3935
  %v4004 = vunpack.c.l.b16 %v3936
  %v4005 = vunpack.c.l.b16 %v3937
  %v4006 = vunpack.c.l.b16 %v3938
  %v4007 = vunpack.c.l.b16 %v3939
  %v4008 = vunpack.c.l.b16 %v3940
  %v4009 = vunpack.c.l.b16 %v3941
  %v4010 = vunpack.c.l.b16 %v3942
  %v4011 = vunpack.c.l.b16 %v3943
  %v4012 = vunpack.c.l.b16 %v3944
  %v4013 = vunpack.c.l.b16 %v3945
  %v4014 = vunpack.c.l.b16 %v3946
  %v4015 = vunpack.c.l.b16 %v3947
  %v4016 = vunpack.c.l.b16 %v3948
  %v4017 = vunpack.c.l.b16 %v3949
  %v4018 = vunpack.c.l.b16 %v3950
  %v4019 = vunpack.c.l.b16 %v3951
  %v4020 = vunpack.c.l.b16 %v3952
  %v4021 = vunpack.c.l.b16 %v3953
  %v4022 = vunpack.c.l.b16 %v3954
  %v4023 = vunpack.c.l.b16 %v3955
  %v4024 = vunpack.c.l.b16 %v3956
  %v4025 = vunpack.c.l.b16 %v3957
  %v4026 = vunpack.c.l.b16 %v3958
  %v4027 = vunpack.c.l.b16 %v3959
  %v4028 = vunpack.c.l.b16 %v3960
  %v4029 = vunpack.c.l.b16 %v3961
  %v4030 = vunpack.c.l.b16 %v3962
  %v4031 = vunpack.c.l.b16 %v3963
  %v4032 = vpack.c.b16 %v4001, %v4000
  %v4033 = vpack.c.b16 %v4003, %v4002
  %v4034 = vpack.c.b16 %v4005, %v4004
  %v4035 = vpack.c.b16 %v4007, %v4006
  %v4036 = vpack.c.b16 %v4009, %v4008
  %v4037 = vpack.c.b16 %v4011, %v4010
  %v4038 = vpack.c.b16 %v4013, %v4012
  %v4039 = vpack.c.b16 %v4015, %v4014
  %v4040 = vpack.c.b16 %v4017, %v4016
  %v4041 = vpack.c.b16 %v4019, %v4018
  %v4042 = vpack.c.b16 %v4021, %v4020
  %v4043 = vpack.c.b16 %v4023, %v4022
  %v4044 = vpack.c.b16 %v4025, %v4024
  %v4045 = vpack.c.b16 %v4027, %v4026
  %v4046 = vpack.c.b16 %v4029, %v4028
  %v4047 = vpack.c.b16 %v4031, %v4030
  %4064 = vmatprep.subr.bf16.mxu0 0
  %4065 = vmatpush1.bf16.msra.mxu0 %v4039
  %4066 = vmatprep.subr.bf16.mxu0 0
  %4067 = vmatpush1.bf16.msra.mxu0 %v4038
  %4068 = vmatprep.subr.bf16.mxu0 0
  %4069 = vmatpush1.bf16.msra.mxu0 %v4037
  %4070 = vmatprep.subr.bf16.mxu0 0
  %4071 = vmatpush1.bf16.msra.mxu0 %v4036
  %4072 = vmatprep.subr.bf16.mxu0 0
  %4073 = vmatpush1.bf16.msra.mxu0 %v4035
  %4074 = vmatprep.subr.bf16.mxu0 0
  %4075 = vmatpush1.bf16.msra.mxu0 %v4034
  %4076 = vmatprep.subr.bf16.mxu0 0
  %4077 = vmatpush1.bf16.msra.mxu0 %v4033
  %4078 = vmatprep.subr.bf16.mxu0 0
  %4079 = vmatpush1.bf16.msra.mxu0 %v4032
  %4080 = vmatprep.subr.bf16.mxu0 0
  %4081 = vmatpush2.bf16.msra.mxu0 %v4047
  %4082 = vmatprep.subr.bf16.mxu0 0
  %4083 = vmatpush2.bf16.msra.mxu0 %v4046
  %4084 = vmatprep.subr.bf16.mxu0 0
  %4085 = vmatpush2.bf16.msra.mxu0 %v4045
  %4086 = vmatprep.subr.bf16.mxu0 0
  %4087 = vmatpush2.bf16.msra.mxu0 %v4044
  %4088 = vmatprep.subr.bf16.mxu0 0
  %4089 = vmatpush2.bf16.msra.mxu0 %v4043
  %4090 = vmatprep.subr.bf16.mxu0 0
  %4091 = vmatpush2.bf16.msra.mxu0 %v4042
  %4092 = vmatprep.subr.bf16.mxu0 0
  %4093 = vmatpush2.bf16.msra.mxu0 %v4041
  %4094 = vmatprep.subr.bf16.mxu0 0
  %4095 = vmatpush2.bf16.msra.mxu0 %v4040
  %4096 = vmatprep.mubr.bf16.mxu0 %v3965
  %4097 = vmatmul.mubr.bf16.gmra.mxu0 %v3964
  %v4098 = vpop.f32.mrf.mxu0
  %v4099 = vadd.f32 %v3906, %v4098
  %v4100 = vpop.f32.mrf.mxu0
  %v4101 = vpop.f32.mrf.mxu0
  %v4102 = vadd.f32 %v3911, %v4101
  %v4103 = vpop.f32.mrf.mxu0
  %4104 = vmatprep.mubr.bf16.mxu0 %v3967
  %4105 = vmatmul.mubr.bf16.gmra.mxu0 %v3966
  %v4106 = vpop.f32.mrf.mxu0
  %v4107 = vadd.f32 %v3916, %v4106
  %v4108 = vpop.f32.mrf.mxu0
  %v4109 = vpop.f32.mrf.mxu0
  %v4110 = vadd.f32 %v3921, %v4109
  %v4111 = vpop.f32.mrf.mxu0
  %4112 = vdwg.mxu0
  %v4113 = vld [vmem:[%s2 + $0x60] sm:$0xf]
  %v4114 = vld [vmem:[%s2 + $0x68] sm:$0xf]
  %v4115 = vld [vmem:[%s2 + $0x70] sm:$0xf]
  %v4116 = vld [vmem:[%s2 + $0x78] sm:$0xf]
  %v4117 = vpack.c.bf16 %v4102, %v4099
  %v4118 = vld [vmem:[%s2 + $0x80] sm:$0xf]
  %v4119 = vld [vmem:[%s2 + $0x88] sm:$0xf]
  %v4120 = vld [vmem:[%s2 + $0x90] sm:$0xf]
  %v4121 = vld [vmem:[%s2 + $0x98] sm:$0xf]
  %v4122 = vpack.c.bf16 %v4110, %v4107
  %v4127 = vunpack.c.l.b16 %v4118
  %v4128 = vunpack.c.l.b16 %v4119
  %v4129 = vunpack.c.l.b16 %v4120
  %v4130 = vunpack.c.l.b16 %v4121
  %v4131 = vpack.c.b16 %v4128, %v4127
  %v4132 = vpack.c.b16 %v4130, %v4129
  %v4136 = vsel %vm47, %v4122, 0
  %4138 = vmatprep.subr.bf16.mxu0 0
  %4139 = vmatpush1.bf16.msra.mxu0 0
  %4140 = vmatprep.subr.bf16.mxu0 0
  %4141 = vmatpush1.bf16.msra.mxu0 0
  %4142 = vmatprep.subr.bf16.mxu0 0
  %4143 = vmatpush1.bf16.msra.mxu0 0
  %4144 = vmatprep.subr.bf16.mxu0 0
  %4145 = vmatpush1.bf16.msra.mxu0 0
  %4146 = vmatprep.subr.bf16.mxu0 0
  %4147 = vmatpush1.bf16.msra.mxu0 0
  %4148 = vmatprep.subr.bf16.mxu0 0
  %4149 = vmatpush1.bf16.msra.mxu0 0
  %4150 = vmatprep.subr.bf16.mxu0 0
  %4151 = vmatpush1.bf16.msra.mxu0 %v4132
  %4152 = vmatprep.subr.bf16.mxu0 0
  %4153 = vmatpush1.bf16.msra.mxu0 %v4131
  %4154 = vmatprep.subr.bf16.mxu0 0
  %4155 = vmatpush2.bf16.msra.mxu0 0
  %4156 = vmatprep.subr.bf16.mxu0 0
  %4157 = vmatpush2.bf16.msra.mxu0 0
  %4158 = vmatprep.subr.bf16.mxu0 0
  %4159 = vmatpush2.bf16.msra.mxu0 0
  %4160 = vmatprep.subr.bf16.mxu0 0
  %4161 = vmatpush2.bf16.msra.mxu0 0
  %4162 = vmatprep.subr.bf16.mxu0 0
  %4163 = vmatpush2.bf16.msra.mxu0 0
  %4164 = vmatprep.subr.bf16.mxu0 0
  %4165 = vmatpush2.bf16.msra.mxu0 0
  %4166 = vmatprep.subr.bf16.mxu0 0
  %4167 = vmatpush2.bf16.msra.mxu0 0
  %4168 = vmatprep.subr.bf16.mxu0 0
  %4169 = vmatpush2.bf16.msra.mxu0 0
  %4170 = vmatprep.mubr.bf16.mxu0 0
  %4171 = vmatmul.mubr.bf16.gmra.mxu0 %v4136
  %v4172 = vpop.f32.mrf.mxu0
  %v4173 = vadd.f32 0.0, %v4172
  %v4174 = vpop.f32.mrf.mxu0
  %v4175 = vpop.f32.mrf.mxu0
  %v4176 = vadd.f32 0.0, %v4175
  %v4177 = vpop.f32.mrf.mxu0
  %4178 = vdwg.mxu0
  %v4183 = vunpack.c.l.b16 %v4113
  %v4184 = vunpack.c.l.b16 %v4114
  %v4185 = vunpack.c.l.b16 %v4115
  %v4186 = vunpack.c.l.b16 %v4116
  %v4187 = vpack.c.b16 %v4184, %v4183
  %v4188 = vpack.c.b16 %v4186, %v4185
  %v4192 = vsel %vm47, %v4117, 0
  %4194 = vmatprep.subr.bf16.mxu0 0
  %4195 = vmatpush1.bf16.msra.mxu0 0
  %4196 = vmatprep.subr.bf16.mxu0 0
  %4197 = vmatpush1.bf16.msra.mxu0 0
  %4198 = vmatprep.subr.bf16.mxu0 0
  %4199 = vmatpush1.bf16.msra.mxu0 0
  %4200 = vmatprep.subr.bf16.mxu0 0
  %4201 = vmatpush1.bf16.msra.mxu0 0
  %4202 = vmatprep.subr.bf16.mxu0 0
  %4203 = vmatpush1.bf16.msra.mxu0 0
  %4204 = vmatprep.subr.bf16.mxu0 0
  %4205 = vmatpush1.bf16.msra.mxu0 0
  %4206 = vmatprep.subr.bf16.mxu0 0
  %4207 = vmatpush1.bf16.msra.mxu0 %v4188
  %4208 = vmatprep.subr.bf16.mxu0 0
  %4209 = vmatpush1.bf16.msra.mxu0 %v4187
  %4210 = vmatprep.subr.bf16.mxu0 0
  %4211 = vmatpush2.bf16.msra.mxu0 0
  %4212 = vmatprep.subr.bf16.mxu0 0
  %4213 = vmatpush2.bf16.msra.mxu0 0
  %4214 = vmatprep.subr.bf16.mxu0 0
  %4215 = vmatpush2.bf16.msra.mxu0 0
  %4216 = vmatprep.subr.bf16.mxu0 0
  %4217 = vmatpush2.bf16.msra.mxu0 0
  %4218 = vmatprep.subr.bf16.mxu0 0
  %4219 = vmatpush2.bf16.msra.mxu0 0
  %4220 = vmatprep.subr.bf16.mxu0 0
  %4221 = vmatpush2.bf16.msra.mxu0 0
  %4222 = vmatprep.subr.bf16.mxu0 0
  %4223 = vmatpush2.bf16.msra.mxu0 0
  %4224 = vmatprep.subr.bf16.mxu0 0
  %4225 = vmatpush2.bf16.msra.mxu0 0
  %4226 = vmatprep.mubr.bf16.mxu0 0
  %4227 = vmatmul.mubr.bf16.gmra.mxu0 %v4192
  %v4228 = vpop.f32.mrf.mxu0
  %v4229 = vadd.f32 %v4173, %v4228
  %v4230 = vpop.f32.mrf.mxu0
  %v4231 = vpop.f32.mrf.mxu0
  %v4232 = vadd.f32 %v4176, %v4231
  %v4233 = vpop.f32.mrf.mxu0
  %4234 = vdwg.mxu0
  %v4235 = vld [vmem:[%s4 + $0x3] ss:$0 sm:$0xff]
  %v4236 = vadd.f32 %v4229, %v4235
  %v4237 = vadd.f32 %v4232, %v4235
  %v4238 = vld [vmem:[%s4 + $0x6] ss:$0 sm:$0xff]
  %vm4239 = vcmp.gt.f32.partialorder %v4238, 0.0
  %v4240 = vsub.f32 0.0, %v4236
  %v4241 = vsub.f32 0.0, %v4237
  %v4242 = vmul.f32 %v4240, 1.442695
  %v4243 = vpow.pop %v4242
  %v4244 = vmul.f32 %v4241, 1.442695
  %v4245 = vpow.pop %v4244
  %v4246 = vadd.f32 %v4243, 1.0
  %v4247 = vadd.f32 %v4245, 1.0
  %v4248 = vrcp.pop %v4246
  %v4249 = vmul.f32 1.0, %v4248
  %v4250 = vrcp.pop %v4247
  %v4251 = vmul.f32 1.0, %v4250
  %v4252 = vsel %vm4239, 1, 0
  %vm4253 = vcmp.eq.s32.totalorder %v4252, 1
  %v4256 = vrot.slane %v4249, 1
  %v4257 = vrot.slane %v4249, 2
  %v4258 = vrot.slane %v4249, 3
  %v4259 = vrot.slane %v4249, 4
  %v4260 = vrot.slane %v4249, 5
  %v4261 = vrot.slane %v4249, 6
  %v4262 = vrot.slane %v4249, 7
  %v4263 = vrot.slane %v4251, 1
  %v4264 = vrot.slane %v4251, 2
  %v4265 = vrot.slane %v4251, 3
  %v4266 = vrot.slane %v4251, 4
  %v4267 = vrot.slane %v4251, 5
  %v4268 = vrot.slane %v4251, 6
  %v4269 = vrot.slane %v4251, 7
  %v4288 = vrot.slane %v4236, 1
  %v4289 = vrot.slane %v4236, 2
  %v4290 = vrot.slane %v4236, 3
  %v4291 = vrot.slane %v4236, 4
  %v4292 = vrot.slane %v4236, 5
  %v4293 = vrot.slane %v4236, 6
  %v4294 = vrot.slane %v4236, 7
  %v4295 = vrot.slane %v4237, 1
  %v4296 = vrot.slane %v4237, 2
  %v4297 = vrot.slane %v4237, 3
  %v4298 = vrot.slane %v4237, 4
  %v4299 = vrot.slane %v4237, 5
  %v4300 = vrot.slane %v4237, 6
  %v4301 = vrot.slane %v4237, 7
  %v4318 = vsel %vm4253, %v4249, %v4236
  %v4319 = vsel %vm4253, %v4256, %v4288
  %v4320 = vsel %vm4253, %v4257, %v4289
  %v4321 = vsel %vm4253, %v4258, %v4290
  %v4322 = vsel %vm4253, %v4259, %v4291
  %v4323 = vsel %vm4253, %v4260, %v4292
  %v4324 = vsel %vm4253, %v4261, %v4293
  %v4325 = vsel %vm4253, %v4262, %v4294
  %v4326 = vsel %vm4253, %v4251, %v4237
  %v4327 = vsel %vm4253, %v4263, %v4295
  %v4328 = vsel %vm4253, %v4264, %v4296
  %v4329 = vsel %vm4253, %v4265, %v4297
  %v4330 = vsel %vm4253, %v4266, %v4298
  %v4331 = vsel %vm4253, %v4267, %v4299
  %v4332 = vsel %vm4253, %v4268, %v4300
  %v4333 = vsel %vm4253, %v4269, %v4301
  %v4350 = vrot.slane %v4319, 7
  %vm4351 = vcmask 1041409
  %v4352 = vsel %vm4351, %v4350, %v4318
  %v4353 = vrot.slane %v4320, 6
  %vm4354 = vcmask 1042434
  %v4355 = vsel %vm4354, %v4353, %v4352
  %v4356 = vrot.slane %v4321, 5
  %vm4357 = vcmask 1043459
  %v4358 = vsel %vm4357, %v4356, %v4355
  %v4359 = vrot.slane %v4322, 4
  %vm4360 = vcmask 1044484
  %v4361 = vsel %vm4360, %v4359, %v4358
  %v4362 = vrot.slane %v4323, 3
  %vm4363 = vcmask 1045509
  %v4364 = vsel %vm4363, %v4362, %v4361
  %v4365 = vrot.slane %v4324, 2
  %vm4366 = vcmask 1046534
  %v4367 = vsel %vm4366, %v4365, %v4364
  %v4368 = vrot.slane %v4325, 1
  %vm4369 = vcmask 1047559
  %v4370 = vsel %vm4369, %v4368, %v4367
  %v4371 = vrot.slane %v4327, 7
  %v4372 = vsel %vm4351, %v4371, %v4326
  %v4373 = vrot.slane %v4328, 6
  %v4374 = vsel %vm4354, %v4373, %v4372
  %v4375 = vrot.slane %v4329, 5
  %v4376 = vsel %vm4357, %v4375, %v4374
  %v4377 = vrot.slane %v4330, 4
  %v4378 = vsel %vm4360, %v4377, %v4376
  %v4379 = vrot.slane %v4331, 3
  %v4380 = vsel %vm4363, %v4379, %v4378
  %v4381 = vrot.slane %v4332, 2
  %v4382 = vsel %vm4366, %v4381, %v4380
  %v4383 = vrot.slane %v4333, 1
  %v4384 = vsel %vm4369, %v4383, %v4382
  %4387 = vst [vmem:[%s5] sm:$0xff] %v4370
  %4388 = vst [vmem:[%s5 + $0x8] sm:$0xff] %v4384
  // Predicated region
  $region22: #{_forward_impl.1} parent=0 // pred_check
    _
  $region23: #{_forward_impl.1} parent=0 // pred_check_branch
    %4390 = sbr.rel (0) target = $region25
  $region24: #{_forward_impl.1} parent=0 // pred_region
    _
  $region25: #{_forward_impl.1} parent=0 // pred_fallthru
    _
  // Predicated region
  $region26: #{_forward_impl.1} parent=0 // pred_check
    _
  $region27: #{_forward_impl.1} parent=0 // pred_check_branch
    %4392 = sbr.rel (0) target = $region29
  $region28: #{_forward_impl.1} parent=0 // pred_region
    _
  $region29: #{_forward_impl.1} parent=0 // pred_fallthru
    _

</llo_original>
